<compile_context>
chip_gen: v6e
topology: v6e:2x2x1
jax: 0.10.0
libtpu: 0.0.40
codegen_flags: <defaults>
</compile_context>

<pallas_src>
import jax
import jax.numpy as jnp
from jax import lax
from jax.experimental import pallas as pl
from jax.experimental.pallas import tpu as pltpu

BN_EPS = 1e-5
LANE = 128


def _round_up(v, m):
    return (v + m - 1) // m * m


def _pad2d(a, rows, cols):
    return jnp.pad(a, ((0, rows - a.shape[0]), (0, cols - a.shape[1])))


def _choose_tm(n_pad):
    for tm in (512, 256, 128):
        if n_pad % tm == 0:
            return tm
    return n_pad


def _make_fused_kernel(n_real, n_pad, tm, num_conv):
    """Build the fused GIN kernel for static sizes (n_real real nodes)."""
    num_tiles = n_pad // tm
    inv_n = 1.0 / float(n_real)

    def kernel(a_hbm, x_ref, w1_ref, b1_ref, w2_ref, b2_ref, g_ref, bt_ref,
               wc_ref, bc_ref, o_ref,
               h_ref, h2_ref, hb_ref, abuf_ref, sem_ref):
        # Mask of real (non-padded) node rows; BN stats only use real rows.
        row_mask = lax.broadcasted_iota(jnp.int32, (n_pad, 1), 0) < n_real

        # Layer-0 input: lane-padded node features.
        h_ref[...] = x_ref[...]

        def start_fetch(tile_idx, slot):
            start = pl.multiple_of(tile_idx * tm, tm)
            pltpu.make_async_copy(a_hbm.at[pl.ds(start, tm), :],
                                  abuf_ref.at[slot], sem_ref.at[slot]).start()

        def wait_fetch(slot):
            pltpu.make_async_copy(a_hbm.at[pl.ds(0, tm), :],
                                  abuf_ref.at[slot], sem_ref.at[slot]).wait()

        for l in range(num_conv):  # static unroll over the GIN layers
            # bf16 copy of the current activations for the MXU aggregation.
            hb_ref[...] = h_ref[...].astype(jnp.bfloat16)

            # Layer weights: load once per layer (resident across node tiles).
            w1 = w1_ref[l]
            b1 = b1_ref[l]
            w2 = w2_ref[l]
            b2 = b2_ref[l]

            # Prime the A_hat row-tile double buffer.
            start_fetch(0, 0)

            def tile_body(t, carry, w1=w1, b1=b1, w2=w2, b2=b2):
                slot = t & 1
                wait_fetch(slot)

                @pl.when(t + 1 < num_tiles)
                def _():
                    start_fetch(t + 1, (t + 1) & 1)

                # GINConv aggregation: (1+eps)*x_i + sum_{j in N(i)} x_j
                # (A_hat already carries (1+eps) on the diagonal).
                agg = jnp.dot(abuf_ref[slot], hb_ref[...],
                              preferred_element_type=jnp.float32)
                # GINConv MLP: Linear -> ReLU -> Linear (pre-BatchNorm output).
                h1 = jnp.maximum(
                    jnp.dot(agg, w1, preferred_element_type=jnp.float32) + b1,
                    0.0)
                h2 = jnp.dot(h1, w2, preferred_element_type=jnp.float32) + b2
                row0 = pl.multiple_of(t * tm, tm)
                h2_ref[pl.ds(row0, tm), :] = h2
                return carry

            lax.fori_loop(0, num_tiles, tile_body, 0, unroll=num_tiles <= 4)

            # BatchNorm1d (training-mode batch statistics over the REAL node
            # rows only -- correct for any row tiling / padding), then ReLU.
            h2 = h2_ref[...]
            mean = jnp.sum(jnp.where(row_mask, h2, 0.0),
                           axis=0, keepdims=True) * inv_n
            cent = h2 - mean
            var = jnp.sum(jnp.where(row_mask, cent * cent, 0.0),
                          axis=0, keepdims=True) * inv_n
            y = cent * lax.rsqrt(var + BN_EPS) * g_ref[l] + bt_ref[l]
            # F.dropout(p=0.0) is a no-op.  Keep padded rows zeroed.
            h_ref[...] = jnp.where(row_mask, jnp.maximum(y, 0.0), 0.0)

        # Final classifier: Linear(hidden -> num_classes), lane-padded output.
        o_ref[...] = (jnp.dot(h_ref[...], wc_ref[...],
                              preferred_element_type=jnp.float32) + bc_ref[...])

    return kernel


def init_params(key, num_features, hidden_dim, num_classes, num_layers):
    """Deterministic synthetic parameters with the shapes implied by __init__."""
    params = {"convs": [], "bns": []}
    dims = [(num_features, hidden_dim)] + [(hidden_dim, hidden_dim)] * (num_layers - 2)
    for f_in, f_out in dims:
        key, k1, k2 = jax.random.split(key, 3)
        w1 = jax.random.normal(k1, (f_in, f_out), jnp.float32) / jnp.sqrt(f_in)
        b1 = jnp.zeros((1, f_out), jnp.float32)
        w2 = jax.random.normal(k2, (f_out, f_out), jnp.float32) / jnp.sqrt(f_out)
        b2 = jnp.zeros((1, f_out), jnp.float32)
        params["convs"].append((w1, b1, w2, b2))
        # BatchNorm1d default init: weight=1, bias=0.
        params["bns"].append((jnp.ones((1, f_out), jnp.float32),
                              jnp.zeros((1, f_out), jnp.float32)))
    key, kc = jax.random.split(key)
    wc = jax.random.normal(kc, (hidden_dim, num_classes), jnp.float32) / jnp.sqrt(hidden_dim)
    bc = jnp.zeros((1, num_classes), jnp.float32)
    params["classifier"] = (wc, bc)
    return params


def build_a_hat(edge_index, num_nodes, eps=0.0):
    # Glue (plain JAX): dense adjacency, A[target, source] counts edges.
    a = jnp.zeros((num_nodes, num_nodes), jnp.float32)
    a = a.at[edge_index[1], edge_index[0]].add(1.0)
    return a + (1.0 + eps) * jnp.eye(num_nodes, dtype=jnp.float32)


def gin_forward(params, x, edge_index, num_nodes):
    num_conv = len(params["convs"])
    hidden = params["convs"][0][2].shape[1]
    num_classes = params["classifier"][0].shape[1]
    num_features = x.shape[1]

    n_pad = _round_up(num_nodes, LANE)
    d = max(_round_up(num_features, LANE), _round_up(hidden, LANE))
    c_pad = _round_up(num_classes, LANE)
    tm = _choose_tm(n_pad)

    # Dense aggregation operator, bf16 (exact for small integer edge counts).
    a = _pad2d(build_a_hat(edge_index, num_nodes), n_pad, n_pad).astype(jnp.bfloat16)
    xp = _pad2d(x, n_pad, d)

    # Stack per-layer params (all padded to a uniform 128-lane width) so the
    # kernel indexes them with a static layer id and they are DMA'd once.
    w1s, b1s, w2s, b2s, gs, bts = [], [], [], [], [], []
    for (w1, b1, w2, b2), (g, bt) in zip(params["convs"], params["bns"]):
        w1s.append(_pad2d(w1, d, d)); b1s.append(_pad2d(b1, 1, d))
        w2s.append(_pad2d(w2, d, d)); b2s.append(_pad2d(b2, 1, d))
        gs.append(_pad2d(g, 1, d));   bts.append(_pad2d(bt, 1, d))
    w1_all = jnp.stack(w1s); b1_all = jnp.stack(b1s)
    w2_all = jnp.stack(w2s); b2_all = jnp.stack(b2s)
    g_all = jnp.stack(gs);   bt_all = jnp.stack(bts)
    wc, bc = params["classifier"]
    wcp = _pad2d(wc, d, c_pad)
    bcp = _pad2d(bc, 1, c_pad)

    kernel = _make_fused_kernel(num_nodes, n_pad, tm, num_conv)

    flops = num_conv * (2 * n_pad * n_pad * d + 4 * n_pad * d * d) \
        + 2 * n_pad * d * c_pad
    bytes_accessed = (num_conv * a.size * 2 + xp.size * 4
                      + (w1_all.size + w2_all.size + wcp.size) * 4
                      + n_pad * c_pad * 4)

    vmem_need = (2 * n_pad * d * 4          # h + h2 scratch (f32)
                 + n_pad * d * 2            # bf16 copy of h
                 + 2 * tm * n_pad * 2       # A_hat double buffer (bf16)
                 + xp.size * 4 + n_pad * c_pad * 4
                 + (w1_all.size + w2_all.size + b1_all.size + b2_all.size
                    + g_all.size + bt_all.size + wcp.size + bcp.size) * 4)
    vmem_limit = min(64 * 1024 * 1024, max(32 * 1024 * 1024, 2 * int(vmem_need)))

    vmem = pltpu.MemorySpace.VMEM
    out = pl.pallas_call(
        kernel,
        out_shape=jax.ShapeDtypeStruct((n_pad, c_pad), jnp.float32),
        in_specs=[pl.BlockSpec(memory_space=pl.ANY)]            # A_hat stays in HBM
                 + [pl.BlockSpec(memory_space=vmem) for _ in range(9)],
        out_specs=pl.BlockSpec(memory_space=vmem),
        scratch_shapes=[
            pltpu.VMEM((n_pad, d), jnp.float32),       # h   (resident activations)
            pltpu.VMEM((n_pad, d), jnp.float32),       # h2  (pre-BN activations)
            pltpu.VMEM((n_pad, d), jnp.bfloat16),      # bf16 copy of h for the MXU
            pltpu.VMEM((2, tm, n_pad), jnp.bfloat16),  # A_hat row-tile double buffer
            pltpu.SemaphoreType.DMA((2,)),
        ],
        compiler_params=pltpu.CompilerParams(vmem_limit_bytes=vmem_limit),
        cost_estimate=pl.CostEstimate(flops=int(flops),
                                      transcendentals=int(num_conv * d),
                                      bytes_accessed=int(bytes_accessed)),
    )(a, xp, w1_all, b1_all, w2_all, b2_all, g_all, bt_all, wcp, bcp)

    return out[:num_nodes, :num_classes]


def gin_forward_ref(params, x, edge_index, num_nodes):
    # Pure-JAX reference mirroring the kernel numerics (bf16 aggregation,
    # f32 accumulation) for a correctness check.
    a = build_a_hat(edge_index, num_nodes).astype(jnp.bfloat16)
    h = x
    for (w1, b1, w2, b2), (g, bt) in zip(params["convs"], params["bns"]):
        t = jnp.dot(a, h.astype(jnp.bfloat16), preferred_element_type=jnp.float32)
        t = jnp.maximum(t @ w1 + b1, 0.0)
        t = t @ w2 + b2
        m = t.mean(0, keepdims=True)
        v = ((t - m) ** 2).mean(0, keepdims=True)
        h = jnp.maximum((t - m) * lax.rsqrt(v + BN_EPS) * g + bt, 0.0)
    wc, bc = params["classifier"]
    return h @ wc + bc


if __name__ == "__main__":
    num_nodes, num_features = 16, 8
    hidden_dim, num_classes, num_layers = 32, 2, 5
    num_edges = 40

    key = jax.random.PRNGKey(0)
    key, kx, ke = jax.random.split(key, 3)
    x = jax.random.normal(kx, (num_nodes, num_features), jnp.float32)
    edge_index = jax.random.randint(ke, (2, num_edges), 0, num_nodes, jnp.int32)

    params = init_params(key, num_features, hidden_dim, num_classes, num_layers)

    out = gin_forward(params, x, edge_index, num_nodes)
    out = jax.block_until_ready(out)

    ref = gin_forward_ref(params, x, edge_index, num_nodes)
    assert out.shape == (num_nodes, num_classes)
    assert jnp.allclose(out, ref, atol=2e-3, rtol=2e-3), "mismatch vs. pure-JAX reference"
    print("KERNEL_OK")
</pallas_src>

<mosaic_0001>
module attributes {stable_mosaic.version = 11 : i64} {
  func.func @kernel(%arg0: memref<128x128xbf16, #tpu.memory_space<any>>, %arg1: memref<128x128xf32, #tpu.memory_space<vmem>>, %arg2: memref<4x128x128xf32, #tpu.memory_space<vmem>>, %arg3: memref<4x1x128xf32, #tpu.memory_space<vmem>>, %arg4: memref<4x128x128xf32, #tpu.memory_space<vmem>>, %arg5: memref<4x1x128xf32, #tpu.memory_space<vmem>>, %arg6: memref<4x1x128xf32, #tpu.memory_space<vmem>>, %arg7: memref<4x1x128xf32, #tpu.memory_space<vmem>>, %arg8: memref<128x128xf32, #tpu.memory_space<vmem>>, %arg9: memref<1x128xf32, #tpu.memory_space<vmem>>, %arg10: memref<128x128xf32, #tpu.memory_space<vmem>>, %arg11: memref<128x128xf32, #tpu.memory_space<vmem>>, %arg12: memref<128x128xf32, #tpu.memory_space<vmem>>, %arg13: memref<128x128xbf16, #tpu.memory_space<vmem>>, %arg14: memref<2x128x128xbf16, #tpu.memory_space<vmem>>, %arg15: memref<2x!tpu.dma_semaphore, #tpu.memory_space<semaphore_mem>>) attributes {dimension_semantics = [], scalar_prefetch = 0 : i64, scratch_operands = 5 : i64, tpu.core_type = #tpu.core_type<tc>} {
    %0 = tpu.iota {dimensions = array<i32: 0>} : vector<128x1xi32>
    %c16_i32 = arith.constant 16 : i32
    %1 = vector.broadcast %c16_i32 : i32 to vector<128x1xi32>
    %2 = arith.cmpi slt, %0, %1 : vector<128x1xi32>
    %c0 = arith.constant 0 : index
    %c0_0 = arith.constant 0 : index
    %3 = vector.load %arg1[%c0, %c0_0] : memref<128x128xf32, #tpu.memory_space<vmem>>, vector<128x128xf32>
    %c0_1 = arith.constant 0 : index
    %c0_2 = arith.constant 0 : index
    %4 = vector.load %arg11[%c0_1, %c0_2] : memref<128x128xf32, #tpu.memory_space<vmem>>, vector<128x128xf32>
    tpu.vector_store %arg11[%c0_1, %c0_2], %3 {strides = array<i32>} : memref<128x128xf32, #tpu.memory_space<vmem>>, vector<128x128xf32>,
    %c0_3 = arith.constant 0 : index
    %c0_4 = arith.constant 0 : index
    %5 = vector.load %arg11[%c0_3, %c0_4] : memref<128x128xf32, #tpu.memory_space<vmem>>, vector<128x128xf32>
    %6 = arith.truncf %5 : vector<128x128xf32> to vector<128x128xbf16>
    %c0_5 = arith.constant 0 : index
    %c0_6 = arith.constant 0 : index
    %7 = vector.load %arg13[%c0_5, %c0_6] : memref<128x128xbf16, #tpu.memory_space<vmem>>, vector<128x128xbf16>
    tpu.vector_store %arg13[%c0_5, %c0_6], %6 {strides = array<i32>} : memref<128x128xbf16, #tpu.memory_space<vmem>>, vector<128x128xbf16>,
    %c0_7 = arith.constant 0 : index
    %c0_8 = arith.constant 0 : index
    %c0_9 = arith.constant 0 : index
    %8 = vector.load %arg2[%c0_7, %c0_8, %c0_9] : memref<4x128x128xf32, #tpu.memory_space<vmem>>, vector<1x128x128xf32>
    %9 = vector.shape_cast %8 : vector<1x128x128xf32> to vector<128x128xf32>
    %c0_10 = arith.constant 0 : index
    %c0_11 = arith.constant 0 : index
    %c0_12 = arith.constant 0 : index
    %10 = vector.load %arg3[%c0_10, %c0_11, %c0_12] : memref<4x1x128xf32, #tpu.memory_space<vmem>>, vector<1x1x128xf32>
    %11 = vector.shape_cast %10 : vector<1x1x128xf32> to vector<1x128xf32>
    %c0_13 = arith.constant 0 : index
    %c0_14 = arith.constant 0 : index
    %c0_15 = arith.constant 0 : index
    %12 = vector.load %arg4[%c0_13, %c0_14, %c0_15] : memref<4x128x128xf32, #tpu.memory_space<vmem>>, vector<1x128x128xf32>
    %13 = vector.shape_cast %12 : vector<1x128x128xf32> to vector<128x128xf32>
    %c0_16 = arith.constant 0 : index
    %c0_17 = arith.constant 0 : index
    %c0_18 = arith.constant 0 : index
    %14 = vector.load %arg5[%c0_16, %c0_17, %c0_18] : memref<4x1x128xf32, #tpu.memory_space<vmem>>, vector<1x1x128xf32>
    %15 = vector.shape_cast %14 : vector<1x1x128xf32> to vector<1x128xf32>
    %c0_i32 = arith.constant 0 : i32
    %16 = tpu.assume_multiple %c0_i32, 128 : i32
    %c0_i32_19 = arith.constant 0 : i32
    %c0_i32_20 = arith.constant 0 : i32
    %c0_i32_21 = arith.constant 0 : i32
    %17 = tpu.memref_slice %arg0[%16, %c0_i32_21] : memref<128x128xbf16, #tpu.memory_space<any>> -> memref<128x128xbf16, #tpu.memory_space<any>>
    %c0_i32_22 = arith.constant 0 : i32
    %c0_i32_23 = arith.constant 0 : i32
    %18 = tpu.memref_slice %arg14[%c0_i32_19, %c0_i32_22, %c0_i32_23] : memref<2x128x128xbf16, #tpu.memory_space<vmem>> -> memref<1x128x128xbf16, #tpu.memory_space<vmem>>
    %19 = tpu.memref_squeeze %18 : memref<1x128x128xbf16, #tpu.memory_space<vmem>> -> memref<128x128xbf16, #tpu.memory_space<vmem>>
    %20 = tpu.memref_slice %arg15[%c0_i32_20] : memref<2x!tpu.dma_semaphore, #tpu.memory_space<semaphore_mem>> -> memref<1x!tpu.dma_semaphore, #tpu.memory_space<semaphore_mem>>
    %21 = tpu.memref_squeeze %20 : memref<1x!tpu.dma_semaphore, #tpu.memory_space<semaphore_mem>> -> memref<!tpu.dma_semaphore, #tpu.memory_space<semaphore_mem>>
    tpu.enqueue_dma source(%17 : memref<128x128xbf16, #tpu.memory_space<any>>) target(%19 : memref<128x128xbf16, #tpu.memory_space<vmem>>) target_semaphore(%21 : memref<!tpu.dma_semaphore, #tpu.memory_space<semaphore_mem>>)
    %c0_i32_24 = arith.constant 0 : i32
    %c1_i32 = arith.constant 1 : i32
    %22 = arith.andi %c0_i32_24, %c1_i32 : i32
    %c0_i32_25 = arith.constant 0 : i32
    %c0_i32_26 = arith.constant 0 : i32
    %23 = tpu.memref_slice %arg0[%c0_i32_25, %c0_i32_26] : memref<128x128xbf16, #tpu.memory_space<any>> -> memref<128x128xbf16, #tpu.memory_space<any>>
    %c0_i32_27 = arith.constant 0 : i32
    %c0_i32_28 = arith.constant 0 : i32
    %24 = tpu.memref_slice %arg14[%22, %c0_i32_27, %c0_i32_28] : memref<2x128x128xbf16, #tpu.memory_space<vmem>> -> memref<1x128x128xbf16, #tpu.memory_space<vmem>>
    %25 = tpu.memref_squeeze %24 : memref<1x128x128xbf16, #tpu.memory_space<vmem>> -> memref<128x128xbf16, #tpu.memory_space<vmem>>
    %26 = tpu.memref_slice %arg15[%22] : memref<2x!tpu.dma_semaphore, #tpu.memory_space<semaphore_mem>> -> memref<1x!tpu.dma_semaphore, #tpu.memory_space<semaphore_mem>>
    %27 = tpu.memref_squeeze %26 : memref<1x!tpu.dma_semaphore, #tpu.memory_space<semaphore_mem>> -> memref<!tpu.dma_semaphore, #tpu.memory_space<semaphore_mem>>
    tpu.wait_dma2 semaphore(%27 : memref<!tpu.dma_semaphore, #tpu.memory_space<semaphore_mem>>) src(%23 : memref<128x128xbf16, #tpu.memory_space<any>>) dst(%25 : memref<128x128xbf16, #tpu.memory_space<vmem>>)
    %c1_i32_29 = arith.constant 1 : i32
    %28 = arith.addi %c0_i32_24, %c1_i32_29 : i32
    %c1_i32_30 = arith.constant 1 : i32
    %29 = arith.cmpi slt, %28, %c1_i32_30 : i32
    %30 = arith.extui %29 : i1 to i32
    %c0_i32_31 = arith.constant 0 : i32
    %31 = arith.cmpi ne, %30, %c0_i32_31 : i32
    scf.if %31 {
      %c1_i32_249 = arith.constant 1 : i32
      %348 = arith.addi %c0_i32_24, %c1_i32_249 : i32
      %c1_i32_250 = arith.constant 1 : i32
      %349 = arith.addi %c0_i32_24, %c1_i32_250 : i32
      %c1_i32_251 = arith.constant 1 : i32
      %350 = arith.andi %349, %c1_i32_251 : i32
      %c128_i32_252 = arith.constant 128 : i32
      %351 = arith.muli %348, %c128_i32_252 : i32
      %352 = tpu.assume_multiple %351, 128 : i32
      %c0_i32_253 = arith.constant 0 : i32
      %353 = tpu.memref_slice %arg0[%352, %c0_i32_253] : memref<128x128xbf16, #tpu.memory_space<any>> -> memref<128x128xbf16, #tpu.memory_space<any>>
      %c0_i32_254 = arith.constant 0 : i32
      %c0_i32_255 = arith.constant 0 : i32
      %354 = tpu.memref_slice %arg14[%350, %c0_i32_254, %c0_i32_255] : memref<2x128x128xbf16, #tpu.memory_space<vmem>> -> memref<1x128x128xbf16, #tpu.memory_space<vmem>>
      %355 = tpu.memref_squeeze %354 : memref<1x128x128xbf16, #tpu.memory_space<vmem>> -> memref<128x128xbf16, #tpu.memory_space<vmem>>
      %356 = tpu.memref_slice %arg15[%350] : memref<2x!tpu.dma_semaphore, #tpu.memory_space<semaphore_mem>> -> memref<1x!tpu.dma_semaphore, #tpu.memory_space<semaphore_mem>>
      %357 = tpu.memref_squeeze %356 : memref<1x!tpu.dma_semaphore, #tpu.memory_space<semaphore_mem>> -> memref<!tpu.dma_semaphore, #tpu.memory_space<semaphore_mem>>
      tpu.enqueue_dma source(%353 : memref<128x128xbf16, #tpu.memory_space<any>>) target(%355 : memref<128x128xbf16, #tpu.memory_space<vmem>>) target_semaphore(%357 : memref<!tpu.dma_semaphore, #tpu.memory_space<semaphore_mem>>)
    } else {
    }
    %32 = arith.index_cast %22 : i32 to index
    %c0_32 = arith.constant 0 : index
    %c0_33 = arith.constant 0 : index
    %33 = vector.load %arg14[%32, %c0_32, %c0_33] : memref<2x128x128xbf16, #tpu.memory_space<vmem>>, vector<1x128x128xbf16>
    %34 = vector.shape_cast %33 : vector<1x128x128xbf16> to vector<128x128xbf16>
    %c0_34 = arith.constant 0 : index
    %c0_35 = arith.constant 0 : index
    %35 = vector.load %arg13[%c0_34, %c0_35] : memref<128x128xbf16, #tpu.memory_space<vmem>>, vector<128x128xbf16>
    %cst = arith.constant dense<0.000000e+00> : vector<128x128xf32>
    %36 = tpu.matmul %34, %35, %cst {dimension_numbers = #tpu.dot_dimension_numbers<[1], [0], [0], [1], [0, 0, 1, 1], [], []>} : vector<128x128xbf16>, vector<128x128xbf16>, vector<128x128xf32> -> vector<128x128xf32>
    %cst_36 = arith.constant dense<0.000000e+00> : vector<128x128xf32>
    %37 = tpu.matmul %36, %9, %cst_36 {dimension_numbers = #tpu.dot_dimension_numbers<[1], [0], [0], [1], [0, 0, 1, 1], [], []>} : vector<128x128xf32>, vector<128x128xf32>, vector<128x128xf32> -> vector<128x128xf32>
    %38 = vector.broadcast %11 : vector<1x128xf32> to vector<128x128xf32>
    %39 = arith.addf %37, %38 : vector<128x128xf32>
    %cst_37 = arith.constant 0.000000e+00 : f32
    %40 = vector.broadcast %cst_37 : f32 to vector<128x128xf32>
    %41 = arith.maximumf %39, %40 : vector<128x128xf32>
    %cst_38 = arith.constant dense<0.000000e+00> : vector<128x128xf32>
    %42 = tpu.matmul %41, %13, %cst_38 {dimension_numbers = #tpu.dot_dimension_numbers<[1], [0], [0], [1], [0, 0, 1, 1], [], []>} : vector<128x128xf32>, vector<128x128xf32>, vector<128x128xf32> -> vector<128x128xf32>
    %43 = vector.broadcast %15 : vector<1x128xf32> to vector<128x128xf32>
    %44 = arith.addf %42, %43 : vector<128x128xf32>
    %c128_i32 = arith.constant 128 : i32
    %45 = arith.muli %c0_i32_24, %c128_i32 : i32
    %46 = tpu.assume_multiple %45, 128 : i32
    %47 = arith.index_cast %46 : i32 to index
    %c0_39 = arith.constant 0 : index
    %48 = vector.load %arg12[%47, %c0_39] : memref<128x128xf32, #tpu.memory_space<vmem>>, vector<128x128xf32>
    tpu.vector_store %arg12[%47, %c0_39], %44 {strides = array<i32>} : memref<128x128xf32, #tpu.memory_space<vmem>>, vector<128x128xf32>,
    %c1_i32_40 = arith.constant 1 : i32
    %c0_41 = arith.constant 0 : index
    %c0_42 = arith.constant 0 : index
    %49 = vector.load %arg12[%c0_41, %c0_42] : memref<128x128xf32, #tpu.memory_space<vmem>>, vector<128x128xf32>
    %cst_43 = arith.constant 0.000000e+00 : f32
    %50 = vector.shape_cast %2 : vector<128x1xi1> to vector<128x1xi1>
    %51 = vector.broadcast %50 : vector<128x1xi1> to vector<128x128xi1>
    %52 = vector.broadcast %cst_43 : f32 to vector<128x128xf32>
    %53 = arith.select %51, %49, %52 : vector<128x128xi1>, vector<128x128xf32>
    %cst_44 = arith.constant dense<0.000000e+00> : vector<128xf32>
    %54 = vector.multi_reduction <add>, %53, %cst_44 [0] : vector<128x128xf32> to vector<128xf32>
    %55 = vector.shape_cast %54 : vector<128xf32> to vector<1x128xf32>
    %cst_45 = arith.constant 6.250000e-02 : f32
    %56 = vector.broadcast %cst_45 : f32 to vector<1x128xf32>
    %57 = arith.mulf %55, %56 : vector<1x128xf32>
    %58 = vector.broadcast %57 : vector<1x128xf32> to vector<128x128xf32>
    %59 = arith.subf %49, %58 : vector<128x128xf32>
    %60 = arith.mulf %59, %59 : vector<128x128xf32>
    %cst_46 = arith.constant 0.000000e+00 : f32
    %61 = vector.shape_cast %2 : vector<128x1xi1> to vector<128x1xi1>
    %62 = vector.broadcast %61 : vector<128x1xi1> to vector<128x128xi1>
    %63 = vector.broadcast %cst_46 : f32 to vector<128x128xf32>
    %64 = arith.select %62, %60, %63 : vector<128x128xi1>, vector<128x128xf32>
    %cst_47 = arith.constant dense<0.000000e+00> : vector<128xf32>
    %65 = vector.multi_reduction <add>, %64, %cst_47 [0] : vector<128x128xf32> to vector<128xf32>
    %66 = vector.shape_cast %65 : vector<128xf32> to vector<1x128xf32>
    %cst_48 = arith.constant 6.250000e-02 : f32
    %67 = vector.broadcast %cst_48 : f32 to vector<1x128xf32>
    %68 = arith.mulf %66, %67 : vector<1x128xf32>
    %cst_49 = arith.constant 9.99999974E-6 : f32
    %69 = vector.broadcast %cst_49 : f32 to vector<1x128xf32>
    %70 = arith.addf %68, %69 : vector<1x128xf32>
    %71 = math.rsqrt %70 : vector<1x128xf32>
    %72 = vector.broadcast %71 : vector<1x128xf32> to vector<128x128xf32>
    %73 = arith.mulf %59, %72 : vector<128x128xf32>
    %c0_50 = arith.constant 0 : index
    %c0_51 = arith.constant 0 : index
    %c0_52 = arith.constant 0 : index
    %74 = vector.load %arg6[%c0_50, %c0_51, %c0_52] : memref<4x1x128xf32, #tpu.memory_space<vmem>>, vector<1x1x128xf32>
    %75 = vector.shape_cast %74 : vector<1x1x128xf32> to vector<1x128xf32>
    %76 = vector.broadcast %75 : vector<1x128xf32> to vector<128x128xf32>
    %77 = arith.mulf %73, %76 : vector<128x128xf32>
    %c0_53 = arith.constant 0 : index
    %c0_54 = arith.constant 0 : index
    %c0_55 = arith.constant 0 : index
    %78 = vector.load %arg7[%c0_53, %c0_54, %c0_55] : memref<4x1x128xf32, #tpu.memory_space<vmem>>, vector<1x1x128xf32>
    %79 = vector.shape_cast %78 : vector<1x1x128xf32> to vector<1x128xf32>
    %80 = vector.broadcast %79 : vector<1x128xf32> to vector<128x128xf32>
    %81 = arith.addf %77, %80 : vector<128x128xf32>
    %cst_56 = arith.constant 0.000000e+00 : f32
    %82 = vector.broadcast %cst_56 : f32 to vector<128x128xf32>
    %83 = arith.maximumf %81, %82 : vector<128x128xf32>
    %cst_57 = arith.constant 0.000000e+00 : f32
    %84 = vector.shape_cast %2 : vector<128x1xi1> to vector<128x1xi1>
    %85 = vector.broadcast %84 : vector<128x1xi1> to vector<128x128xi1>
    %86 = vector.broadcast %cst_57 : f32 to vector<128x128xf32>
    %87 = arith.select %85, %83, %86 : vector<128x128xi1>, vector<128x128xf32>
    %c0_58 = arith.constant 0 : index
    %c0_59 = arith.constant 0 : index
    %88 = vector.load %arg11[%c0_58, %c0_59] : memref<128x128xf32, #tpu.memory_space<vmem>>, vector<128x128xf32>
    tpu.vector_store %arg11[%c0_58, %c0_59], %87 {strides = array<i32>} : memref<128x128xf32, #tpu.memory_space<vmem>>, vector<128x128xf32>,
    %c0_60 = arith.constant 0 : index
    %c0_61 = arith.constant 0 : index
    %89 = vector.load %arg11[%c0_60, %c0_61] : memref<128x128xf32, #tpu.memory_space<vmem>>, vector<128x128xf32>
    %90 = arith.truncf %89 : vector<128x128xf32> to vector<128x128xbf16>
    %c0_62 = arith.constant 0 : index
    %c0_63 = arith.constant 0 : index
    %91 = vector.load %arg13[%c0_62, %c0_63] : memref<128x128xbf16, #tpu.memory_space<vmem>>, vector<128x128xbf16>
    tpu.vector_store %arg13[%c0_62, %c0_63], %90 {strides = array<i32>} : memref<128x128xbf16, #tpu.memory_space<vmem>>, vector<128x128xbf16>,
    %c1 = arith.constant 1 : index
    %c0_64 = arith.constant 0 : index
    %c0_65 = arith.constant 0 : index
    %92 = vector.load %arg2[%c1, %c0_64, %c0_65] : memref<4x128x128xf32, #tpu.memory_space<vmem>>, vector<1x128x128xf32>
    %93 = vector.shape_cast %92 : vector<1x128x128xf32> to vector<128x128xf32>
    %c1_66 = arith.constant 1 : index
    %c0_67 = arith.constant 0 : index
    %c0_68 = arith.constant 0 : index
    %94 = vector.load %arg3[%c1_66, %c0_67, %c0_68] : memref<4x1x128xf32, #tpu.memory_space<vmem>>, vector<1x1x128xf32>
    %95 = vector.shape_cast %94 : vector<1x1x128xf32> to vector<1x128xf32>
    %c1_69 = arith.constant 1 : index
    %c0_70 = arith.constant 0 : index
    %c0_71 = arith.constant 0 : index
    %96 = vector.load %arg4[%c1_69, %c0_70, %c0_71] : memref<4x128x128xf32, #tpu.memory_space<vmem>>, vector<1x128x128xf32>
    %97 = vector.shape_cast %96 : vector<1x128x128xf32> to vector<128x128xf32>
    %c1_72 = arith.constant 1 : index
    %c0_73 = arith.constant 0 : index
    %c0_74 = arith.constant 0 : index
    %98 = vector.load %arg5[%c1_72, %c0_73, %c0_74] : memref<4x1x128xf32, #tpu.memory_space<vmem>>, vector<1x1x128xf32>
    %99 = vector.shape_cast %98 : vector<1x1x128xf32> to vector<1x128xf32>
    %c0_i32_75 = arith.constant 0 : i32
    %100 = tpu.assume_multiple %c0_i32_75, 128 : i32
    %c0_i32_76 = arith.constant 0 : i32
    %c0_i32_77 = arith.constant 0 : i32
    %c0_i32_78 = arith.constant 0 : i32
    %101 = tpu.memref_slice %arg0[%100, %c0_i32_78] : memref<128x128xbf16, #tpu.memory_space<any>> -> memref<128x128xbf16, #tpu.memory_space<any>>
    %c0_i32_79 = arith.constant 0 : i32
    %c0_i32_80 = arith.constant 0 : i32
    %102 = tpu.memref_slice %arg14[%c0_i32_76, %c0_i32_79, %c0_i32_80] : memref<2x128x128xbf16, #tpu.memory_space<vmem>> -> memref<1x128x128xbf16, #tpu.memory_space<vmem>>
    %103 = tpu.memref_squeeze %102 : memref<1x128x128xbf16, #tpu.memory_space<vmem>> -> memref<128x128xbf16, #tpu.memory_space<vmem>>
    %104 = tpu.memref_slice %arg15[%c0_i32_77] : memref<2x!tpu.dma_semaphore, #tpu.memory_space<semaphore_mem>> -> memref<1x!tpu.dma_semaphore, #tpu.memory_space<semaphore_mem>>
    %105 = tpu.memref_squeeze %104 : memref<1x!tpu.dma_semaphore, #tpu.memory_space<semaphore_mem>> -> memref<!tpu.dma_semaphore, #tpu.memory_space<semaphore_mem>>
    tpu.enqueue_dma source(%101 : memref<128x128xbf16, #tpu.memory_space<any>>) target(%103 : memref<128x128xbf16, #tpu.memory_space<vmem>>) target_semaphore(%105 : memref<!tpu.dma_semaphore, #tpu.memory_space<semaphore_mem>>)
    %c0_i32_81 = arith.constant 0 : i32
    %c1_i32_82 = arith.constant 1 : i32
    %106 = arith.andi %c0_i32_81, %c1_i32_82 : i32
    %c0_i32_83 = arith.constant 0 : i32
    %c0_i32_84 = arith.constant 0 : i32
    %107 = tpu.memref_slice %arg0[%c0_i32_83, %c0_i32_84] : memref<128x128xbf16, #tpu.memory_space<any>> -> memref<128x128xbf16, #tpu.memory_space<any>>
    %c0_i32_85 = arith.constant 0 : i32
    %c0_i32_86 = arith.constant 0 : i32
    %108 = tpu.memref_slice %arg14[%106, %c0_i32_85, %c0_i32_86] : memref<2x128x128xbf16, #tpu.memory_space<vmem>> -> memref<1x128x128xbf16, #tpu.memory_space<vmem>>
    %109 = tpu.memref_squeeze %108 : memref<1x128x128xbf16, #tpu.memory_space<vmem>> -> memref<128x128xbf16, #tpu.memory_space<vmem>>
    %110 = tpu.memref_slice %arg15[%106] : memref<2x!tpu.dma_semaphore, #tpu.memory_space<semaphore_mem>> -> memref<1x!tpu.dma_semaphore, #tpu.memory_space<semaphore_mem>>
    %111 = tpu.memref_squeeze %110 : memref<1x!tpu.dma_semaphore, #tpu.memory_space<semaphore_mem>> -> memref<!tpu.dma_semaphore, #tpu.memory_space<semaphore_mem>>
    tpu.wait_dma2 semaphore(%111 : memref<!tpu.dma_semaphore, #tpu.memory_space<semaphore_mem>>) src(%107 : memref<128x128xbf16, #tpu.memory_space<any>>) dst(%109 : memref<128x128xbf16, #tpu.memory_space<vmem>>)
    %c1_i32_87 = arith.constant 1 : i32
    %112 = arith.addi %c0_i32_81, %c1_i32_87 : i32
    %c1_i32_88 = arith.constant 1 : i32
    %113 = arith.cmpi slt, %112, %c1_i32_88 : i32
    %114 = arith.extui %113 : i1 to i32
    %c0_i32_89 = arith.constant 0 : i32
    %115 = arith.cmpi ne, %114, %c0_i32_89 : i32
    scf.if %115 {
      %c1_i32_249 = arith.constant 1 : i32
      %348 = arith.addi %c0_i32_81, %c1_i32_249 : i32
      %c1_i32_250 = arith.constant 1 : i32
      %349 = arith.addi %c0_i32_81, %c1_i32_250 : i32
      %c1_i32_251 = arith.constant 1 : i32
      %350 = arith.andi %349, %c1_i32_251 : i32
      %c128_i32_252 = arith.constant 128 : i32
      %351 = arith.muli %348, %c128_i32_252 : i32
      %352 = tpu.assume_multiple %351, 128 : i32
      %c0_i32_253 = arith.constant 0 : i32
      %353 = tpu.memref_slice %arg0[%352, %c0_i32_253] : memref<128x128xbf16, #tpu.memory_space<any>> -> memref<128x128xbf16, #tpu.memory_space<any>>
      %c0_i32_254 = arith.constant 0 : i32
      %c0_i32_255 = arith.constant 0 : i32
      %354 = tpu.memref_slice %arg14[%350, %c0_i32_254, %c0_i32_255] : memref<2x128x128xbf16, #tpu.memory_space<vmem>> -> memref<1x128x128xbf16, #tpu.memory_space<vmem>>
      %355 = tpu.memref_squeeze %354 : memref<1x128x128xbf16, #tpu.memory_space<vmem>> -> memref<128x128xbf16, #tpu.memory_space<vmem>>
      %356 = tpu.memref_slice %arg15[%350] : memref<2x!tpu.dma_semaphore, #tpu.memory_space<semaphore_mem>> -> memref<1x!tpu.dma_semaphore, #tpu.memory_space<semaphore_mem>>
      %357 = tpu.memref_squeeze %356 : memref<1x!tpu.dma_semaphore, #tpu.memory_space<semaphore_mem>> -> memref<!tpu.dma_semaphore, #tpu.memory_space<semaphore_mem>>
      tpu.enqueue_dma source(%353 : memref<128x128xbf16, #tpu.memory_space<any>>) target(%355 : memref<128x128xbf16, #tpu.memory_space<vmem>>) target_semaphore(%357 : memref<!tpu.dma_semaphore, #tpu.memory_space<semaphore_mem>>)
    } else {
    }
    %116 = arith.index_cast %106 : i32 to index
    %c0_90 = arith.constant 0 : index
    %c0_91 = arith.constant 0 : index
    %117 = vector.load %arg14[%116, %c0_90, %c0_91] : memref<2x128x128xbf16, #tpu.memory_space<vmem>>, vector<1x128x128xbf16>
    %118 = vector.shape_cast %117 : vector<1x128x128xbf16> to vector<128x128xbf16>
    %c0_92 = arith.constant 0 : index
    %c0_93 = arith.constant 0 : index
    %119 = vector.load %arg13[%c0_92, %c0_93] : memref<128x128xbf16, #tpu.memory_space<vmem>>, vector<128x128xbf16>
    %cst_94 = arith.constant dense<0.000000e+00> : vector<128x128xf32>
    %120 = tpu.matmul %118, %119, %cst_94 {dimension_numbers = #tpu.dot_dimension_numbers<[1], [0], [0], [1], [0, 0, 1, 1], [], []>} : vector<128x128xbf16>, vector<128x128xbf16>, vector<128x128xf32> -> vector<128x128xf32>
    %cst_95 = arith.constant dense<0.000000e+00> : vector<128x128xf32>
    %121 = tpu.matmul %120, %93, %cst_95 {dimension_numbers = #tpu.dot_dimension_numbers<[1], [0], [0], [1], [0, 0, 1, 1], [], []>} : vector<128x128xf32>, vector<128x128xf32>, vector<128x128xf32> -> vector<128x128xf32>
    %122 = vector.broadcast %95 : vector<1x128xf32> to vector<128x128xf32>
    %123 = arith.addf %121, %122 : vector<128x128xf32>
    %cst_96 = arith.constant 0.000000e+00 : f32
    %124 = vector.broadcast %cst_96 : f32 to vector<128x128xf32>
    %125 = arith.maximumf %123, %124 : vector<128x128xf32>
    %cst_97 = arith.constant dense<0.000000e+00> : vector<128x128xf32>
    %126 = tpu.matmul %125, %97, %cst_97 {dimension_numbers = #tpu.dot_dimension_numbers<[1], [0], [0], [1], [0, 0, 1, 1], [], []>} : vector<128x128xf32>, vector<128x128xf32>, vector<128x128xf32> -> vector<128x128xf32>
    %127 = vector.broadcast %99 : vector<1x128xf32> to vector<128x128xf32>
    %128 = arith.addf %126, %127 : vector<128x128xf32>
    %c128_i32_98 = arith.constant 128 : i32
    %129 = arith.muli %c0_i32_81, %c128_i32_98 : i32
    %130 = tpu.assume_multiple %129, 128 : i32
    %131 = arith.index_cast %130 : i32 to index
    %c0_99 = arith.constant 0 : index
    %132 = vector.load %arg12[%131, %c0_99] : memref<128x128xf32, #tpu.memory_space<vmem>>, vector<128x128xf32>
    tpu.vector_store %arg12[%131, %c0_99], %128 {strides = array<i32>} : memref<128x128xf32, #tpu.memory_space<vmem>>, vector<128x128xf32>,
    %c1_i32_100 = arith.constant 1 : i32
    %c0_101 = arith.constant 0 : index
    %c0_102 = arith.constant 0 : index
    %133 = vector.load %arg12[%c0_101, %c0_102] : memref<128x128xf32, #tpu.memory_space<vmem>>, vector<128x128xf32>
    %cst_103 = arith.constant 0.000000e+00 : f32
    %134 = vector.shape_cast %2 : vector<128x1xi1> to vector<128x1xi1>
    %135 = vector.broadcast %134 : vector<128x1xi1> to vector<128x128xi1>
    %136 = vector.broadcast %cst_103 : f32 to vector<128x128xf32>
    %137 = arith.select %135, %133, %136 : vector<128x128xi1>, vector<128x128xf32>
    %cst_104 = arith.constant dense<0.000000e+00> : vector<128xf32>
    %138 = vector.multi_reduction <add>, %137, %cst_104 [0] : vector<128x128xf32> to vector<128xf32>
    %139 = vector.shape_cast %138 : vector<128xf32> to vector<1x128xf32>
    %cst_105 = arith.constant 6.250000e-02 : f32
    %140 = vector.broadcast %cst_105 : f32 to vector<1x128xf32>
    %141 = arith.mulf %139, %140 : vector<1x128xf32>
    %142 = vector.broadcast %141 : vector<1x128xf32> to vector<128x128xf32>
    %143 = arith.subf %133, %142 : vector<128x128xf32>
    %144 = arith.mulf %143, %143 : vector<128x128xf32>
    %cst_106 = arith.constant 0.000000e+00 : f32
    %145 = vector.shape_cast %2 : vector<128x1xi1> to vector<128x1xi1>
    %146 = vector.broadcast %145 : vector<128x1xi1> to vector<128x128xi1>
    %147 = vector.broadcast %cst_106 : f32 to vector<128x128xf32>
    %148 = arith.select %146, %144, %147 : vector<128x128xi1>, vector<128x128xf32>
    %cst_107 = arith.constant dense<0.000000e+00> : vector<128xf32>
    %149 = vector.multi_reduction <add>, %148, %cst_107 [0] : vector<128x128xf32> to vector<128xf32>
    %150 = vector.shape_cast %149 : vector<128xf32> to vector<1x128xf32>
    %cst_108 = arith.constant 6.250000e-02 : f32
    %151 = vector.broadcast %cst_108 : f32 to vector<1x128xf32>
    %152 = arith.mulf %150, %151 : vector<1x128xf32>
    %cst_109 = arith.constant 9.99999974E-6 : f32
    %153 = vector.broadcast %cst_109 : f32 to vector<1x128xf32>
    %154 = arith.addf %152, %153 : vector<1x128xf32>
    %155 = math.rsqrt %154 : vector<1x128xf32>
    %156 = vector.broadcast %155 : vector<1x128xf32> to vector<128x128xf32>
    %157 = arith.mulf %143, %156 : vector<128x128xf32>
    %c1_110 = arith.constant 1 : index
    %c0_111 = arith.constant 0 : index
    %c0_112 = arith.constant 0 : index
    %158 = vector.load %arg6[%c1_110, %c0_111, %c0_112] : memref<4x1x128xf32, #tpu.memory_space<vmem>>, vector<1x1x128xf32>
    %159 = vector.shape_cast %158 : vector<1x1x128xf32> to vector<1x128xf32>
    %160 = vector.broadcast %159 : vector<1x128xf32> to vector<128x128xf32>
    %161 = arith.mulf %157, %160 : vector<128x128xf32>
    %c1_113 = arith.constant 1 : index
    %c0_114 = arith.constant 0 : index
    %c0_115 = arith.constant 0 : index
    %162 = vector.load %arg7[%c1_113, %c0_114, %c0_115] : memref<4x1x128xf32, #tpu.memory_space<vmem>>, vector<1x1x128xf32>
    %163 = vector.shape_cast %162 : vector<1x1x128xf32> to vector<1x128xf32>
    %164 = vector.broadcast %163 : vector<1x128xf32> to vector<128x128xf32>
    %165 = arith.addf %161, %164 : vector<128x128xf32>
    %cst_116 = arith.constant 0.000000e+00 : f32
    %166 = vector.broadcast %cst_116 : f32 to vector<128x128xf32>
    %167 = arith.maximumf %165, %166 : vector<128x128xf32>
    %cst_117 = arith.constant 0.000000e+00 : f32
    %168 = vector.shape_cast %2 : vector<128x1xi1> to vector<128x1xi1>
    %169 = vector.broadcast %168 : vector<128x1xi1> to vector<128x128xi1>
    %170 = vector.broadcast %cst_117 : f32 to vector<128x128xf32>
    %171 = arith.select %169, %167, %170 : vector<128x128xi1>, vector<128x128xf32>
    %c0_118 = arith.constant 0 : index
    %c0_119 = arith.constant 0 : index
    %172 = vector.load %arg11[%c0_118, %c0_119] : memref<128x128xf32, #tpu.memory_space<vmem>>, vector<128x128xf32>
    tpu.vector_store %arg11[%c0_118, %c0_119], %171 {strides = array<i32>} : memref<128x128xf32, #tpu.memory_space<vmem>>, vector<128x128xf32>,
    %c0_120 = arith.constant 0 : index
    %c0_121 = arith.constant 0 : index
    %173 = vector.load %arg11[%c0_120, %c0_121] : memref<128x128xf32, #tpu.memory_space<vmem>>, vector<128x128xf32>
    %174 = arith.truncf %173 : vector<128x128xf32> to vector<128x128xbf16>
    %c0_122 = arith.constant 0 : index
    %c0_123 = arith.constant 0 : index
    %175 = vector.load %arg13[%c0_122, %c0_123] : memref<128x128xbf16, #tpu.memory_space<vmem>>, vector<128x128xbf16>
    tpu.vector_store %arg13[%c0_122, %c0_123], %174 {strides = array<i32>} : memref<128x128xbf16, #tpu.memory_space<vmem>>, vector<128x128xbf16>,
    %c2 = arith.constant 2 : index
    %c0_124 = arith.constant 0 : index
    %c0_125 = arith.constant 0 : index
    %176 = vector.load %arg2[%c2, %c0_124, %c0_125] : memref<4x128x128xf32, #tpu.memory_space<vmem>>, vector<1x128x128xf32>
    %177 = vector.shape_cast %176 : vector<1x128x128xf32> to vector<128x128xf32>
    %c2_126 = arith.constant 2 : index
    %c0_127 = arith.constant 0 : index
    %c0_128 = arith.constant 0 : index
    %178 = vector.load %arg3[%c2_126, %c0_127, %c0_128] : memref<4x1x128xf32, #tpu.memory_space<vmem>>, vector<1x1x128xf32>
    %179 = vector.shape_cast %178 : vector<1x1x128xf32> to vector<1x128xf32>
    %c2_129 = arith.constant 2 : index
    %c0_130 = arith.constant 0 : index
    %c0_131 = arith.constant 0 : index
    %180 = vector.load %arg4[%c2_129, %c0_130, %c0_131] : memref<4x128x128xf32, #tpu.memory_space<vmem>>, vector<1x128x128xf32>
    %181 = vector.shape_cast %180 : vector<1x128x128xf32> to vector<128x128xf32>
    %c2_132 = arith.constant 2 : index
    %c0_133 = arith.constant 0 : index
    %c0_134 = arith.constant 0 : index
    %182 = vector.load %arg5[%c2_132, %c0_133, %c0_134] : memref<4x1x128xf32, #tpu.memory_space<vmem>>, vector<1x1x128xf32>
    %183 = vector.shape_cast %182 : vector<1x1x128xf32> to vector<1x128xf32>
    %c0_i32_135 = arith.constant 0 : i32
    %184 = tpu.assume_multiple %c0_i32_135, 128 : i32
    %c0_i32_136 = arith.constant 0 : i32
    %c0_i32_137 = arith.constant 0 : i32
    %c0_i32_138 = arith.constant 0 : i32
    %185 = tpu.memref_slice %arg0[%184, %c0_i32_138] : memref<128x128xbf16, #tpu.memory_space<any>> -> memref<128x128xbf16, #tpu.memory_space<any>>
    %c0_i32_139 = arith.constant 0 : i32
    %c0_i32_140 = arith.constant 0 : i32
    %186 = tpu.memref_slice %arg14[%c0_i32_136, %c0_i32_139, %c0_i32_140] : memref<2x128x128xbf16, #tpu.memory_space<vmem>> -> memref<1x128x128xbf16, #tpu.memory_space<vmem>>
    %187 = tpu.memref_squeeze %186 : memref<1x128x128xbf16, #tpu.memory_space<vmem>> -> memref<128x128xbf16, #tpu.memory_space<vmem>>
    %188 = tpu.memref_slice %arg15[%c0_i32_137] : memref<2x!tpu.dma_semaphore, #tpu.memory_space<semaphore_mem>> -> memref<1x!tpu.dma_semaphore, #tpu.memory_space<semaphore_mem>>
    %189 = tpu.memref_squeeze %188 : memref<1x!tpu.dma_semaphore, #tpu.memory_space<semaphore_mem>> -> memref<!tpu.dma_semaphore, #tpu.memory_space<semaphore_mem>>
    tpu.enqueue_dma source(%185 : memref<128x128xbf16, #tpu.memory_space<any>>) target(%187 : memref<128x128xbf16, #tpu.memory_space<vmem>>) target_semaphore(%189 : memref<!tpu.dma_semaphore, #tpu.memory_space<semaphore_mem>>)
    %c0_i32_141 = arith.constant 0 : i32
    %c1_i32_142 = arith.constant 1 : i32
    %190 = arith.andi %c0_i32_141, %c1_i32_142 : i32
    %c0_i32_143 = arith.constant 0 : i32
    %c0_i32_144 = arith.constant 0 : i32
    %191 = tpu.memref_slice %arg0[%c0_i32_143, %c0_i32_144] : memref<128x128xbf16, #tpu.memory_space<any>> -> memref<128x128xbf16, #tpu.memory_space<any>>
    %c0_i32_145 = arith.constant 0 : i32
    %c0_i32_146 = arith.constant 0 : i32
    %192 = tpu.memref_slice %arg14[%190, %c0_i32_145, %c0_i32_146] : memref<2x128x128xbf16, #tpu.memory_space<vmem>> -> memref<1x128x128xbf16, #tpu.memory_space<vmem>>
    %193 = tpu.memref_squeeze %192 : memref<1x128x128xbf16, #tpu.memory_space<vmem>> -> memref<128x128xbf16, #tpu.memory_space<vmem>>
    %194 = tpu.memref_slice %arg15[%190] : memref<2x!tpu.dma_semaphore, #tpu.memory_space<semaphore_mem>> -> memref<1x!tpu.dma_semaphore, #tpu.memory_space<semaphore_mem>>
    %195 = tpu.memref_squeeze %194 : memref<1x!tpu.dma_semaphore, #tpu.memory_space<semaphore_mem>> -> memref<!tpu.dma_semaphore, #tpu.memory_space<semaphore_mem>>
    tpu.wait_dma2 semaphore(%195 : memref<!tpu.dma_semaphore, #tpu.memory_space<semaphore_mem>>) src(%191 : memref<128x128xbf16, #tpu.memory_space<any>>) dst(%193 : memref<128x128xbf16, #tpu.memory_space<vmem>>)
    %c1_i32_147 = arith.constant 1 : i32
    %196 = arith.addi %c0_i32_141, %c1_i32_147 : i32
    %c1_i32_148 = arith.constant 1 : i32
    %197 = arith.cmpi slt, %196, %c1_i32_148 : i32
    %198 = arith.extui %197 : i1 to i32
    %c0_i32_149 = arith.constant 0 : i32
    %199 = arith.cmpi ne, %198, %c0_i32_149 : i32
    scf.if %199 {
      %c1_i32_249 = arith.constant 1 : i32
      %348 = arith.addi %c0_i32_141, %c1_i32_249 : i32
      %c1_i32_250 = arith.constant 1 : i32
      %349 = arith.addi %c0_i32_141, %c1_i32_250 : i32
      %c1_i32_251 = arith.constant 1 : i32
      %350 = arith.andi %349, %c1_i32_251 : i32
      %c128_i32_252 = arith.constant 128 : i32
      %351 = arith.muli %348, %c128_i32_252 : i32
      %352 = tpu.assume_multiple %351, 128 : i32
      %c0_i32_253 = arith.constant 0 : i32
      %353 = tpu.memref_slice %arg0[%352, %c0_i32_253] : memref<128x128xbf16, #tpu.memory_space<any>> -> memref<128x128xbf16, #tpu.memory_space<any>>
      %c0_i32_254 = arith.constant 0 : i32
      %c0_i32_255 = arith.constant 0 : i32
      %354 = tpu.memref_slice %arg14[%350, %c0_i32_254, %c0_i32_255] : memref<2x128x128xbf16, #tpu.memory_space<vmem>> -> memref<1x128x128xbf16, #tpu.memory_space<vmem>>
      %355 = tpu.memref_squeeze %354 : memref<1x128x128xbf16, #tpu.memory_space<vmem>> -> memref<128x128xbf16, #tpu.memory_space<vmem>>
      %356 = tpu.memref_slice %arg15[%350] : memref<2x!tpu.dma_semaphore, #tpu.memory_space<semaphore_mem>> -> memref<1x!tpu.dma_semaphore, #tpu.memory_space<semaphore_mem>>
      %357 = tpu.memref_squeeze %356 : memref<1x!tpu.dma_semaphore, #tpu.memory_space<semaphore_mem>> -> memref<!tpu.dma_semaphore, #tpu.memory_space<semaphore_mem>>
      tpu.enqueue_dma source(%353 : memref<128x128xbf16, #tpu.memory_space<any>>) target(%355 : memref<128x128xbf16, #tpu.memory_space<vmem>>) target_semaphore(%357 : memref<!tpu.dma_semaphore, #tpu.memory_space<semaphore_mem>>)
    } else {
    }
    %200 = arith.index_cast %190 : i32 to index
    %c0_150 = arith.constant 0 : index
    %c0_151 = arith.constant 0 : index
    %201 = vector.load %arg14[%200, %c0_150, %c0_151] : memref<2x128x128xbf16, #tpu.memory_space<vmem>>, vector<1x128x128xbf16>
    %202 = vector.shape_cast %201 : vector<1x128x128xbf16> to vector<128x128xbf16>
    %c0_152 = arith.constant 0 : index
    %c0_153 = arith.constant 0 : index
    %203 = vector.load %arg13[%c0_152, %c0_153] : memref<128x128xbf16, #tpu.memory_space<vmem>>, vector<128x128xbf16>
    %cst_154 = arith.constant dense<0.000000e+00> : vector<128x128xf32>
    %204 = tpu.matmul %202, %203, %cst_154 {dimension_numbers = #tpu.dot_dimension_numbers<[1], [0], [0], [1], [0, 0, 1, 1], [], []>} : vector<128x128xbf16>, vector<128x128xbf16>, vector<128x128xf32> -> vector<128x128xf32>
    %cst_155 = arith.constant dense<0.000000e+00> : vector<128x128xf32>
    %205 = tpu.matmul %204, %177, %cst_155 {dimension_numbers = #tpu.dot_dimension_numbers<[1], [0], [0], [1], [0, 0, 1, 1], [], []>} : vector<128x128xf32>, vector<128x128xf32>, vector<128x128xf32> -> vector<128x128xf32>
    %206 = vector.broadcast %179 : vector<1x128xf32> to vector<128x128xf32>
    %207 = arith.addf %205, %206 : vector<128x128xf32>
    %cst_156 = arith.constant 0.000000e+00 : f32
    %208 = vector.broadcast %cst_156 : f32 to vector<128x128xf32>
    %209 = arith.maximumf %207, %208 : vector<128x128xf32>
    %cst_157 = arith.constant dense<0.000000e+00> : vector<128x128xf32>
    %210 = tpu.matmul %209, %181, %cst_157 {dimension_numbers = #tpu.dot_dimension_numbers<[1], [0], [0], [1], [0, 0, 1, 1], [], []>} : vector<128x128xf32>, vector<128x128xf32>, vector<128x128xf32> -> vector<128x128xf32>
    %211 = vector.broadcast %183 : vector<1x128xf32> to vector<128x128xf32>
    %212 = arith.addf %210, %211 : vector<128x128xf32>
    %c128_i32_158 = arith.constant 128 : i32
    %213 = arith.muli %c0_i32_141, %c128_i32_158 : i32
    %214 = tpu.assume_multiple %213, 128 : i32
    %215 = arith.index_cast %214 : i32 to index
    %c0_159 = arith.constant 0 : index
    %216 = vector.load %arg12[%215, %c0_159] : memref<128x128xf32, #tpu.memory_space<vmem>>, vector<128x128xf32>
    tpu.vector_store %arg12[%215, %c0_159], %212 {strides = array<i32>} : memref<128x128xf32, #tpu.memory_space<vmem>>, vector<128x128xf32>,
    %c1_i32_160 = arith.constant 1 : i32
    %c0_161 = arith.constant 0 : index
    %c0_162 = arith.constant 0 : index
    %217 = vector.load %arg12[%c0_161, %c0_162] : memref<128x128xf32, #tpu.memory_space<vmem>>, vector<128x128xf32>
    %cst_163 = arith.constant 0.000000e+00 : f32
    %218 = vector.shape_cast %2 : vector<128x1xi1> to vector<128x1xi1>
    %219 = vector.broadcast %218 : vector<128x1xi1> to vector<128x128xi1>
    %220 = vector.broadcast %cst_163 : f32 to vector<128x128xf32>
    %221 = arith.select %219, %217, %220 : vector<128x128xi1>, vector<128x128xf32>
    %cst_164 = arith.constant dense<0.000000e+00> : vector<128xf32>
    %222 = vector.multi_reduction <add>, %221, %cst_164 [0] : vector<128x128xf32> to vector<128xf32>
    %223 = vector.shape_cast %222 : vector<128xf32> to vector<1x128xf32>
    %cst_165 = arith.constant 6.250000e-02 : f32
    %224 = vector.broadcast %cst_165 : f32 to vector<1x128xf32>
    %225 = arith.mulf %223, %224 : vector<1x128xf32>
    %226 = vector.broadcast %225 : vector<1x128xf32> to vector<128x128xf32>
    %227 = arith.subf %217, %226 : vector<128x128xf32>
    %228 = arith.mulf %227, %227 : vector<128x128xf32>
    %cst_166 = arith.constant 0.000000e+00 : f32
    %229 = vector.shape_cast %2 : vector<128x1xi1> to vector<128x1xi1>
    %230 = vector.broadcast %229 : vector<128x1xi1> to vector<128x128xi1>
    %231 = vector.broadcast %cst_166 : f32 to vector<128x128xf32>
    %232 = arith.select %230, %228, %231 : vector<128x128xi1>, vector<128x128xf32>
    %cst_167 = arith.constant dense<0.000000e+00> : vector<128xf32>
    %233 = vector.multi_reduction <add>, %232, %cst_167 [0] : vector<128x128xf32> to vector<128xf32>
    %234 = vector.shape_cast %233 : vector<128xf32> to vector<1x128xf32>
    %cst_168 = arith.constant 6.250000e-02 : f32
    %235 = vector.broadcast %cst_168 : f32 to vector<1x128xf32>
    %236 = arith.mulf %234, %235 : vector<1x128xf32>
    %cst_169 = arith.constant 9.99999974E-6 : f32
    %237 = vector.broadcast %cst_169 : f32 to vector<1x128xf32>
    %238 = arith.addf %236, %237 : vector<1x128xf32>
    %239 = math.rsqrt %238 : vector<1x128xf32>
    %240 = vector.broadcast %239 : vector<1x128xf32> to vector<128x128xf32>
    %241 = arith.mulf %227, %240 : vector<128x128xf32>
    %c2_170 = arith.constant 2 : index
    %c0_171 = arith.constant 0 : index
    %c0_172 = arith.constant 0 : index
    %242 = vector.load %arg6[%c2_170, %c0_171, %c0_172] : memref<4x1x128xf32, #tpu.memory_space<vmem>>, vector<1x1x128xf32>
    %243 = vector.shape_cast %242 : vector<1x1x128xf32> to vector<1x128xf32>
    %244 = vector.broadcast %243 : vector<1x128xf32> to vector<128x128xf32>
    %245 = arith.mulf %241, %244 : vector<128x128xf32>
    %c2_173 = arith.constant 2 : index
    %c0_174 = arith.constant 0 : index
    %c0_175 = arith.constant 0 : index
    %246 = vector.load %arg7[%c2_173, %c0_174, %c0_175] : memref<4x1x128xf32, #tpu.memory_space<vmem>>, vector<1x1x128xf32>
    %247 = vector.shape_cast %246 : vector<1x1x128xf32> to vector<1x128xf32>
    %248 = vector.broadcast %247 : vector<1x128xf32> to vector<128x128xf32>
    %249 = arith.addf %245, %248 : vector<128x128xf32>
    %cst_176 = arith.constant 0.000000e+00 : f32
    %250 = vector.broadcast %cst_176 : f32 to vector<128x128xf32>
    %251 = arith.maximumf %249, %250 : vector<128x128xf32>
    %cst_177 = arith.constant 0.000000e+00 : f32
    %252 = vector.shape_cast %2 : vector<128x1xi1> to vector<128x1xi1>
    %253 = vector.broadcast %252 : vector<128x1xi1> to vector<128x128xi1>
    %254 = vector.broadcast %cst_177 : f32 to vector<128x128xf32>
    %255 = arith.select %253, %251, %254 : vector<128x128xi1>, vector<128x128xf32>
    %c0_178 = arith.constant 0 : index
    %c0_179 = arith.constant 0 : index
    %256 = vector.load %arg11[%c0_178, %c0_179] : memref<128x128xf32, #tpu.memory_space<vmem>>, vector<128x128xf32>
    tpu.vector_store %arg11[%c0_178, %c0_179], %255 {strides = array<i32>} : memref<128x128xf32, #tpu.memory_space<vmem>>, vector<128x128xf32>,
    %c0_180 = arith.constant 0 : index
    %c0_181 = arith.constant 0 : index
    %257 = vector.load %arg11[%c0_180, %c0_181] : memref<128x128xf32, #tpu.memory_space<vmem>>, vector<128x128xf32>
    %258 = arith.truncf %257 : vector<128x128xf32> to vector<128x128xbf16>
    %c0_182 = arith.constant 0 : index
    %c0_183 = arith.constant 0 : index
    %259 = vector.load %arg13[%c0_182, %c0_183] : memref<128x128xbf16, #tpu.memory_space<vmem>>, vector<128x128xbf16>
    tpu.vector_store %arg13[%c0_182, %c0_183], %258 {strides = array<i32>} : memref<128x128xbf16, #tpu.memory_space<vmem>>, vector<128x128xbf16>,
    %c3 = arith.constant 3 : index
    %c0_184 = arith.constant 0 : index
    %c0_185 = arith.constant 0 : index
    %260 = vector.load %arg2[%c3, %c0_184, %c0_185] : memref<4x128x128xf32, #tpu.memory_space<vmem>>, vector<1x128x128xf32>
    %261 = vector.shape_cast %260 : vector<1x128x128xf32> to vector<128x128xf32>
    %c3_186 = arith.constant 3 : index
    %c0_187 = arith.constant 0 : index
    %c0_188 = arith.constant 0 : index
    %262 = vector.load %arg3[%c3_186, %c0_187, %c0_188] : memref<4x1x128xf32, #tpu.memory_space<vmem>>, vector<1x1x128xf32>
    %263 = vector.shape_cast %262 : vector<1x1x128xf32> to vector<1x128xf32>
    %c3_189 = arith.constant 3 : index
    %c0_190 = arith.constant 0 : index
    %c0_191 = arith.constant 0 : index
    %264 = vector.load %arg4[%c3_189, %c0_190, %c0_191] : memref<4x128x128xf32, #tpu.memory_space<vmem>>, vector<1x128x128xf32>
    %265 = vector.shape_cast %264 : vector<1x128x128xf32> to vector<128x128xf32>
    %c3_192 = arith.constant 3 : index
    %c0_193 = arith.constant 0 : index
    %c0_194 = arith.constant 0 : index
    %266 = vector.load %arg5[%c3_192, %c0_193, %c0_194] : memref<4x1x128xf32, #tpu.memory_space<vmem>>, vector<1x1x128xf32>
    %267 = vector.shape_cast %266 : vector<1x1x128xf32> to vector<1x128xf32>
    %c0_i32_195 = arith.constant 0 : i32
    %268 = tpu.assume_multiple %c0_i32_195, 128 : i32
    %c0_i32_196 = arith.constant 0 : i32
    %c0_i32_197 = arith.constant 0 : i32
    %c0_i32_198 = arith.constant 0 : i32
    %269 = tpu.memref_slice %arg0[%268, %c0_i32_198] : memref<128x128xbf16, #tpu.memory_space<any>> -> memref<128x128xbf16, #tpu.memory_space<any>>
    %c0_i32_199 = arith.constant 0 : i32
    %c0_i32_200 = arith.constant 0 : i32
    %270 = tpu.memref_slice %arg14[%c0_i32_196, %c0_i32_199, %c0_i32_200] : memref<2x128x128xbf16, #tpu.memory_space<vmem>> -> memref<1x128x128xbf16, #tpu.memory_space<vmem>>
    %271 = tpu.memref_squeeze %270 : memref<1x128x128xbf16, #tpu.memory_space<vmem>> -> memref<128x128xbf16, #tpu.memory_space<vmem>>
    %272 = tpu.memref_slice %arg15[%c0_i32_197] : memref<2x!tpu.dma_semaphore, #tpu.memory_space<semaphore_mem>> -> memref<1x!tpu.dma_semaphore, #tpu.memory_space<semaphore_mem>>
    %273 = tpu.memref_squeeze %272 : memref<1x!tpu.dma_semaphore, #tpu.memory_space<semaphore_mem>> -> memref<!tpu.dma_semaphore, #tpu.memory_space<semaphore_mem>>
    tpu.enqueue_dma source(%269 : memref<128x128xbf16, #tpu.memory_space<any>>) target(%271 : memref<128x128xbf16, #tpu.memory_space<vmem>>) target_semaphore(%273 : memref<!tpu.dma_semaphore, #tpu.memory_space<semaphore_mem>>)
    %c0_i32_201 = arith.constant 0 : i32
    %c1_i32_202 = arith.constant 1 : i32
    %274 = arith.andi %c0_i32_201, %c1_i32_202 : i32
    %c0_i32_203 = arith.constant 0 : i32
    %c0_i32_204 = arith.constant 0 : i32
    %275 = tpu.memref_slice %arg0[%c0_i32_203, %c0_i32_204] : memref<128x128xbf16, #tpu.memory_space<any>> -> memref<128x128xbf16, #tpu.memory_space<any>>
    %c0_i32_205 = arith.constant 0 : i32
    %c0_i32_206 = arith.constant 0 : i32
    %276 = tpu.memref_slice %arg14[%274, %c0_i32_205, %c0_i32_206] : memref<2x128x128xbf16, #tpu.memory_space<vmem>> -> memref<1x128x128xbf16, #tpu.memory_space<vmem>>
    %277 = tpu.memref_squeeze %276 : memref<1x128x128xbf16, #tpu.memory_space<vmem>> -> memref<128x128xbf16, #tpu.memory_space<vmem>>
    %278 = tpu.memref_slice %arg15[%274] : memref<2x!tpu.dma_semaphore, #tpu.memory_space<semaphore_mem>> -> memref<1x!tpu.dma_semaphore, #tpu.memory_space<semaphore_mem>>
    %279 = tpu.memref_squeeze %278 : memref<1x!tpu.dma_semaphore, #tpu.memory_space<semaphore_mem>> -> memref<!tpu.dma_semaphore, #tpu.memory_space<semaphore_mem>>
    tpu.wait_dma2 semaphore(%279 : memref<!tpu.dma_semaphore, #tpu.memory_space<semaphore_mem>>) src(%275 : memref<128x128xbf16, #tpu.memory_space<any>>) dst(%277 : memref<128x128xbf16, #tpu.memory_space<vmem>>)
    %c1_i32_207 = arith.constant 1 : i32
    %280 = arith.addi %c0_i32_201, %c1_i32_207 : i32
    %c1_i32_208 = arith.constant 1 : i32
    %281 = arith.cmpi slt, %280, %c1_i32_208 : i32
    %282 = arith.extui %281 : i1 to i32
    %c0_i32_209 = arith.constant 0 : i32
    %283 = arith.cmpi ne, %282, %c0_i32_209 : i32
    scf.if %283 {
      %c1_i32_249 = arith.constant 1 : i32
      %348 = arith.addi %c0_i32_201, %c1_i32_249 : i32
      %c1_i32_250 = arith.constant 1 : i32
      %349 = arith.addi %c0_i32_201, %c1_i32_250 : i32
      %c1_i32_251 = arith.constant 1 : i32
      %350 = arith.andi %349, %c1_i32_251 : i32
      %c128_i32_252 = arith.constant 128 : i32
      %351 = arith.muli %348, %c128_i32_252 : i32
      %352 = tpu.assume_multiple %351, 128 : i32
      %c0_i32_253 = arith.constant 0 : i32
      %353 = tpu.memref_slice %arg0[%352, %c0_i32_253] : memref<128x128xbf16, #tpu.memory_space<any>> -> memref<128x128xbf16, #tpu.memory_space<any>>
      %c0_i32_254 = arith.constant 0 : i32
      %c0_i32_255 = arith.constant 0 : i32
      %354 = tpu.memref_slice %arg14[%350, %c0_i32_254, %c0_i32_255] : memref<2x128x128xbf16, #tpu.memory_space<vmem>> -> memref<1x128x128xbf16, #tpu.memory_space<vmem>>
      %355 = tpu.memref_squeeze %354 : memref<1x128x128xbf16, #tpu.memory_space<vmem>> -> memref<128x128xbf16, #tpu.memory_space<vmem>>
      %356 = tpu.memref_slice %arg15[%350] : memref<2x!tpu.dma_semaphore, #tpu.memory_space<semaphore_mem>> -> memref<1x!tpu.dma_semaphore, #tpu.memory_space<semaphore_mem>>
      %357 = tpu.memref_squeeze %356 : memref<1x!tpu.dma_semaphore, #tpu.memory_space<semaphore_mem>> -> memref<!tpu.dma_semaphore, #tpu.memory_space<semaphore_mem>>
      tpu.enqueue_dma source(%353 : memref<128x128xbf16, #tpu.memory_space<any>>) target(%355 : memref<128x128xbf16, #tpu.memory_space<vmem>>) target_semaphore(%357 : memref<!tpu.dma_semaphore, #tpu.memory_space<semaphore_mem>>)
    } else {
    }
    %284 = arith.index_cast %274 : i32 to index
    %c0_210 = arith.constant 0 : index
    %c0_211 = arith.constant 0 : index
    %285 = vector.load %arg14[%284, %c0_210, %c0_211] : memref<2x128x128xbf16, #tpu.memory_space<vmem>>, vector<1x128x128xbf16>
    %286 = vector.shape_cast %285 : vector<1x128x128xbf16> to vector<128x128xbf16>
    %c0_212 = arith.constant 0 : index
    %c0_213 = arith.constant 0 : index
    %287 = vector.load %arg13[%c0_212, %c0_213] : memref<128x128xbf16, #tpu.memory_space<vmem>>, vector<128x128xbf16>
    %cst_214 = arith.constant dense<0.000000e+00> : vector<128x128xf32>
    %288 = tpu.matmul %286, %287, %cst_214 {dimension_numbers = #tpu.dot_dimension_numbers<[1], [0], [0], [1], [0, 0, 1, 1], [], []>} : vector<128x128xbf16>, vector<128x128xbf16>, vector<128x128xf32> -> vector<128x128xf32>
    %cst_215 = arith.constant dense<0.000000e+00> : vector<128x128xf32>
    %289 = tpu.matmul %288, %261, %cst_215 {dimension_numbers = #tpu.dot_dimension_numbers<[1], [0], [0], [1], [0, 0, 1, 1], [], []>} : vector<128x128xf32>, vector<128x128xf32>, vector<128x128xf32> -> vector<128x128xf32>
    %290 = vector.broadcast %263 : vector<1x128xf32> to vector<128x128xf32>
    %291 = arith.addf %289, %290 : vector<128x128xf32>
    %cst_216 = arith.constant 0.000000e+00 : f32
    %292 = vector.broadcast %cst_216 : f32 to vector<128x128xf32>
    %293 = arith.maximumf %291, %292 : vector<128x128xf32>
    %cst_217 = arith.constant dense<0.000000e+00> : vector<128x128xf32>
    %294 = tpu.matmul %293, %265, %cst_217 {dimension_numbers = #tpu.dot_dimension_numbers<[1], [0], [0], [1], [0, 0, 1, 1], [], []>} : vector<128x128xf32>, vector<128x128xf32>, vector<128x128xf32> -> vector<128x128xf32>
    %295 = vector.broadcast %267 : vector<1x128xf32> to vector<128x128xf32>
    %296 = arith.addf %294, %295 : vector<128x128xf32>
    %c128_i32_218 = arith.constant 128 : i32
    %297 = arith.muli %c0_i32_201, %c128_i32_218 : i32
    %298 = tpu.assume_multiple %297, 128 : i32
    %299 = arith.index_cast %298 : i32 to index
    %c0_219 = arith.constant 0 : index
    %300 = vector.load %arg12[%299, %c0_219] : memref<128x128xf32, #tpu.memory_space<vmem>>, vector<128x128xf32>
    tpu.vector_store %arg12[%299, %c0_219], %296 {strides = array<i32>} : memref<128x128xf32, #tpu.memory_space<vmem>>, vector<128x128xf32>,
    %c1_i32_220 = arith.constant 1 : i32
    %c0_221 = arith.constant 0 : index
    %c0_222 = arith.constant 0 : index
    %301 = vector.load %arg12[%c0_221, %c0_222] : memref<128x128xf32, #tpu.memory_space<vmem>>, vector<128x128xf32>
    %cst_223 = arith.constant 0.000000e+00 : f32
    %302 = vector.shape_cast %2 : vector<128x1xi1> to vector<128x1xi1>
    %303 = vector.broadcast %302 : vector<128x1xi1> to vector<128x128xi1>
    %304 = vector.broadcast %cst_223 : f32 to vector<128x128xf32>
    %305 = arith.select %303, %301, %304 : vector<128x128xi1>, vector<128x128xf32>
    %cst_224 = arith.constant dense<0.000000e+00> : vector<128xf32>
    %306 = vector.multi_reduction <add>, %305, %cst_224 [0] : vector<128x128xf32> to vector<128xf32>
    %307 = vector.shape_cast %306 : vector<128xf32> to vector<1x128xf32>
    %cst_225 = arith.constant 6.250000e-02 : f32
    %308 = vector.broadcast %cst_225 : f32 to vector<1x128xf32>
    %309 = arith.mulf %307, %308 : vector<1x128xf32>
    %310 = vector.broadcast %309 : vector<1x128xf32> to vector<128x128xf32>
    %311 = arith.subf %301, %310 : vector<128x128xf32>
    %312 = arith.mulf %311, %311 : vector<128x128xf32>
    %cst_226 = arith.constant 0.000000e+00 : f32
    %313 = vector.shape_cast %2 : vector<128x1xi1> to vector<128x1xi1>
    %314 = vector.broadcast %313 : vector<128x1xi1> to vector<128x128xi1>
    %315 = vector.broadcast %cst_226 : f32 to vector<128x128xf32>
    %316 = arith.select %314, %312, %315 : vector<128x128xi1>, vector<128x128xf32>
    %cst_227 = arith.constant dense<0.000000e+00> : vector<128xf32>
    %317 = vector.multi_reduction <add>, %316, %cst_227 [0] : vector<128x128xf32> to vector<128xf32>
    %318 = vector.shape_cast %317 : vector<128xf32> to vector<1x128xf32>
    %cst_228 = arith.constant 6.250000e-02 : f32
    %319 = vector.broadcast %cst_228 : f32 to vector<1x128xf32>
    %320 = arith.mulf %318, %319 : vector<1x128xf32>
    %cst_229 = arith.constant 9.99999974E-6 : f32
    %321 = vector.broadcast %cst_229 : f32 to vector<1x128xf32>
    %322 = arith.addf %320, %321 : vector<1x128xf32>
    %323 = math.rsqrt %322 : vector<1x128xf32>
    %324 = vector.broadcast %323 : vector<1x128xf32> to vector<128x128xf32>
    %325 = arith.mulf %311, %324 : vector<128x128xf32>
    %c3_230 = arith.constant 3 : index
    %c0_231 = arith.constant 0 : index
    %c0_232 = arith.constant 0 : index
    %326 = vector.load %arg6[%c3_230, %c0_231, %c0_232] : memref<4x1x128xf32, #tpu.memory_space<vmem>>, vector<1x1x128xf32>
    %327 = vector.shape_cast %326 : vector<1x1x128xf32> to vector<1x128xf32>
    %328 = vector.broadcast %327 : vector<1x128xf32> to vector<128x128xf32>
    %329 = arith.mulf %325, %328 : vector<128x128xf32>
    %c3_233 = arith.constant 3 : index
    %c0_234 = arith.constant 0 : index
    %c0_235 = arith.constant 0 : index
    %330 = vector.load %arg7[%c3_233, %c0_234, %c0_235] : memref<4x1x128xf32, #tpu.memory_space<vmem>>, vector<1x1x128xf32>
    %331 = vector.shape_cast %330 : vector<1x1x128xf32> to vector<1x128xf32>
    %332 = vector.broadcast %331 : vector<1x128xf32> to vector<128x128xf32>
    %333 = arith.addf %329, %332 : vector<128x128xf32>
    %cst_236 = arith.constant 0.000000e+00 : f32
    %334 = vector.broadcast %cst_236 : f32 to vector<128x128xf32>
    %335 = arith.maximumf %333, %334 : vector<128x128xf32>
    %cst_237 = arith.constant 0.000000e+00 : f32
    %336 = vector.shape_cast %2 : vector<128x1xi1> to vector<128x1xi1>
    %337 = vector.broadcast %336 : vector<128x1xi1> to vector<128x128xi1>
    %338 = vector.broadcast %cst_237 : f32 to vector<128x128xf32>
    %339 = arith.select %337, %335, %338 : vector<128x128xi1>, vector<128x128xf32>
    %c0_238 = arith.constant 0 : index
    %c0_239 = arith.constant 0 : index
    %340 = vector.load %arg11[%c0_238, %c0_239] : memref<128x128xf32, #tpu.memory_space<vmem>>, vector<128x128xf32>
    tpu.vector_store %arg11[%c0_238, %c0_239], %339 {strides = array<i32>} : memref<128x128xf32, #tpu.memory_space<vmem>>, vector<128x128xf32>,
    %c0_240 = arith.constant 0 : index
    %c0_241 = arith.constant 0 : index
    %341 = vector.load %arg11[%c0_240, %c0_241] : memref<128x128xf32, #tpu.memory_space<vmem>>, vector<128x128xf32>
    %c0_242 = arith.constant 0 : index
    %c0_243 = arith.constant 0 : index
    %342 = vector.load %arg8[%c0_242, %c0_243] : memref<128x128xf32, #tpu.memory_space<vmem>>, vector<128x128xf32>
    %cst_244 = arith.constant dense<0.000000e+00> : vector<128x128xf32>
    %343 = tpu.matmul %341, %342, %cst_244 {dimension_numbers = #tpu.dot_dimension_numbers<[1], [0], [0], [1], [0, 0, 1, 1], [], []>} : vector<128x128xf32>, vector<128x128xf32>, vector<128x128xf32> -> vector<128x128xf32>
    %c0_245 = arith.constant 0 : index
    %c0_246 = arith.constant 0 : index
    %344 = vector.load %arg9[%c0_245, %c0_246] : memref<1x128xf32, #tpu.memory_space<vmem>>, vector<1x128xf32>
    %345 = vector.broadcast %344 : vector<1x128xf32> to vector<128x128xf32>
    %346 = arith.addf %343, %345 : vector<128x128xf32>
    %c0_247 = arith.constant 0 : index
    %c0_248 = arith.constant 0 : index
    %347 = vector.load %arg10[%c0_247, %c0_248] : memref<128x128xf32, #tpu.memory_space<vmem>>, vector<128x128xf32>
    tpu.vector_store %arg10[%c0_247, %c0_248], %346 {strides = array<i32>} : memref<128x128xf32, #tpu.memory_space<vmem>>, vector<128x128xf32>,
    return
  }
}

</mosaic_0001>

<llo_original>
// kernel: tpu_custom_call.1
$region0: #{tpu_custom_call.1}
  #allocation0 [shape = 'u32[]', space=smem, size = 0x4, offset = 0x4, fixed_abs, tag = 'smem constant byte address 0x4 - core index']
  #allocation1 [shape = 'u32[144,128]{1,0:T(1,128)}', space=vmem, size = 0x12000, scoped, tag = 'internal scratch']
  #allocation2 [shape = 'f32[128,128]{1,0:T(8,128)}', space=vmem, size = 0x10000, scoped, tag = 'scratch operand']
  #allocation3 [shape = 'f32[128,128]{1,0:T(8,128)}', space=vmem, size = 0x10000, scoped, tag = 'scratch operand']
  #allocation4 [shape = 'bf16[128,128]{1,0:T(8,128)(2,1)}', space=vmem, size = 0x8000, scoped, tag = 'scratch operand']
  #allocation5 [shape = 'bf16[2,128,128]{2,1,0:T(8,128)(2,1)}', space=vmem, size = 0x10000, scoped, tag = 'scratch operand']
  #allocation6 [shape = 's32[2]{0}', space=sflag, size = 0x8, scoped, tag = 'scratch operand']
  #allocation17 [shape = 's32[]', space=sflag, size = 0x4, offset = 0, fixed_abs, tag = 'sflag constant byte address 0x0 - dummy sync flag']
  #allocation18 [shape = 's32[]', space=sflag, size = 0x4, offset = 0, fixed_abs, tag = 'sflag constant byte address 0x0 - dummy sync flag']
  #allocation19 [shape = 'u32[]', space=smem, size = 0x4, offset = 0x44, fixed_abs, tag = 'smem constant byte address 0x44 - assertion arg 0']
  #allocation20 [shape = 'u32[]', space=smem, size = 0x4, offset = 0x48, fixed_abs, tag = 'smem constant byte address 0x48 - assertion arg 1']
  #allocation21 [shape = 's32[]', space=sflag, size = 0x4, offset = 0, fixed_abs, tag = 'sflag constant byte address 0x0 - dummy sync flag']
  #allocation22 [shape = 's32[]', space=sflag, size = 0x4, offset = 0, fixed_abs, tag = 'sflag constant byte address 0x0 - dummy sync flag']
  #allocation23 [shape = 's32[]', space=sflag, size = 0x4, offset = 0, fixed_abs, tag = 'sflag constant byte address 0x0 - dummy sync flag']
  #allocation24 [shape = 's32[]', space=sflag, size = 0x4, offset = 0, fixed_abs, tag = 'sflag constant byte address 0x0 - dummy sync flag']
  #allocation25 [shape = 's32[]', space=sflag, size = 0x4, offset = 0, fixed_abs, tag = 'sflag constant byte address 0x0 - dummy sync flag']
  #allocation26 [shape = 's32[]', space=sflag, size = 0x4, offset = 0, fixed_abs, tag = 'sflag constant byte address 0x0 - dummy sync flag']
  %s0 = inlined_call_operand.hbm [shape: bf16[128,128], index: 0, kind: input, shape index: {}]
  %s1 = inlined_call_operand.hbm [shape: f32[128,128], index: 1, kind: input, shape index: {}]
  %s2 = inlined_call_operand.hbm [shape: f32[4,128,128], index: 2, kind: input, shape index: {}]
  %s3 = inlined_call_operand.vmem [shape: f32[4,1,128], index: 3, kind: input, shape index: {}]
  %s4 = inlined_call_operand.hbm [shape: f32[4,128,128], index: 4, kind: input, shape index: {}]
  %s5 = inlined_call_operand.vmem [shape: f32[4,1,128], index: 5, kind: input, shape index: {}]
  %s6 = inlined_call_operand.hbm [shape: f32[4,1,128], index: 6, kind: input, shape index: {}]
  %s7 = inlined_call_operand.vmem [shape: f32[4,1,128], index: 7, kind: input, shape index: {}]
  %s8 = inlined_call_operand.hbm [shape: f32[128,128], index: 8, kind: input, shape index: {}]
  %s9 = inlined_call_operand.vmem [shape: f32[1,128], index: 9, kind: input, shape index: {}]
  %s10 = inlined_call_operand.hbm [shape: f32[128,128], index: 10, kind: output, shape index: {}]
  %s11 = sld [smem:[#allocation0]]
  $region82: #{tpu_custom_call.1} parent=0
    _
  %s13 = ssub.s32 1, %s11
  %s14 = scalar_select 0, %s13, %s11
  $region1: #{tpu_custom_call.1} parent=0
    #allocation7 [shape = 'u8[65536]{0}', space=vmem, size = 0x10000, scoped, tag = 'input window, operand 1, single buffered']
    #allocation8 [shape = 's32[1]{0}', space=sflag, size = 0x4, scoped, tag = 'scoped memory for tpu_custom_call.1']
    #allocation9 [shape = 's32[1]{0}', space=sflag, size = 0x4, scoped, tag = 'scoped memory for tpu_custom_call.1']
    #allocation10 [shape = 'u8[262144]{0}', space=vmem, size = 0x40000, scoped, tag = 'input window, operand 2, single buffered']
    #allocation11 [shape = 's32[1]{0}', space=sflag, size = 0x4, scoped, tag = 'scoped memory for tpu_custom_call.1']
    #allocation12 [shape = 'u8[262144]{0}', space=vmem, size = 0x40000, scoped, tag = 'input window, operand 4, single buffered']
    #allocation13 [shape = 'u8[2048]{0}', space=vmem, size = 0x800, scoped, tag = 'input window, operand 6, single buffered']
    #allocation14 [shape = 's32[1]{0}', space=sflag, size = 0x4, scoped, tag = 'scoped memory for tpu_custom_call.1']
    #allocation15 [shape = 'u8[65536]{0}', space=vmem, size = 0x10000, scoped, tag = 'input window, operand 8, single buffered']
    #allocation16 [shape = 'u8[65536]{0}', space=vmem, size = 0x10000, scoped, tag = 'output window, operand 0, single buffered']
    %15 = vsyncpa [#allocation8], 0
    %16 = vsyncpa [#allocation11], 0
    %17 = vsyncpa [#allocation14], 0
    %18 = vsyncpa [#allocation9], 0
    // Predicated region
    $region2: #{tpu_custom_call.1} parent=1 // pred_check
      _
    $region3: #{tpu_custom_call.1} parent=1 // pred_check_branch
      %20 = sbr.rel (0) target = $region5
    $region4: #{tpu_custom_call.1} parent=1 // pred_region
      %s22 = ssub.s32 2048, 2048
      %23 = vsyncadd [#allocation8], %s22
      %s24 = sshll.u32 [#allocation7], 4
      %s25 = int_to_ptr.vmem [resolvable:$true] %s24
      %30 = dma.hbm_to_vmem [thread:$0]  %s1, 2048, %s25, [#allocation8], 128, 128, 8
    $region5: #{tpu_custom_call.1} parent=1 // pred_fallthru
      _
    // Predicated region
    $region6: #{tpu_custom_call.1} parent=1 // pred_check
      _
    $region7: #{tpu_custom_call.1} parent=1 // pred_check_branch
      %32 = sbr.rel (0) target = $region9
    $region8: #{tpu_custom_call.1} parent=1 // pred_region
      %s34 = ssub.s32 8192, 8192
      %35 = vsyncadd [#allocation11], %s34
      %s36 = sshll.u32 [#allocation10], 4
      %s37 = int_to_ptr.vmem [resolvable:$true] %s36
      %42 = dma.hbm_to_vmem [thread:$0]  %s2, 8192, %s37, [#allocation11], 128, 128, 8
    $region9: #{tpu_custom_call.1} parent=1 // pred_fallthru
      _
    // Predicated region
    $region10: #{tpu_custom_call.1} parent=1 // pred_check
      _
    $region11: #{tpu_custom_call.1} parent=1 // pred_check_branch
      %44 = sbr.rel (0) target = $region13
    $region12: #{tpu_custom_call.1} parent=1 // pred_region
      _
    $region13: #{tpu_custom_call.1} parent=1 // pred_fallthru
      _
    // Predicated region
    $region14: #{tpu_custom_call.1} parent=1 // pred_check
      _
    $region15: #{tpu_custom_call.1} parent=1 // pred_check_branch
      %46 = sbr.rel (0) target = $region17
    $region16: #{tpu_custom_call.1} parent=1 // pred_region
      %s48 = ssub.s32 8192, 8192
      %49 = vsyncadd [#allocation11], %s48
      %s50 = sshll.u32 [#allocation12], 4
      %s51 = int_to_ptr.vmem [resolvable:$true] %s50
      %56 = dma.hbm_to_vmem [thread:$0]  %s4, 8192, %s51, [#allocation11], 128, 128, 8
    $region17: #{tpu_custom_call.1} parent=1 // pred_fallthru
      _
    // Predicated region
    $region18: #{tpu_custom_call.1} parent=1 // pred_check
      _
    $region19: #{tpu_custom_call.1} parent=1 // pred_check_branch
      %58 = sbr.rel (0) target = $region21
    $region20: #{tpu_custom_call.1} parent=1 // pred_region
      _
    $region21: #{tpu_custom_call.1} parent=1 // pred_fallthru
      _
    // Predicated region
    $region22: #{tpu_custom_call.1} parent=1 // pred_check
      _
    $region23: #{tpu_custom_call.1} parent=1 // pred_check_branch
      %60 = sbr.rel (0) target = $region25
    $region24: #{tpu_custom_call.1} parent=1 // pred_region
      %s62 = ssub.s32 64, 64
      %63 = vsyncadd [#allocation14], %s62
      %s64 = sshll.u32 [#allocation13], 4
      %s65 = int_to_ptr.vmem [resolvable:$true] %s64
      %70 = dma.hbm_to_vmem [thread:$0]  %s6, 64, %s65, [#allocation14], 16, 16, 1
    $region25: #{tpu_custom_call.1} parent=1 // pred_fallthru
      _
    // Predicated region
    $region26: #{tpu_custom_call.1} parent=1 // pred_check
      _
    $region27: #{tpu_custom_call.1} parent=1 // pred_check_branch
      %72 = sbr.rel (0) target = $region29
    $region28: #{tpu_custom_call.1} parent=1 // pred_region
      _
    $region29: #{tpu_custom_call.1} parent=1 // pred_fallthru
      _
    // Predicated region
    $region30: #{tpu_custom_call.1} parent=1 // pred_check
      _
    $region31: #{tpu_custom_call.1} parent=1 // pred_check_branch
      %74 = sbr.rel (0) target = $region33
    $region32: #{tpu_custom_call.1} parent=1 // pred_region
      %s76 = ssub.s32 2048, 2048
      %77 = vsyncadd [#allocation14], %s76
      %s78 = sshll.u32 [#allocation15], 4
      %s79 = int_to_ptr.vmem [resolvable:$true] %s78
      %84 = dma.hbm_to_vmem [thread:$0]  %s8, 2048, %s79, [#allocation14], 128, 128, 8
    $region33: #{tpu_custom_call.1} parent=1 // pred_fallthru
      _
    // Predicated region
    $region34: #{tpu_custom_call.1} parent=1 // pred_check
      _
    $region35: #{tpu_custom_call.1} parent=1 // pred_check_branch
      %86 = sbr.rel (0) target = $region37
    $region36: #{tpu_custom_call.1} parent=1 // pred_region
      _
    $region37: #{tpu_custom_call.1} parent=1 // pred_fallthru
      _
    // Predicated region
    $region38: #{tpu_custom_call.1} parent=1 // pred_check
      _
    $region39: #{tpu_custom_call.1} parent=1 // pred_check_branch
      %88 = sbr.rel (0) target = $region41
    $region40: #{tpu_custom_call.1} parent=1 // pred_region
      %89 = dma.done [#allocation8], 2048
    $region41: #{tpu_custom_call.1} parent=1 // pred_fallthru
      _
    // Predicated region
    $region42: #{tpu_custom_call.1} parent=1 // pred_check
      _
    $region43: #{tpu_custom_call.1} parent=1 // pred_check_branch
      %91 = sbr.rel (0) target = $region45
    $region44: #{tpu_custom_call.1} parent=1 // pred_region
      %92 = dma.done [#allocation11], 8192
    $region45: #{tpu_custom_call.1} parent=1 // pred_fallthru
      _
    // Predicated region
    $region46: #{tpu_custom_call.1} parent=1 // pred_check
      _
    $region47: #{tpu_custom_call.1} parent=1 // pred_check_branch
      %94 = sbr.rel (0) target = $region49
    $region48: #{tpu_custom_call.1} parent=1 // pred_region
      %95 = dma.done [#allocation11], 8192
    $region49: #{tpu_custom_call.1} parent=1 // pred_fallthru
      _
    // Predicated region
    $region50: #{tpu_custom_call.1} parent=1 // pred_check
      _
    $region51: #{tpu_custom_call.1} parent=1 // pred_check_branch
      %97 = sbr.rel (0) target = $region53
    $region52: #{tpu_custom_call.1} parent=1 // pred_region
      %98 = dma.done [#allocation14], 64
    $region53: #{tpu_custom_call.1} parent=1 // pred_fallthru
      _
    // Predicated region
    $region54: #{tpu_custom_call.1} parent=1 // pred_check
      _
    $region55: #{tpu_custom_call.1} parent=1 // pred_check_branch
      %100 = sbr.rel (0) target = $region57
    $region56: #{tpu_custom_call.1} parent=1 // pred_region
      %101 = dma.done [#allocation14], 2048
    $region57: #{tpu_custom_call.1} parent=1 // pred_fallthru
      _
    %v103 = vlaneseq
    %v104 = vshrl.u32 %v103, 7
    %v105 = vadd.s32 %v104, 8
    %v106 = vadd.s32 %v104, 16
    %v107 = vadd.s32 %v104, 24
    %v108 = vadd.s32 %v104, 32
    %v109 = vadd.s32 %v104, 40
    %v110 = vadd.s32 %v104, 48
    %v111 = vadd.s32 %v104, 56
    %v112 = vadd.s32 %v104, 64
    %v113 = vadd.s32 %v104, 72
    %v114 = vadd.s32 %v104, 80
    %v115 = vadd.s32 %v104, 88
    %v116 = vadd.s32 %v104, 96
    %v117 = vadd.s32 %v104, 104
    %v118 = vadd.s32 %v104, 112
    %v119 = vadd.s32 %v104, 120
    %vm120 = vcmp.lt.s32.totalorder %v104, 16
    %vm121 = vcmp.lt.s32.totalorder %v105, 16
    %vm122 = vcmp.lt.s32.totalorder %v106, 16
    %vm123 = vcmp.lt.s32.totalorder %v107, 16
    %vm124 = vcmp.lt.s32.totalorder %v108, 16
    %vm125 = vcmp.lt.s32.totalorder %v109, 16
    %vm126 = vcmp.lt.s32.totalorder %v110, 16
    %vm127 = vcmp.lt.s32.totalorder %v111, 16
    %vm128 = vcmp.lt.s32.totalorder %v112, 16
    %vm129 = vcmp.lt.s32.totalorder %v113, 16
    %vm130 = vcmp.lt.s32.totalorder %v114, 16
    %vm131 = vcmp.lt.s32.totalorder %v115, 16
    %vm132 = vcmp.lt.s32.totalorder %v116, 16
    %vm133 = vcmp.lt.s32.totalorder %v117, 16
    %vm134 = vcmp.lt.s32.totalorder %v118, 16
    %vm135 = vcmp.lt.s32.totalorder %v119, 16
    %v136 = vld [vmem:[#allocation7] sm:$0xff]
    %v137 = vld [vmem:[#allocation7 + $0x8] sm:$0xff]
    %v138 = vld [vmem:[#allocation7 + $0x10] sm:$0xff]
    %v139 = vld [vmem:[#allocation7 + $0x18] sm:$0xff]
    %v140 = vld [vmem:[#allocation7 + $0x20] sm:$0xff]
    %v141 = vld [vmem:[#allocation7 + $0x28] sm:$0xff]
    %v142 = vld [vmem:[#allocation7 + $0x30] sm:$0xff]
    %v143 = vld [vmem:[#allocation7 + $0x38] sm:$0xff]
    %v144 = vld [vmem:[#allocation7 + $0x40] sm:$0xff]
    %v145 = vld [vmem:[#allocation7 + $0x48] sm:$0xff]
    %v146 = vld [vmem:[#allocation7 + $0x50] sm:$0xff]
    %v147 = vld [vmem:[#allocation7 + $0x58] sm:$0xff]
    %v148 = vld [vmem:[#allocation7 + $0x60] sm:$0xff]
    %v149 = vld [vmem:[#allocation7 + $0x68] sm:$0xff]
    %v150 = vld [vmem:[#allocation7 + $0x70] sm:$0xff]
    %v151 = vld [vmem:[#allocation7 + $0x78] sm:$0xff]
    %152 = vst [vmem:[#allocation2] sm:$0xff] %v136
    %153 = vst [vmem:[#allocation2 + $0x8] sm:$0xff] %v137
    %154 = vst [vmem:[#allocation2 + $0x10] sm:$0xff] %v138
    %155 = vst [vmem:[#allocation2 + $0x18] sm:$0xff] %v139
    %156 = vst [vmem:[#allocation2 + $0x20] sm:$0xff] %v140
    %157 = vst [vmem:[#allocation2 + $0x28] sm:$0xff] %v141
    %158 = vst [vmem:[#allocation2 + $0x30] sm:$0xff] %v142
    %159 = vst [vmem:[#allocation2 + $0x38] sm:$0xff] %v143
    %160 = vst [vmem:[#allocation2 + $0x40] sm:$0xff] %v144
    %161 = vst [vmem:[#allocation2 + $0x48] sm:$0xff] %v145
    %162 = vst [vmem:[#allocation2 + $0x50] sm:$0xff] %v146
    %163 = vst [vmem:[#allocation2 + $0x58] sm:$0xff] %v147
    %164 = vst [vmem:[#allocation2 + $0x60] sm:$0xff] %v148
    %165 = vst [vmem:[#allocation2 + $0x68] sm:$0xff] %v149
    %166 = vst [vmem:[#allocation2 + $0x70] sm:$0xff] %v150
    %167 = vst [vmem:[#allocation2 + $0x78] sm:$0xff] %v151
    %v168 = vld [vmem:[#allocation2] sm:$0xff]
    %v169 = vld [vmem:[#allocation2 + $0x8] sm:$0xff]
    %v170 = vld [vmem:[#allocation2 + $0x10] sm:$0xff]
    %v171 = vld [vmem:[#allocation2 + $0x18] sm:$0xff]
    %v172 = vld [vmem:[#allocation2 + $0x20] sm:$0xff]
    %v173 = vld [vmem:[#allocation2 + $0x28] sm:$0xff]
    %v174 = vld [vmem:[#allocation2 + $0x30] sm:$0xff]
    %v175 = vld [vmem:[#allocation2 + $0x38] sm:$0xff]
    %v176 = vld [vmem:[#allocation2 + $0x40] sm:$0xff]
    %v177 = vld [vmem:[#allocation2 + $0x48] sm:$0xff]
    %v178 = vld [vmem:[#allocation2 + $0x50] sm:$0xff]
    %v179 = vld [vmem:[#allocation2 + $0x58] sm:$0xff]
    %v180 = vld [vmem:[#allocation2 + $0x60] sm:$0xff]
    %v181 = vld [vmem:[#allocation2 + $0x68] sm:$0xff]
    %v182 = vld [vmem:[#allocation2 + $0x70] sm:$0xff]
    %v183 = vld [vmem:[#allocation2 + $0x78] sm:$0xff]
    %v184 = vpack.c.bf16 %v169, %v168
    %v185 = vpack.c.bf16 %v171, %v170
    %v186 = vpack.c.bf16 %v173, %v172
    %v187 = vpack.c.bf16 %v175, %v174
    %v188 = vpack.c.bf16 %v177, %v176
    %v189 = vpack.c.bf16 %v179, %v178
    %v190 = vpack.c.bf16 %v181, %v180
    %v191 = vpack.c.bf16 %v183, %v182
    %v200 = vunpack.c.l.b16 %v184
    %v201 = vunpack.c.h.b16 %v184
    %v202 = vunpack.c.l.b16 %v185
    %v203 = vunpack.c.h.b16 %v185
    %v204 = vunpack.c.l.b16 %v186
    %v205 = vunpack.c.h.b16 %v186
    %v206 = vunpack.c.l.b16 %v187
    %v207 = vunpack.c.h.b16 %v187
    %v208 = vunpack.c.l.b16 %v188
    %v209 = vunpack.c.h.b16 %v188
    %v210 = vunpack.c.l.b16 %v189
    %v211 = vunpack.c.h.b16 %v189
    %v212 = vunpack.c.l.b16 %v190
    %v213 = vunpack.c.h.b16 %v190
    %v214 = vunpack.c.l.b16 %v191
    %v215 = vunpack.c.h.b16 %v191
    %v216 = vpack.c.b16 %v200, %v200
    %v217 = vpack.c.b16 %v201, %v201
    %v218 = vpack.c.b16 %v202, %v202
    %v219 = vpack.c.b16 %v203, %v203
    %v220 = vpack.c.b16 %v204, %v204
    %v221 = vpack.c.b16 %v205, %v205
    %v222 = vpack.c.b16 %v206, %v206
    %v223 = vpack.c.b16 %v207, %v207
    %v224 = vpack.c.b16 %v208, %v208
    %v225 = vpack.c.b16 %v209, %v209
    %v226 = vpack.c.b16 %v210, %v210
    %v227 = vpack.c.b16 %v211, %v211
    %v228 = vpack.c.b16 %v212, %v212
    %v229 = vpack.c.b16 %v213, %v213
    %v230 = vpack.c.b16 %v214, %v214
    %v231 = vpack.c.b16 %v215, %v215
    %248 = vst [vmem:[#allocation4] sm:$0xf] %v216
    %249 = vst [vmem:[#allocation4 + $0x4] sm:$0xf] %v217
    %250 = vst [vmem:[#allocation4 + $0x8] sm:$0xf] %v218
    %251 = vst [vmem:[#allocation4 + $0xc] sm:$0xf] %v219
    %252 = vst [vmem:[#allocation4 + $0x10] sm:$0xf] %v220
    %253 = vst [vmem:[#allocation4 + $0x14] sm:$0xf] %v221
    %254 = vst [vmem:[#allocation4 + $0x18] sm:$0xf] %v222
    %255 = vst [vmem:[#allocation4 + $0x1c] sm:$0xf] %v223
    %256 = vst [vmem:[#allocation4 + $0x20] sm:$0xf] %v224
    %257 = vst [vmem:[#allocation4 + $0x24] sm:$0xf] %v225
    %258 = vst [vmem:[#allocation4 + $0x28] sm:$0xf] %v226
    %259 = vst [vmem:[#allocation4 + $0x2c] sm:$0xf] %v227
    %260 = vst [vmem:[#allocation4 + $0x30] sm:$0xf] %v228
    %261 = vst [vmem:[#allocation4 + $0x34] sm:$0xf] %v229
    %262 = vst [vmem:[#allocation4 + $0x38] sm:$0xf] %v230
    %263 = vst [vmem:[#allocation4 + $0x3c] sm:$0xf] %v231
    %v264 = vld [vmem:[#allocation10] sm:$0xff]
    %v265 = vld [vmem:[#allocation10 + $0x8] sm:$0xff]
    %v266 = vld [vmem:[#allocation10 + $0x10] sm:$0xff]
    %v267 = vld [vmem:[#allocation10 + $0x18] sm:$0xff]
    %v268 = vld [vmem:[#allocation10 + $0x20] sm:$0xff]
    %v269 = vld [vmem:[#allocation10 + $0x28] sm:$0xff]
    %v270 = vld [vmem:[#allocation10 + $0x30] sm:$0xff]
    %v271 = vld [vmem:[#allocation10 + $0x38] sm:$0xff]
    %v272 = vld [vmem:[#allocation10 + $0x40] sm:$0xff]
    %v273 = vld [vmem:[#allocation10 + $0x48] sm:$0xff]
    %v274 = vld [vmem:[#allocation10 + $0x50] sm:$0xff]
    %v275 = vld [vmem:[#allocation10 + $0x58] sm:$0xff]
    %v276 = vld [vmem:[#allocation10 + $0x60] sm:$0xff]
    %v277 = vld [vmem:[#allocation10 + $0x68] sm:$0xff]
    %v278 = vld [vmem:[#allocation10 + $0x70] sm:$0xff]
    %v279 = vld [vmem:[#allocation10 + $0x78] sm:$0xff]
    %v280 = vld [vmem:[%s3] sm:$0x1]
    %v281 = vld [vmem:[#allocation12] sm:$0xff]
    %v282 = vld [vmem:[#allocation12 + $0x8] sm:$0xff]
    %v283 = vld [vmem:[#allocation12 + $0x10] sm:$0xff]
    %v284 = vld [vmem:[#allocation12 + $0x18] sm:$0xff]
    %v285 = vld [vmem:[#allocation12 + $0x20] sm:$0xff]
    %v286 = vld [vmem:[#allocation12 + $0x28] sm:$0xff]
    %v287 = vld [vmem:[#allocation12 + $0x30] sm:$0xff]
    %v288 = vld [vmem:[#allocation12 + $0x38] sm:$0xff]
    %v289 = vld [vmem:[#allocation12 + $0x40] sm:$0xff]
    %v290 = vld [vmem:[#allocation12 + $0x48] sm:$0xff]
    %v291 = vld [vmem:[#allocation12 + $0x50] sm:$0xff]
    %v292 = vld [vmem:[#allocation12 + $0x58] sm:$0xff]
    %v293 = vld [vmem:[#allocation12 + $0x60] sm:$0xff]
    %v294 = vld [vmem:[#allocation12 + $0x68] sm:$0xff]
    %v295 = vld [vmem:[#allocation12 + $0x70] sm:$0xff]
    %v296 = vld [vmem:[#allocation12 + $0x78] sm:$0xff]
    %v297 = vld [vmem:[%s5] sm:$0x1]
    // Predicated region
    $region58: #{tpu_custom_call.1} parent=1 // pred_check
      _
    $region59: #{tpu_custom_call.1} parent=1 // pred_check_branch
      %299 = sbr.rel target = $region61
    $region60: #{tpu_custom_call.1} parent=1 // pred_region
      %300 = sst [smem:[#allocation19]] [#allocation18]
      %301 = sst [smem:[#allocation20]] [#allocation17]
    $region61: #{tpu_custom_call.1} parent=1 // pred_fallthru
      _
    %303 = shalt.err (0)
    %s305 = sshll.u32 [#allocation5], 4
    %s306 = int_to_ptr.vmem [resolvable:$true] %s305
    %308 = dma.hbm_to_vmem [thread:$0]  %s0, 1024, %s306, [#allocation6]
    %s309 = smul.u32 4, 16
    %s310 = smul.u32 %s309, 1
    %s311 = sshll.u32 %s310, 4
    %312 = dma.done [#allocation6], %s311
    %v313 = vld [vmem:[#allocation5] sm:$0xf]
    %v314 = vld [vmem:[#allocation5 + $0x4] sm:$0xf]
    %v315 = vld [vmem:[#allocation5 + $0x8] sm:$0xf]
    %v316 = vld [vmem:[#allocation5 + $0xc] sm:$0xf]
    %v317 = vld [vmem:[#allocation5 + $0x10] sm:$0xf]
    %v318 = vld [vmem:[#allocation5 + $0x14] sm:$0xf]
    %v319 = vld [vmem:[#allocation5 + $0x18] sm:$0xf]
    %v320 = vld [vmem:[#allocation5 + $0x1c] sm:$0xf]
    %v321 = vld [vmem:[#allocation5 + $0x20] sm:$0xf]
    %v322 = vld [vmem:[#allocation5 + $0x24] sm:$0xf]
    %v323 = vld [vmem:[#allocation5 + $0x28] sm:$0xf]
    %v324 = vld [vmem:[#allocation5 + $0x2c] sm:$0xf]
    %v325 = vld [vmem:[#allocation5 + $0x30] sm:$0xf]
    %v326 = vld [vmem:[#allocation5 + $0x34] sm:$0xf]
    %v327 = vld [vmem:[#allocation5 + $0x38] sm:$0xf]
    %v328 = vld [vmem:[#allocation5 + $0x3c] sm:$0xf]
    %v329 = vld [vmem:[#allocation4] sm:$0xf]
    %v330 = vld [vmem:[#allocation4 + $0x4] sm:$0xf]
    %v331 = vld [vmem:[#allocation4 + $0x8] sm:$0xf]
    %v332 = vld [vmem:[#allocation4 + $0xc] sm:$0xf]
    %v333 = vld [vmem:[#allocation4 + $0x10] sm:$0xf]
    %v334 = vld [vmem:[#allocation4 + $0x14] sm:$0xf]
    %v335 = vld [vmem:[#allocation4 + $0x18] sm:$0xf]
    %v336 = vld [vmem:[#allocation4 + $0x1c] sm:$0xf]
    %v337 = vld [vmem:[#allocation4 + $0x20] sm:$0xf]
    %v338 = vld [vmem:[#allocation4 + $0x24] sm:$0xf]
    %v339 = vld [vmem:[#allocation4 + $0x28] sm:$0xf]
    %v340 = vld [vmem:[#allocation4 + $0x2c] sm:$0xf]
    %v341 = vld [vmem:[#allocation4 + $0x30] sm:$0xf]
    %v342 = vld [vmem:[#allocation4 + $0x34] sm:$0xf]
    %v343 = vld [vmem:[#allocation4 + $0x38] sm:$0xf]
    %v344 = vld [vmem:[#allocation4 + $0x3c] sm:$0xf]
    %v361 = vunpack.c.l.b16 %v313
    %v362 = vunpack.c.l.b16 %v314
    %v363 = vunpack.c.l.b16 %v315
    %v364 = vunpack.c.l.b16 %v316
    %v365 = vunpack.c.l.b16 %v317
    %v366 = vunpack.c.l.b16 %v318
    %v367 = vunpack.c.l.b16 %v319
    %v368 = vunpack.c.l.b16 %v320
    %v369 = vunpack.c.l.b16 %v321
    %v370 = vunpack.c.l.b16 %v322
    %v371 = vunpack.c.l.b16 %v323
    %v372 = vunpack.c.l.b16 %v324
    %v373 = vunpack.c.l.b16 %v325
    %v374 = vunpack.c.l.b16 %v326
    %v375 = vunpack.c.l.b16 %v327
    %v376 = vunpack.c.l.b16 %v328
    %v377 = vpack.c.b16 %v362, %v361
    %v378 = vpack.c.b16 %v364, %v363
    %v379 = vpack.c.b16 %v366, %v365
    %v380 = vpack.c.b16 %v368, %v367
    %v381 = vpack.c.b16 %v370, %v369
    %v382 = vpack.c.b16 %v372, %v371
    %v383 = vpack.c.b16 %v374, %v373
    %v384 = vpack.c.b16 %v376, %v375
    %v409 = vunpack.c.l.b16 %v329
    %v410 = vunpack.c.l.b16 %v330
    %v411 = vunpack.c.l.b16 %v331
    %v412 = vunpack.c.l.b16 %v332
    %v413 = vunpack.c.l.b16 %v333
    %v414 = vunpack.c.l.b16 %v334
    %v415 = vunpack.c.l.b16 %v335
    %v416 = vunpack.c.l.b16 %v336
    %v417 = vunpack.c.l.b16 %v337
    %v418 = vunpack.c.l.b16 %v338
    %v419 = vunpack.c.l.b16 %v339
    %v420 = vunpack.c.l.b16 %v340
    %v421 = vunpack.c.l.b16 %v341
    %v422 = vunpack.c.l.b16 %v342
    %v423 = vunpack.c.l.b16 %v343
    %v424 = vunpack.c.l.b16 %v344
    %v425 = vpack.c.b16 %v410, %v409
    %v426 = vpack.c.b16 %v412, %v411
    %v427 = vpack.c.b16 %v414, %v413
    %v428 = vpack.c.b16 %v416, %v415
    %v429 = vpack.c.b16 %v418, %v417
    %v430 = vpack.c.b16 %v420, %v419
    %v431 = vpack.c.b16 %v422, %v421
    %v432 = vpack.c.b16 %v424, %v423
    %441 = vmatprep.subr.bf16.mxu0 0
    %442 = vmatpush1.bf16.msra.mxu0 %v432
    %443 = vmatprep.subr.bf16.mxu0 0
    %444 = vmatpush1.bf16.msra.mxu0 %v431
    %445 = vmatprep.subr.bf16.mxu0 0
    %446 = vmatpush1.bf16.msra.mxu0 %v430
    %447 = vmatprep.subr.bf16.mxu0 0
    %448 = vmatpush1.bf16.msra.mxu0 %v429
    %449 = vmatprep.subr.bf16.mxu0 0
    %450 = vmatpush1.bf16.msra.mxu0 %v428
    %451 = vmatprep.subr.bf16.mxu0 0
    %452 = vmatpush1.bf16.msra.mxu0 %v427
    %453 = vmatprep.subr.bf16.mxu0 0
    %454 = vmatpush1.bf16.msra.mxu0 %v426
    %455 = vmatprep.subr.bf16.mxu0 0
    %456 = vmatpush1.bf16.msra.mxu0 %v425
    %457 = vmatprep.subr.bf16.mxu0 0
    %458 = vmatpush2.bf16.msra.mxu0 0
    %459 = vmatprep.subr.bf16.mxu0 0
    %460 = vmatpush2.bf16.msra.mxu0 0
    %461 = vmatprep.subr.bf16.mxu0 0
    %462 = vmatpush2.bf16.msra.mxu0 0
    %463 = vmatprep.subr.bf16.mxu0 0
    %464 = vmatpush2.bf16.msra.mxu0 0
    %465 = vmatprep.subr.bf16.mxu0 0
    %466 = vmatpush2.bf16.msra.mxu0 0
    %467 = vmatprep.subr.bf16.mxu0 0
    %468 = vmatpush2.bf16.msra.mxu0 0
    %469 = vmatprep.subr.bf16.mxu0 0
    %470 = vmatpush2.bf16.msra.mxu0 0
    %471 = vmatprep.subr.bf16.mxu0 0
    %472 = vmatpush2.bf16.msra.mxu0 0
    %473 = vmatprep.mubr.bf16.mxu0 0
    %474 = vmatmul.mubr.bf16.gmra.mxu0 %v377
    %v475 = vpop.f32.mrf.mxu0
    %v476 = vadd.f32 0.0, %v475
    %v477 = vpop.f32.mrf.mxu0
    %v478 = vpop.f32.mrf.mxu0
    %v479 = vadd.f32 0.0, %v478
    %v480 = vpop.f32.mrf.mxu0
    %481 = vmatprep.mubr.bf16.mxu0 0
    %482 = vmatmul.mubr.bf16.gmra.mxu0 %v378
    %v483 = vpop.f32.mrf.mxu0
    %v484 = vadd.f32 0.0, %v483
    %v485 = vpop.f32.mrf.mxu0
    %v486 = vpop.f32.mrf.mxu0
    %v487 = vadd.f32 0.0, %v486
    %v488 = vpop.f32.mrf.mxu0
    %489 = vmatprep.mubr.bf16.mxu0 0
    %490 = vmatmul.mubr.bf16.gmra.mxu0 %v379
    %v491 = vpop.f32.mrf.mxu0
    %v492 = vadd.f32 0.0, %v491
    %v493 = vpop.f32.mrf.mxu0
    %v494 = vpop.f32.mrf.mxu0
    %v495 = vadd.f32 0.0, %v494
    %v496 = vpop.f32.mrf.mxu0
    %497 = vmatprep.mubr.bf16.mxu0 0
    %498 = vmatmul.mubr.bf16.gmra.mxu0 %v380
    %v499 = vpop.f32.mrf.mxu0
    %v500 = vadd.f32 0.0, %v499
    %v501 = vpop.f32.mrf.mxu0
    %v502 = vpop.f32.mrf.mxu0
    %v503 = vadd.f32 0.0, %v502
    %v504 = vpop.f32.mrf.mxu0
    %505 = vmatprep.mubr.bf16.mxu0 0
    %506 = vmatmul.mubr.bf16.gmra.mxu0 %v381
    %v507 = vpop.f32.mrf.mxu0
    %v508 = vadd.f32 0.0, %v507
    %v509 = vpop.f32.mrf.mxu0
    %v510 = vpop.f32.mrf.mxu0
    %v511 = vadd.f32 0.0, %v510
    %v512 = vpop.f32.mrf.mxu0
    %513 = vmatprep.mubr.bf16.mxu0 0
    %514 = vmatmul.mubr.bf16.gmra.mxu0 %v382
    %v515 = vpop.f32.mrf.mxu0
    %v516 = vadd.f32 0.0, %v515
    %v517 = vpop.f32.mrf.mxu0
    %v518 = vpop.f32.mrf.mxu0
    %v519 = vadd.f32 0.0, %v518
    %v520 = vpop.f32.mrf.mxu0
    %521 = vmatprep.mubr.bf16.mxu0 0
    %522 = vmatmul.mubr.bf16.gmra.mxu0 %v383
    %v523 = vpop.f32.mrf.mxu0
    %v524 = vadd.f32 0.0, %v523
    %v525 = vpop.f32.mrf.mxu0
    %v526 = vpop.f32.mrf.mxu0
    %v527 = vadd.f32 0.0, %v526
    %v528 = vpop.f32.mrf.mxu0
    %529 = vmatprep.mubr.bf16.mxu0 0
    %530 = vmatmul.mubr.bf16.gmra.mxu0 %v384
    %v531 = vpop.f32.mrf.mxu0
    %v532 = vadd.f32 0.0, %v531
    %v533 = vpop.f32.mrf.mxu0
    %v534 = vpop.f32.mrf.mxu0
    %v535 = vadd.f32 0.0, %v534
    %v536 = vpop.f32.mrf.mxu0
    %537 = vdwg.mxu0
    %v539 = vlaneseq
    %v540 = vshrl.u32 %v539, 7
    %v541 = vsub.s32 0, %v540
    %v542 = vrot.slane %v280, %v541
    %544 = vmatprep.subr.mxu0 0.0
    %545 = vmatpush1.msra.mxu0 %v279
    %546 = vmatprep.subr.mxu0 0.0
    %547 = vmatpush1.msra.mxu0 %v278
    %548 = vmatprep.subr.mxu0 0.0
    %549 = vmatpush1.msra.mxu0 %v277
    %550 = vmatprep.subr.mxu0 0.0
    %551 = vmatpush1.msra.mxu0 %v276
    %552 = vmatprep.subr.mxu0 0.0
    %553 = vmatpush1.msra.mxu0 %v275
    %554 = vmatprep.subr.mxu0 0.0
    %555 = vmatpush1.msra.mxu0 %v274
    %556 = vmatprep.subr.mxu0 0.0
    %557 = vmatpush1.msra.mxu0 %v273
    %558 = vmatprep.subr.mxu0 0.0
    %559 = vmatpush1.msra.mxu0 %v272
    %560 = vmatprep.subr.mxu0 0.0
    %561 = vmatpush1.msra.mxu0 %v271
    %562 = vmatprep.subr.mxu0 0.0
    %563 = vmatpush1.msra.mxu0 %v270
    %564 = vmatprep.subr.mxu0 0.0
    %565 = vmatpush1.msra.mxu0 %v269
    %566 = vmatprep.subr.mxu0 0.0
    %567 = vmatpush1.msra.mxu0 %v268
    %568 = vmatprep.subr.mxu0 0.0
    %569 = vmatpush1.msra.mxu0 %v267
    %570 = vmatprep.subr.mxu0 0.0
    %571 = vmatpush1.msra.mxu0 %v266
    %572 = vmatprep.subr.mxu0 0.0
    %573 = vmatpush1.msra.mxu0 %v265
    %574 = vmatprep.subr.mxu0 0.0
    %575 = vmatpush1.msra.mxu0 %v264
    %576 = vmatprep.subr.mxu0 0.0
    %577 = vmatpush2.msra.mxu0 0.0
    %578 = vmatprep.subr.mxu0 0.0
    %579 = vmatpush2.msra.mxu0 0.0
    %580 = vmatprep.subr.mxu0 0.0
    %581 = vmatpush2.msra.mxu0 0.0
    %582 = vmatprep.subr.mxu0 0.0
    %583 = vmatpush2.msra.mxu0 0.0
    %584 = vmatprep.subr.mxu0 0.0
    %585 = vmatpush2.msra.mxu0 0.0
    %586 = vmatprep.subr.mxu0 0.0
    %587 = vmatpush2.msra.mxu0 0.0
    %588 = vmatprep.subr.mxu0 0.0
    %589 = vmatpush2.msra.mxu0 0.0
    %590 = vmatprep.subr.mxu0 0.0
    %591 = vmatpush2.msra.mxu0 0.0
    %592 = vmatprep.subr.mxu0 0.0
    %593 = vmatpush2.msra.mxu0 0.0
    %594 = vmatprep.subr.mxu0 0.0
    %595 = vmatpush2.msra.mxu0 0.0
    %596 = vmatprep.subr.mxu0 0.0
    %597 = vmatpush2.msra.mxu0 0.0
    %598 = vmatprep.subr.mxu0 0.0
    %599 = vmatpush2.msra.mxu0 0.0
    %600 = vmatprep.subr.mxu0 0.0
    %601 = vmatpush2.msra.mxu0 0.0
    %602 = vmatprep.subr.mxu0 0.0
    %603 = vmatpush2.msra.mxu0 0.0
    %604 = vmatprep.subr.mxu0 0.0
    %605 = vmatpush2.msra.mxu0 0.0
    %606 = vmatprep.subr.mxu0 0.0
    %607 = vmatpush2.msra.mxu0 0.0
    %608 = vmatprep.mubr.f32.mxu0 0.0
    %609 = vmatmul.mubr.f32.gmra.mxu0 %v476
    %v610 = vpop.f32.mrf.mxu0
    %v611 = vadd.f32 %v542, %v610
    %v612 = vpop.f32.mrf.mxu0
    %613 = vmatprep.mubr.f32.mxu0 0.0
    %614 = vmatmul.mubr.f32.gmra.mxu0 %v479
    %v615 = vpop.f32.mrf.mxu0
    %v616 = vadd.f32 %v542, %v615
    %v617 = vpop.f32.mrf.mxu0
    %618 = vmatprep.mubr.f32.mxu0 0.0
    %619 = vmatmul.mubr.f32.gmra.mxu0 %v484
    %v620 = vpop.f32.mrf.mxu0
    %v621 = vadd.f32 %v542, %v620
    %v622 = vpop.f32.mrf.mxu0
    %623 = vmatprep.mubr.f32.mxu0 0.0
    %624 = vmatmul.mubr.f32.gmra.mxu0 %v487
    %v625 = vpop.f32.mrf.mxu0
    %v626 = vadd.f32 %v542, %v625
    %v627 = vpop.f32.mrf.mxu0
    %628 = vmatprep.mubr.f32.mxu0 0.0
    %629 = vmatmul.mubr.f32.gmra.mxu0 %v492
    %v630 = vpop.f32.mrf.mxu0
    %v631 = vadd.f32 %v542, %v630
    %v632 = vpop.f32.mrf.mxu0
    %633 = vmatprep.mubr.f32.mxu0 0.0
    %634 = vmatmul.mubr.f32.gmra.mxu0 %v495
    %v635 = vpop.f32.mrf.mxu0
    %v636 = vadd.f32 %v542, %v635
    %v637 = vpop.f32.mrf.mxu0
    %638 = vmatprep.mubr.f32.mxu0 0.0
    %639 = vmatmul.mubr.f32.gmra.mxu0 %v500
    %v640 = vpop.f32.mrf.mxu0
    %v641 = vadd.f32 %v542, %v640
    %v642 = vpop.f32.mrf.mxu0
    %643 = vmatprep.mubr.f32.mxu0 0.0
    %644 = vmatmul.mubr.f32.gmra.mxu0 %v503
    %v645 = vpop.f32.mrf.mxu0
    %v646 = vadd.f32 %v542, %v645
    %v647 = vpop.f32.mrf.mxu0
    %648 = vmatprep.mubr.f32.mxu0 0.0
    %649 = vmatmul.mubr.f32.gmra.mxu0 %v508
    %v650 = vpop.f32.mrf.mxu0
    %v651 = vadd.f32 %v542, %v650
    %v652 = vpop.f32.mrf.mxu0
    %653 = vmatprep.mubr.f32.mxu0 0.0
    %654 = vmatmul.mubr.f32.gmra.mxu0 %v511
    %v655 = vpop.f32.mrf.mxu0
    %v656 = vadd.f32 %v542, %v655
    %v657 = vpop.f32.mrf.mxu0
    %658 = vmatprep.mubr.f32.mxu0 0.0
    %659 = vmatmul.mubr.f32.gmra.mxu0 %v516
    %v660 = vpop.f32.mrf.mxu0
    %v661 = vadd.f32 %v542, %v660
    %v662 = vpop.f32.mrf.mxu0
    %663 = vmatprep.mubr.f32.mxu0 0.0
    %664 = vmatmul.mubr.f32.gmra.mxu0 %v519
    %v665 = vpop.f32.mrf.mxu0
    %v666 = vadd.f32 %v542, %v665
    %v667 = vpop.f32.mrf.mxu0
    %668 = vmatprep.mubr.f32.mxu0 0.0
    %669 = vmatmul.mubr.f32.gmra.mxu0 %v524
    %v670 = vpop.f32.mrf.mxu0
    %v671 = vadd.f32 %v542, %v670
    %v672 = vpop.f32.mrf.mxu0
    %673 = vmatprep.mubr.f32.mxu0 0.0
    %674 = vmatmul.mubr.f32.gmra.mxu0 %v527
    %v675 = vpop.f32.mrf.mxu0
    %v676 = vadd.f32 %v542, %v675
    %v677 = vpop.f32.mrf.mxu0
    %678 = vmatprep.mubr.f32.mxu0 0.0
    %679 = vmatmul.mubr.f32.gmra.mxu0 %v532
    %v680 = vpop.f32.mrf.mxu0
    %v681 = vadd.f32 %v542, %v680
    %v682 = vpop.f32.mrf.mxu0
    %683 = vmatprep.mubr.f32.mxu0 0.0
    %684 = vmatmul.mubr.f32.gmra.mxu0 %v535
    %v685 = vpop.f32.mrf.mxu0
    %v686 = vadd.f32 %v542, %v685
    %v687 = vpop.f32.mrf.mxu0
    %688 = vdwg.mxu0
    %v689 = vmax.f32 %v611, 0.0
    %v690 = vmax.f32 %v616, 0.0
    %v691 = vmax.f32 %v621, 0.0
    %v692 = vmax.f32 %v626, 0.0
    %v693 = vmax.f32 %v631, 0.0
    %v694 = vmax.f32 %v636, 0.0
    %v695 = vmax.f32 %v641, 0.0
    %v696 = vmax.f32 %v646, 0.0
    %v697 = vmax.f32 %v651, 0.0
    %v698 = vmax.f32 %v656, 0.0
    %v699 = vmax.f32 %v661, 0.0
    %v700 = vmax.f32 %v666, 0.0
    %v701 = vmax.f32 %v671, 0.0
    %v702 = vmax.f32 %v676, 0.0
    %v703 = vmax.f32 %v681, 0.0
    %v704 = vmax.f32 %v686, 0.0
    %v706 = vlaneseq
    %v707 = vshrl.u32 %v706, 7
    %v708 = vsub.s32 0, %v707
    %v709 = vrot.slane %v297, %v708
    %711 = vmatprep.subr.mxu0 0.0
    %712 = vmatpush1.msra.mxu0 %v296
    %713 = vmatprep.subr.mxu0 0.0
    %714 = vmatpush1.msra.mxu0 %v295
    %715 = vmatprep.subr.mxu0 0.0
    %716 = vmatpush1.msra.mxu0 %v294
    %717 = vmatprep.subr.mxu0 0.0
    %718 = vmatpush1.msra.mxu0 %v293
    %719 = vmatprep.subr.mxu0 0.0
    %720 = vmatpush1.msra.mxu0 %v292
    %721 = vmatprep.subr.mxu0 0.0
    %722 = vmatpush1.msra.mxu0 %v291
    %723 = vmatprep.subr.mxu0 0.0
    %724 = vmatpush1.msra.mxu0 %v290
    %725 = vmatprep.subr.mxu0 0.0
    %726 = vmatpush1.msra.mxu0 %v289
    %727 = vmatprep.subr.mxu0 0.0
    %728 = vmatpush1.msra.mxu0 %v288
    %729 = vmatprep.subr.mxu0 0.0
    %730 = vmatpush1.msra.mxu0 %v287
    %731 = vmatprep.subr.mxu0 0.0
    %732 = vmatpush1.msra.mxu0 %v286
    %733 = vmatprep.subr.mxu0 0.0
    %734 = vmatpush1.msra.mxu0 %v285
    %735 = vmatprep.subr.mxu0 0.0
    %736 = vmatpush1.msra.mxu0 %v284
    %737 = vmatprep.subr.mxu0 0.0
    %738 = vmatpush1.msra.mxu0 %v283
    %739 = vmatprep.subr.mxu0 0.0
    %740 = vmatpush1.msra.mxu0 %v282
    %741 = vmatprep.subr.mxu0 0.0
    %742 = vmatpush1.msra.mxu0 %v281
    %743 = vmatprep.subr.mxu0 0.0
    %744 = vmatpush2.msra.mxu0 0.0
    %745 = vmatprep.subr.mxu0 0.0
    %746 = vmatpush2.msra.mxu0 0.0
    %747 = vmatprep.subr.mxu0 0.0
    %748 = vmatpush2.msra.mxu0 0.0
    %749 = vmatprep.subr.mxu0 0.0
    %750 = vmatpush2.msra.mxu0 0.0
    %751 = vmatprep.subr.mxu0 0.0
    %752 = vmatpush2.msra.mxu0 0.0
    %753 = vmatprep.subr.mxu0 0.0
    %754 = vmatpush2.msra.mxu0 0.0
    %755 = vmatprep.subr.mxu0 0.0
    %756 = vmatpush2.msra.mxu0 0.0
    %757 = vmatprep.subr.mxu0 0.0
    %758 = vmatpush2.msra.mxu0 0.0
    %759 = vmatprep.subr.mxu0 0.0
    %760 = vmatpush2.msra.mxu0 0.0
    %761 = vmatprep.subr.mxu0 0.0
    %762 = vmatpush2.msra.mxu0 0.0
    %763 = vmatprep.subr.mxu0 0.0
    %764 = vmatpush2.msra.mxu0 0.0
    %765 = vmatprep.subr.mxu0 0.0
    %766 = vmatpush2.msra.mxu0 0.0
    %767 = vmatprep.subr.mxu0 0.0
    %768 = vmatpush2.msra.mxu0 0.0
    %769 = vmatprep.subr.mxu0 0.0
    %770 = vmatpush2.msra.mxu0 0.0
    %771 = vmatprep.subr.mxu0 0.0
    %772 = vmatpush2.msra.mxu0 0.0
    %773 = vmatprep.subr.mxu0 0.0
    %774 = vmatpush2.msra.mxu0 0.0
    %775 = vmatprep.mubr.f32.mxu0 0.0
    %776 = vmatmul.mubr.f32.gmra.mxu0 %v689
    %v777 = vpop.f32.mrf.mxu0
    %v778 = vadd.f32 %v709, %v777
    %v779 = vpop.f32.mrf.mxu0
    %780 = vmatprep.mubr.f32.mxu0 0.0
    %781 = vmatmul.mubr.f32.gmra.mxu0 %v690
    %v782 = vpop.f32.mrf.mxu0
    %v783 = vadd.f32 %v709, %v782
    %v784 = vpop.f32.mrf.mxu0
    %785 = vmatprep.mubr.f32.mxu0 0.0
    %786 = vmatmul.mubr.f32.gmra.mxu0 %v691
    %v787 = vpop.f32.mrf.mxu0
    %v788 = vadd.f32 %v709, %v787
    %v789 = vpop.f32.mrf.mxu0
    %790 = vmatprep.mubr.f32.mxu0 0.0
    %791 = vmatmul.mubr.f32.gmra.mxu0 %v692
    %v792 = vpop.f32.mrf.mxu0
    %v793 = vadd.f32 %v709, %v792
    %v794 = vpop.f32.mrf.mxu0
    %795 = vmatprep.mubr.f32.mxu0 0.0
    %796 = vmatmul.mubr.f32.gmra.mxu0 %v693
    %v797 = vpop.f32.mrf.mxu0
    %v798 = vadd.f32 %v709, %v797
    %v799 = vpop.f32.mrf.mxu0
    %800 = vmatprep.mubr.f32.mxu0 0.0
    %801 = vmatmul.mubr.f32.gmra.mxu0 %v694
    %v802 = vpop.f32.mrf.mxu0
    %v803 = vadd.f32 %v709, %v802
    %v804 = vpop.f32.mrf.mxu0
    %805 = vmatprep.mubr.f32.mxu0 0.0
    %806 = vmatmul.mubr.f32.gmra.mxu0 %v695
    %v807 = vpop.f32.mrf.mxu0
    %v808 = vadd.f32 %v709, %v807
    %v809 = vpop.f32.mrf.mxu0
    %810 = vmatprep.mubr.f32.mxu0 0.0
    %811 = vmatmul.mubr.f32.gmra.mxu0 %v696
    %v812 = vpop.f32.mrf.mxu0
    %v813 = vadd.f32 %v709, %v812
    %v814 = vpop.f32.mrf.mxu0
    %815 = vmatprep.mubr.f32.mxu0 0.0
    %816 = vmatmul.mubr.f32.gmra.mxu0 %v697
    %v817 = vpop.f32.mrf.mxu0
    %v818 = vadd.f32 %v709, %v817
    %v819 = vpop.f32.mrf.mxu0
    %820 = vmatprep.mubr.f32.mxu0 0.0
    %821 = vmatmul.mubr.f32.gmra.mxu0 %v698
    %v822 = vpop.f32.mrf.mxu0
    %v823 = vadd.f32 %v709, %v822
    %v824 = vpop.f32.mrf.mxu0
    %825 = vmatprep.mubr.f32.mxu0 0.0
    %826 = vmatmul.mubr.f32.gmra.mxu0 %v699
    %v827 = vpop.f32.mrf.mxu0
    %v828 = vadd.f32 %v709, %v827
    %v829 = vpop.f32.mrf.mxu0
    %830 = vmatprep.mubr.f32.mxu0 0.0
    %831 = vmatmul.mubr.f32.gmra.mxu0 %v700
    %v832 = vpop.f32.mrf.mxu0
    %v833 = vadd.f32 %v709, %v832
    %v834 = vpop.f32.mrf.mxu0
    %835 = vmatprep.mubr.f32.mxu0 0.0
    %836 = vmatmul.mubr.f32.gmra.mxu0 %v701
    %v837 = vpop.f32.mrf.mxu0
    %v838 = vadd.f32 %v709, %v837
    %v839 = vpop.f32.mrf.mxu0
    %840 = vmatprep.mubr.f32.mxu0 0.0
    %841 = vmatmul.mubr.f32.gmra.mxu0 %v702
    %v842 = vpop.f32.mrf.mxu0
    %v843 = vadd.f32 %v709, %v842
    %v844 = vpop.f32.mrf.mxu0
    %845 = vmatprep.mubr.f32.mxu0 0.0
    %846 = vmatmul.mubr.f32.gmra.mxu0 %v703
    %v847 = vpop.f32.mrf.mxu0
    %v848 = vadd.f32 %v709, %v847
    %v849 = vpop.f32.mrf.mxu0
    %850 = vmatprep.mubr.f32.mxu0 0.0
    %851 = vmatmul.mubr.f32.gmra.mxu0 %v704
    %v852 = vpop.f32.mrf.mxu0
    %v853 = vadd.f32 %v709, %v852
    %v854 = vpop.f32.mrf.mxu0
    %855 = vdwg.mxu0
    %856 = vst [vmem:[#allocation3] sm:$0xff] %v778
    %857 = vst [vmem:[#allocation3 + $0x8] sm:$0xff] %v783
    %858 = vst [vmem:[#allocation3 + $0x10] sm:$0xff] %v788
    %859 = vst [vmem:[#allocation3 + $0x18] sm:$0xff] %v793
    %860 = vst [vmem:[#allocation3 + $0x20] sm:$0xff] %v798
    %861 = vst [vmem:[#allocation3 + $0x28] sm:$0xff] %v803
    %862 = vst [vmem:[#allocation3 + $0x30] sm:$0xff] %v808
    %863 = vst [vmem:[#allocation3 + $0x38] sm:$0xff] %v813
    %864 = vst [vmem:[#allocation3 + $0x40] sm:$0xff] %v818
    %865 = vst [vmem:[#allocation3 + $0x48] sm:$0xff] %v823
    %866 = vst [vmem:[#allocation3 + $0x50] sm:$0xff] %v828
    %867 = vst [vmem:[#allocation3 + $0x58] sm:$0xff] %v833
    %868 = vst [vmem:[#allocation3 + $0x60] sm:$0xff] %v838
    %869 = vst [vmem:[#allocation3 + $0x68] sm:$0xff] %v843
    %870 = vst [vmem:[#allocation3 + $0x70] sm:$0xff] %v848
    %871 = vst [vmem:[#allocation3 + $0x78] sm:$0xff] %v853
    %v872 = vld [vmem:[#allocation3] sm:$0xff]
    %v873 = vld [vmem:[#allocation3 + $0x8] sm:$0xff]
    %v874 = vld [vmem:[#allocation3 + $0x10] sm:$0xff]
    %v875 = vld [vmem:[#allocation3 + $0x18] sm:$0xff]
    %v876 = vld [vmem:[#allocation3 + $0x20] sm:$0xff]
    %v877 = vld [vmem:[#allocation3 + $0x28] sm:$0xff]
    %v878 = vld [vmem:[#allocation3 + $0x30] sm:$0xff]
    %v879 = vld [vmem:[#allocation3 + $0x38] sm:$0xff]
    %v880 = vld [vmem:[#allocation3 + $0x40] sm:$0xff]
    %v881 = vld [vmem:[#allocation3 + $0x48] sm:$0xff]
    %v882 = vld [vmem:[#allocation3 + $0x50] sm:$0xff]
    %v883 = vld [vmem:[#allocation3 + $0x58] sm:$0xff]
    %v884 = vld [vmem:[#allocation3 + $0x60] sm:$0xff]
    %v885 = vld [vmem:[#allocation3 + $0x68] sm:$0xff]
    %v886 = vld [vmem:[#allocation3 + $0x70] sm:$0xff]
    %v887 = vld [vmem:[#allocation3 + $0x78] sm:$0xff]
    %v888 = vsel %vm120, 1, 0
    %v889 = vsel %vm121, 1, 0
    %v890 = vsel %vm122, 1, 0
    %v891 = vsel %vm123, 1, 0
    %v892 = vsel %vm124, 1, 0
    %v893 = vsel %vm125, 1, 0
    %v894 = vsel %vm126, 1, 0
    %v895 = vsel %vm127, 1, 0
    %v896 = vsel %vm128, 1, 0
    %v897 = vsel %vm129, 1, 0
    %v898 = vsel %vm130, 1, 0
    %v899 = vsel %vm131, 1, 0
    %v900 = vsel %vm132, 1, 0
    %v901 = vsel %vm133, 1, 0
    %v902 = vsel %vm134, 1, 0
    %v903 = vsel %vm135, 1, 0
    %vm904 = vcmp.eq.s32.totalorder %v888, 1
    %vm905 = vcmp.eq.s32.totalorder %v889, 1
    %vm906 = vcmp.eq.s32.totalorder %v890, 1
    %vm907 = vcmp.eq.s32.totalorder %v891, 1
    %vm908 = vcmp.eq.s32.totalorder %v892, 1
    %vm909 = vcmp.eq.s32.totalorder %v893, 1
    %vm910 = vcmp.eq.s32.totalorder %v894, 1
    %vm911 = vcmp.eq.s32.totalorder %v895, 1
    %vm912 = vcmp.eq.s32.totalorder %v896, 1
    %vm913 = vcmp.eq.s32.totalorder %v897, 1
    %vm914 = vcmp.eq.s32.totalorder %v898, 1
    %vm915 = vcmp.eq.s32.totalorder %v899, 1
    %vm916 = vcmp.eq.s32.totalorder %v900, 1
    %vm917 = vcmp.eq.s32.totalorder %v901, 1
    %vm918 = vcmp.eq.s32.totalorder %v902, 1
    %vm919 = vcmp.eq.s32.totalorder %v903, 1
    %v920 = vsel %vm904, %v872, 0.0
    %v921 = vsel %vm905, %v873, 0.0
    %v922 = vsel %vm906, %v874, 0.0
    %v923 = vsel %vm907, %v875, 0.0
    %v924 = vsel %vm908, %v876, 0.0
    %v925 = vsel %vm909, %v877, 0.0
    %v926 = vsel %vm910, %v878, 0.0
    %v927 = vsel %vm911, %v879, 0.0
    %v928 = vsel %vm912, %v880, 0.0
    %v929 = vsel %vm913, %v881, 0.0
    %v930 = vsel %vm914, %v882, 0.0
    %v931 = vsel %vm915, %v883, 0.0
    %v932 = vsel %vm916, %v884, 0.0
    %v933 = vsel %vm917, %v885, 0.0
    %v934 = vsel %vm918, %v886, 0.0
    %v935 = vsel %vm919, %v887, 0.0
    %v936 = vadd.f32 %v920, %v921
    %v937 = vadd.f32 %v936, %v922
    %v938 = vadd.f32 %v937, %v923
    %v939 = vadd.f32 %v938, %v924
    %v940 = vadd.f32 %v939, %v925
    %v941 = vadd.f32 %v940, %v926
    %v942 = vadd.f32 %v941, %v927
    %v943 = vadd.f32 %v942, %v928
    %v944 = vadd.f32 %v943, %v929
    %v945 = vadd.f32 %v944, %v930
    %v946 = vadd.f32 %v945, %v931
    %v947 = vadd.f32 %v946, %v932
    %v948 = vadd.f32 %v947, %v933
    %v949 = vadd.f32 %v948, %v934
    %v950 = vadd.f32 %v949, %v935
    %v951 = vrot.slane %v950, 4
    %v952 = vadd.f32 %v950, %v951
    %v953 = vrot.slane %v952, 2
    %v954 = vadd.f32 %v952, %v953
    %v955 = vrot.slane %v954, 1
    %v956 = vadd.f32 %v954, %v955
    %v957 = vmul.f32 %v956, 0.0625
    %v958 = vsub.f32 %v872, %v957
    %v959 = vsub.f32 %v873, %v957
    %v960 = vsub.f32 %v874, %v957
    %v961 = vsub.f32 %v875, %v957
    %v962 = vsub.f32 %v876, %v957
    %v963 = vsub.f32 %v877, %v957
    %v964 = vsub.f32 %v878, %v957
    %v965 = vsub.f32 %v879, %v957
    %v966 = vsub.f32 %v880, %v957
    %v967 = vsub.f32 %v881, %v957
    %v968 = vsub.f32 %v882, %v957
    %v969 = vsub.f32 %v883, %v957
    %v970 = vsub.f32 %v884, %v957
    %v971 = vsub.f32 %v885, %v957
    %v972 = vsub.f32 %v886, %v957
    %v973 = vsub.f32 %v887, %v957
    %v974 = vmul.f32 %v958, %v958
    %v975 = vmul.f32 %v959, %v959
    %v976 = vmul.f32 %v960, %v960
    %v977 = vmul.f32 %v961, %v961
    %v978 = vmul.f32 %v962, %v962
    %v979 = vmul.f32 %v963, %v963
    %v980 = vmul.f32 %v964, %v964
    %v981 = vmul.f32 %v965, %v965
    %v982 = vmul.f32 %v966, %v966
    %v983 = vmul.f32 %v967, %v967
    %v984 = vmul.f32 %v968, %v968
    %v985 = vmul.f32 %v969, %v969
    %v986 = vmul.f32 %v970, %v970
    %v987 = vmul.f32 %v971, %v971
    %v988 = vmul.f32 %v972, %v972
    %v989 = vmul.f32 %v973, %v973
    %v990 = vsel %vm904, %v974, 0.0
    %v991 = vsel %vm905, %v975, 0.0
    %v992 = vsel %vm906, %v976, 0.0
    %v993 = vsel %vm907, %v977, 0.0
    %v994 = vsel %vm908, %v978, 0.0
    %v995 = vsel %vm909, %v979, 0.0
    %v996 = vsel %vm910, %v980, 0.0
    %v997 = vsel %vm911, %v981, 0.0
    %v998 = vsel %vm912, %v982, 0.0
    %v999 = vsel %vm913, %v983, 0.0
    %v1000 = vsel %vm914, %v984, 0.0
    %v1001 = vsel %vm915, %v985, 0.0
    %v1002 = vsel %vm916, %v986, 0.0
    %v1003 = vsel %vm917, %v987, 0.0
    %v1004 = vsel %vm918, %v988, 0.0
    %v1005 = vsel %vm919, %v989, 0.0
    %v1006 = vadd.f32 %v990, %v991
    %v1007 = vadd.f32 %v1006, %v992
    %v1008 = vadd.f32 %v1007, %v993
    %v1009 = vadd.f32 %v1008, %v994
    %v1010 = vadd.f32 %v1009, %v995
    %v1011 = vadd.f32 %v1010, %v996
    %v1012 = vadd.f32 %v1011, %v997
    %v1013 = vadd.f32 %v1012, %v998
    %v1014 = vadd.f32 %v1013, %v999
    %v1015 = vadd.f32 %v1014, %v1000
    %v1016 = vadd.f32 %v1015, %v1001
    %v1017 = vadd.f32 %v1016, %v1002
    %v1018 = vadd.f32 %v1017, %v1003
    %v1019 = vadd.f32 %v1018, %v1004
    %v1020 = vadd.f32 %v1019, %v1005
    %v1021 = vrot.slane %v1020, 4
    %v1022 = vadd.f32 %v1020, %v1021
    %v1023 = vrot.slane %v1022, 2
    %v1024 = vadd.f32 %v1022, %v1023
    %v1025 = vrot.slane %v1024, 1
    %v1026 = vadd.f32 %v1024, %v1025
    %v1027 = vmul.f32 %v1026, 0.0625
    %v1028 = vadd.f32 %v1027, 1e-05
    %v1029 = vrsqrt.pop %v1028
    %v1030 = vmul.f32 %v958, %v1029
    %v1031 = vmul.f32 %v959, %v1029
    %v1032 = vmul.f32 %v960, %v1029
    %v1033 = vmul.f32 %v961, %v1029
    %v1034 = vmul.f32 %v962, %v1029
    %v1035 = vmul.f32 %v963, %v1029
    %v1036 = vmul.f32 %v964, %v1029
    %v1037 = vmul.f32 %v965, %v1029
    %v1038 = vmul.f32 %v966, %v1029
    %v1039 = vmul.f32 %v967, %v1029
    %v1040 = vmul.f32 %v968, %v1029
    %v1041 = vmul.f32 %v969, %v1029
    %v1042 = vmul.f32 %v970, %v1029
    %v1043 = vmul.f32 %v971, %v1029
    %v1044 = vmul.f32 %v972, %v1029
    %v1045 = vmul.f32 %v973, %v1029
    %v1046 = vld [vmem:[#allocation13] sm:$0x1]
    %v1048 = vlaneseq
    %v1049 = vshrl.u32 %v1048, 7
    %v1050 = vsub.s32 0, %v1049
    %v1051 = vrot.slane %v1046, %v1050
    %v1053 = vmul.f32 %v1030, %v1051
    %v1054 = vmul.f32 %v1031, %v1051
    %v1055 = vmul.f32 %v1032, %v1051
    %v1056 = vmul.f32 %v1033, %v1051
    %v1057 = vmul.f32 %v1034, %v1051
    %v1058 = vmul.f32 %v1035, %v1051
    %v1059 = vmul.f32 %v1036, %v1051
    %v1060 = vmul.f32 %v1037, %v1051
    %v1061 = vmul.f32 %v1038, %v1051
    %v1062 = vmul.f32 %v1039, %v1051
    %v1063 = vmul.f32 %v1040, %v1051
    %v1064 = vmul.f32 %v1041, %v1051
    %v1065 = vmul.f32 %v1042, %v1051
    %v1066 = vmul.f32 %v1043, %v1051
    %v1067 = vmul.f32 %v1044, %v1051
    %v1068 = vmul.f32 %v1045, %v1051
    %v1069 = vld [vmem:[%s7] sm:$0x1]
    %v1071 = vlaneseq
    %v1072 = vshrl.u32 %v1071, 7
    %v1073 = vsub.s32 0, %v1072
    %v1074 = vrot.slane %v1069, %v1073
    %v1076 = vadd.f32 %v1053, %v1074
    %v1077 = vadd.f32 %v1054, %v1074
    %v1078 = vadd.f32 %v1055, %v1074
    %v1079 = vadd.f32 %v1056, %v1074
    %v1080 = vadd.f32 %v1057, %v1074
    %v1081 = vadd.f32 %v1058, %v1074
    %v1082 = vadd.f32 %v1059, %v1074
    %v1083 = vadd.f32 %v1060, %v1074
    %v1084 = vadd.f32 %v1061, %v1074
    %v1085 = vadd.f32 %v1062, %v1074
    %v1086 = vadd.f32 %v1063, %v1074
    %v1087 = vadd.f32 %v1064, %v1074
    %v1088 = vadd.f32 %v1065, %v1074
    %v1089 = vadd.f32 %v1066, %v1074
    %v1090 = vadd.f32 %v1067, %v1074
    %v1091 = vadd.f32 %v1068, %v1074
    %v1092 = vmax.f32 %v1076, 0.0
    %v1093 = vmax.f32 %v1077, 0.0
    %v1094 = vmax.f32 %v1078, 0.0
    %v1095 = vmax.f32 %v1079, 0.0
    %v1096 = vmax.f32 %v1080, 0.0
    %v1097 = vmax.f32 %v1081, 0.0
    %v1098 = vmax.f32 %v1082, 0.0
    %v1099 = vmax.f32 %v1083, 0.0
    %v1100 = vmax.f32 %v1084, 0.0
    %v1101 = vmax.f32 %v1085, 0.0
    %v1102 = vmax.f32 %v1086, 0.0
    %v1103 = vmax.f32 %v1087, 0.0
    %v1104 = vmax.f32 %v1088, 0.0
    %v1105 = vmax.f32 %v1089, 0.0
    %v1106 = vmax.f32 %v1090, 0.0
    %v1107 = vmax.f32 %v1091, 0.0
    %v1108 = vsel %vm904, %v1092, 0.0
    %v1109 = vsel %vm905, %v1093, 0.0
    %v1110 = vsel %vm906, %v1094, 0.0
    %v1111 = vsel %vm907, %v1095, 0.0
    %v1112 = vsel %vm908, %v1096, 0.0
    %v1113 = vsel %vm909, %v1097, 0.0
    %v1114 = vsel %vm910, %v1098, 0.0
    %v1115 = vsel %vm911, %v1099, 0.0
    %v1116 = vsel %vm912, %v1100, 0.0
    %v1117 = vsel %vm913, %v1101, 0.0
    %v1118 = vsel %vm914, %v1102, 0.0
    %v1119 = vsel %vm915, %v1103, 0.0
    %v1120 = vsel %vm916, %v1104, 0.0
    %v1121 = vsel %vm917, %v1105, 0.0
    %v1122 = vsel %vm918, %v1106, 0.0
    %v1123 = vsel %vm919, %v1107, 0.0
    %1124 = vst [vmem:[#allocation2] sm:$0xff] %v1108
    %1125 = vst [vmem:[#allocation2 + $0x8] sm:$0xff] %v1109
    %1126 = vst [vmem:[#allocation2 + $0x10] sm:$0xff] %v1110
    %1127 = vst [vmem:[#allocation2 + $0x18] sm:$0xff] %v1111
    %1128 = vst [vmem:[#allocation2 + $0x20] sm:$0xff] %v1112
    %1129 = vst [vmem:[#allocation2 + $0x28] sm:$0xff] %v1113
    %1130 = vst [vmem:[#allocation2 + $0x30] sm:$0xff] %v1114
    %1131 = vst [vmem:[#allocation2 + $0x38] sm:$0xff] %v1115
    %1132 = vst [vmem:[#allocation2 + $0x40] sm:$0xff] %v1116
    %1133 = vst [vmem:[#allocation2 + $0x48] sm:$0xff] %v1117
    %1134 = vst [vmem:[#allocation2 + $0x50] sm:$0xff] %v1118
    %1135 = vst [vmem:[#allocation2 + $0x58] sm:$0xff] %v1119
    %1136 = vst [vmem:[#allocation2 + $0x60] sm:$0xff] %v1120
    %1137 = vst [vmem:[#allocation2 + $0x68] sm:$0xff] %v1121
    %1138 = vst [vmem:[#allocation2 + $0x70] sm:$0xff] %v1122
    %1139 = vst [vmem:[#allocation2 + $0x78] sm:$0xff] %v1123
    %v1140 = vld [vmem:[#allocation2] sm:$0xff]
    %v1141 = vld [vmem:[#allocation2 + $0x8] sm:$0xff]
    %v1142 = vld [vmem:[#allocation2 + $0x10] sm:$0xff]
    %v1143 = vld [vmem:[#allocation2 + $0x18] sm:$0xff]
    %v1144 = vld [vmem:[#allocation2 + $0x20] sm:$0xff]
    %v1145 = vld [vmem:[#allocation2 + $0x28] sm:$0xff]
    %v1146 = vld [vmem:[#allocation2 + $0x30] sm:$0xff]
    %v1147 = vld [vmem:[#allocation2 + $0x38] sm:$0xff]
    %v1148 = vld [vmem:[#allocation2 + $0x40] sm:$0xff]
    %v1149 = vld [vmem:[#allocation2 + $0x48] sm:$0xff]
    %v1150 = vld [vmem:[#allocation2 + $0x50] sm:$0xff]
    %v1151 = vld [vmem:[#allocation2 + $0x58] sm:$0xff]
    %v1152 = vld [vmem:[#allocation2 + $0x60] sm:$0xff]
    %v1153 = vld [vmem:[#allocation2 + $0x68] sm:$0xff]
    %v1154 = vld [vmem:[#allocation2 + $0x70] sm:$0xff]
    %v1155 = vld [vmem:[#allocation2 + $0x78] sm:$0xff]
    %v1156 = vpack.c.bf16 %v1141, %v1140
    %v1157 = vpack.c.bf16 %v1143, %v1142
    %v1158 = vpack.c.bf16 %v1145, %v1144
    %v1159 = vpack.c.bf16 %v1147, %v1146
    %v1160 = vpack.c.bf16 %v1149, %v1148
    %v1161 = vpack.c.bf16 %v1151, %v1150
    %v1162 = vpack.c.bf16 %v1153, %v1152
    %v1163 = vpack.c.bf16 %v1155, %v1154
    %v1172 = vunpack.c.l.b16 %v1156
    %v1173 = vunpack.c.h.b16 %v1156
    %v1174 = vunpack.c.l.b16 %v1157
    %v1175 = vunpack.c.h.b16 %v1157
    %v1176 = vunpack.c.l.b16 %v1158
    %v1177 = vunpack.c.h.b16 %v1158
    %v1178 = vunpack.c.l.b16 %v1159
    %v1179 = vunpack.c.h.b16 %v1159
    %v1180 = vunpack.c.l.b16 %v1160
    %v1181 = vunpack.c.h.b16 %v1160
    %v1182 = vunpack.c.l.b16 %v1161
    %v1183 = vunpack.c.h.b16 %v1161
    %v1184 = vunpack.c.l.b16 %v1162
    %v1185 = vunpack.c.h.b16 %v1162
    %v1186 = vunpack.c.l.b16 %v1163
    %v1187 = vunpack.c.h.b16 %v1163
    %v1188 = vpack.c.b16 %v1172, %v1172
    %v1189 = vpack.c.b16 %v1173, %v1173
    %v1190 = vpack.c.b16 %v1174, %v1174
    %v1191 = vpack.c.b16 %v1175, %v1175
    %v1192 = vpack.c.b16 %v1176, %v1176
    %v1193 = vpack.c.b16 %v1177, %v1177
    %v1194 = vpack.c.b16 %v1178, %v1178
    %v1195 = vpack.c.b16 %v1179, %v1179
    %v1196 = vpack.c.b16 %v1180, %v1180
    %v1197 = vpack.c.b16 %v1181, %v1181
    %v1198 = vpack.c.b16 %v1182, %v1182
    %v1199 = vpack.c.b16 %v1183, %v1183
    %v1200 = vpack.c.b16 %v1184, %v1184
    %v1201 = vpack.c.b16 %v1185, %v1185
    %v1202 = vpack.c.b16 %v1186, %v1186
    %v1203 = vpack.c.b16 %v1187, %v1187
    %1220 = vst [vmem:[#allocation4] sm:$0xf] %v1188
    %1221 = vst [vmem:[#allocation4 + $0x4] sm:$0xf] %v1189
    %1222 = vst [vmem:[#allocation4 + $0x8] sm:$0xf] %v1190
    %1223 = vst [vmem:[#allocation4 + $0xc] sm:$0xf] %v1191
    %1224 = vst [vmem:[#allocation4 + $0x10] sm:$0xf] %v1192
    %1225 = vst [vmem:[#allocation4 + $0x14] sm:$0xf] %v1193
    %1226 = vst [vmem:[#allocation4 + $0x18] sm:$0xf] %v1194
    %1227 = vst [vmem:[#allocation4 + $0x1c] sm:$0xf] %v1195
    %1228 = vst [vmem:[#allocation4 + $0x20] sm:$0xf] %v1196
    %1229 = vst [vmem:[#allocation4 + $0x24] sm:$0xf] %v1197
    %1230 = vst [vmem:[#allocation4 + $0x28] sm:$0xf] %v1198
    %1231 = vst [vmem:[#allocation4 + $0x2c] sm:$0xf] %v1199
    %1232 = vst [vmem:[#allocation4 + $0x30] sm:$0xf] %v1200
    %1233 = vst [vmem:[#allocation4 + $0x34] sm:$0xf] %v1201
    %1234 = vst [vmem:[#allocation4 + $0x38] sm:$0xf] %v1202
    %1235 = vst [vmem:[#allocation4 + $0x3c] sm:$0xf] %v1203
    %s1236 = scalar_lea.vmem [#allocation10], 128
    %v1237 = vld [vmem:[%s1236] sm:$0xff]
    %v1238 = vld [vmem:[%s1236 + $0x8] sm:$0xff]
    %v1239 = vld [vmem:[%s1236 + $0x10] sm:$0xff]
    %v1240 = vld [vmem:[%s1236 + $0x18] sm:$0xff]
    %v1241 = vld [vmem:[%s1236 + $0x20] sm:$0xff]
    %v1242 = vld [vmem:[%s1236 + $0x28] sm:$0xff]
    %v1243 = vld [vmem:[%s1236 + $0x30] sm:$0xff]
    %v1244 = vld [vmem:[%s1236 + $0x38] sm:$0xff]
    %v1245 = vld [vmem:[%s1236 + $0x40] sm:$0xff]
    %v1246 = vld [vmem:[%s1236 + $0x48] sm:$0xff]
    %v1247 = vld [vmem:[%s1236 + $0x50] sm:$0xff]
    %v1248 = vld [vmem:[%s1236 + $0x58] sm:$0xff]
    %v1249 = vld [vmem:[%s1236 + $0x60] sm:$0xff]
    %v1250 = vld [vmem:[%s1236 + $0x68] sm:$0xff]
    %v1251 = vld [vmem:[%s1236 + $0x70] sm:$0xff]
    %v1252 = vld [vmem:[%s1236 + $0x78] sm:$0xff]
    %s1253 = scalar_lea.vmem %s3, 1
    %v1254 = vld [vmem:[%s1253] sm:$0x1]
    %s1255 = scalar_lea.vmem [#allocation12], 128
    %v1256 = vld [vmem:[%s1255] sm:$0xff]
    %v1257 = vld [vmem:[%s1255 + $0x8] sm:$0xff]
    %v1258 = vld [vmem:[%s1255 + $0x10] sm:$0xff]
    %v1259 = vld [vmem:[%s1255 + $0x18] sm:$0xff]
    %v1260 = vld [vmem:[%s1255 + $0x20] sm:$0xff]
    %v1261 = vld [vmem:[%s1255 + $0x28] sm:$0xff]
    %v1262 = vld [vmem:[%s1255 + $0x30] sm:$0xff]
    %v1263 = vld [vmem:[%s1255 + $0x38] sm:$0xff]
    %v1264 = vld [vmem:[%s1255 + $0x40] sm:$0xff]
    %v1265 = vld [vmem:[%s1255 + $0x48] sm:$0xff]
    %v1266 = vld [vmem:[%s1255 + $0x50] sm:$0xff]
    %v1267 = vld [vmem:[%s1255 + $0x58] sm:$0xff]
    %v1268 = vld [vmem:[%s1255 + $0x60] sm:$0xff]
    %v1269 = vld [vmem:[%s1255 + $0x68] sm:$0xff]
    %v1270 = vld [vmem:[%s1255 + $0x70] sm:$0xff]
    %v1271 = vld [vmem:[%s1255 + $0x78] sm:$0xff]
    %s1272 = scalar_lea.vmem %s5, 1
    %v1273 = vld [vmem:[%s1272] sm:$0x1]
    // Predicated region
    $region62: #{tpu_custom_call.1} parent=1 // pred_check
      _
    $region63: #{tpu_custom_call.1} parent=1 // pred_check_branch
      %1275 = sbr.rel target = $region65
    $region64: #{tpu_custom_call.1} parent=1 // pred_region
      %1276 = sst [smem:[#allocation19]] [#allocation22]
      %1277 = sst [smem:[#allocation20]] [#allocation21]
    $region65: #{tpu_custom_call.1} parent=1 // pred_fallthru
      _
    %1279 = shalt.err (0)
    %s1281 = sshll.u32 [#allocation5], 4
    %s1282 = int_to_ptr.vmem [resolvable:$true] %s1281
    %1284 = dma.hbm_to_vmem [thread:$0]  %s0, 1024, %s1282, [#allocation6]
    %s1285 = sshll.u32 %s310, 4
    %1286 = dma.done [#allocation6], %s1285
    %v1287 = vld [vmem:[#allocation5] sm:$0xf]
    %v1288 = vld [vmem:[#allocation5 + $0x4] sm:$0xf]
    %v1289 = vld [vmem:[#allocation5 + $0x8] sm:$0xf]
    %v1290 = vld [vmem:[#allocation5 + $0xc] sm:$0xf]
    %v1291 = vld [vmem:[#allocation5 + $0x10] sm:$0xf]
    %v1292 = vld [vmem:[#allocation5 + $0x14] sm:$0xf]
    %v1293 = vld [vmem:[#allocation5 + $0x18] sm:$0xf]
    %v1294 = vld [vmem:[#allocation5 + $0x1c] sm:$0xf]
    %v1295 = vld [vmem:[#allocation5 + $0x20] sm:$0xf]
    %v1296 = vld [vmem:[#allocation5 + $0x24] sm:$0xf]
    %v1297 = vld [vmem:[#allocation5 + $0x28] sm:$0xf]
    %v1298 = vld [vmem:[#allocation5 + $0x2c] sm:$0xf]
    %v1299 = vld [vmem:[#allocation5 + $0x30] sm:$0xf]
    %v1300 = vld [vmem:[#allocation5 + $0x34] sm:$0xf]
    %v1301 = vld [vmem:[#allocation5 + $0x38] sm:$0xf]
    %v1302 = vld [vmem:[#allocation5 + $0x3c] sm:$0xf]
    %v1303 = vld [vmem:[#allocation4] sm:$0xf]
    %v1304 = vld [vmem:[#allocation4 + $0x4] sm:$0xf]
    %v1305 = vld [vmem:[#allocation4 + $0x8] sm:$0xf]
    %v1306 = vld [vmem:[#allocation4 + $0xc] sm:$0xf]
    %v1307 = vld [vmem:[#allocation4 + $0x10] sm:$0xf]
    %v1308 = vld [vmem:[#allocation4 + $0x14] sm:$0xf]
    %v1309 = vld [vmem:[#allocation4 + $0x18] sm:$0xf]
    %v1310 = vld [vmem:[#allocation4 + $0x1c] sm:$0xf]
    %v1311 = vld [vmem:[#allocation4 + $0x20] sm:$0xf]
    %v1312 = vld [vmem:[#allocation4 + $0x24] sm:$0xf]
    %v1313 = vld [vmem:[#allocation4 + $0x28] sm:$0xf]
    %v1314 = vld [vmem:[#allocation4 + $0x2c] sm:$0xf]
    %v1315 = vld [vmem:[#allocation4 + $0x30] sm:$0xf]
    %v1316 = vld [vmem:[#allocation4 + $0x34] sm:$0xf]
    %v1317 = vld [vmem:[#allocation4 + $0x38] sm:$0xf]
    %v1318 = vld [vmem:[#allocation4 + $0x3c] sm:$0xf]
    %v1335 = vunpack.c.l.b16 %v1287
    %v1336 = vunpack.c.l.b16 %v1288
    %v1337 = vunpack.c.l.b16 %v1289
    %v1338 = vunpack.c.l.b16 %v1290
    %v1339 = vunpack.c.l.b16 %v1291
    %v1340 = vunpack.c.l.b16 %v1292
    %v1341 = vunpack.c.l.b16 %v1293
    %v1342 = vunpack.c.l.b16 %v1294
    %v1343 = vunpack.c.l.b16 %v1295
    %v1344 = vunpack.c.l.b16 %v1296
    %v1345 = vunpack.c.l.b16 %v1297
    %v1346 = vunpack.c.l.b16 %v1298
    %v1347 = vunpack.c.l.b16 %v1299
    %v1348 = vunpack.c.l.b16 %v1300
    %v1349 = vunpack.c.l.b16 %v1301
    %v1350 = vunpack.c.l.b16 %v1302
    %v1351 = vpack.c.b16 %v1336, %v1335
    %v1352 = vpack.c.b16 %v1338, %v1337
    %v1353 = vpack.c.b16 %v1340, %v1339
    %v1354 = vpack.c.b16 %v1342, %v1341
    %v1355 = vpack.c.b16 %v1344, %v1343
    %v1356 = vpack.c.b16 %v1346, %v1345
    %v1357 = vpack.c.b16 %v1348, %v1347
    %v1358 = vpack.c.b16 %v1350, %v1349
    %v1383 = vunpack.c.l.b16 %v1303
    %v1384 = vunpack.c.l.b16 %v1304
    %v1385 = vunpack.c.l.b16 %v1305
    %v1386 = vunpack.c.l.b16 %v1306
    %v1387 = vunpack.c.l.b16 %v1307
    %v1388 = vunpack.c.l.b16 %v1308
    %v1389 = vunpack.c.l.b16 %v1309
    %v1390 = vunpack.c.l.b16 %v1310
    %v1391 = vunpack.c.l.b16 %v1311
    %v1392 = vunpack.c.l.b16 %v1312
    %v1393 = vunpack.c.l.b16 %v1313
    %v1394 = vunpack.c.l.b16 %v1314
    %v1395 = vunpack.c.l.b16 %v1315
    %v1396 = vunpack.c.l.b16 %v1316
    %v1397 = vunpack.c.l.b16 %v1317
    %v1398 = vunpack.c.l.b16 %v1318
    %v1399 = vpack.c.b16 %v1384, %v1383
    %v1400 = vpack.c.b16 %v1386, %v1385
    %v1401 = vpack.c.b16 %v1388, %v1387
    %v1402 = vpack.c.b16 %v1390, %v1389
    %v1403 = vpack.c.b16 %v1392, %v1391
    %v1404 = vpack.c.b16 %v1394, %v1393
    %v1405 = vpack.c.b16 %v1396, %v1395
    %v1406 = vpack.c.b16 %v1398, %v1397
    %1415 = vmatprep.subr.bf16.mxu0 0
    %1416 = vmatpush1.bf16.msra.mxu0 %v1406
    %1417 = vmatprep.subr.bf16.mxu0 0
    %1418 = vmatpush1.bf16.msra.mxu0 %v1405
    %1419 = vmatprep.subr.bf16.mxu0 0
    %1420 = vmatpush1.bf16.msra.mxu0 %v1404
    %1421 = vmatprep.subr.bf16.mxu0 0
    %1422 = vmatpush1.bf16.msra.mxu0 %v1403
    %1423 = vmatprep.subr.bf16.mxu0 0
    %1424 = vmatpush1.bf16.msra.mxu0 %v1402
    %1425 = vmatprep.subr.bf16.mxu0 0
    %1426 = vmatpush1.bf16.msra.mxu0 %v1401
    %1427 = vmatprep.subr.bf16.mxu0 0
    %1428 = vmatpush1.bf16.msra.mxu0 %v1400
    %1429 = vmatprep.subr.bf16.mxu0 0
    %1430 = vmatpush1.bf16.msra.mxu0 %v1399
    %1431 = vmatprep.subr.bf16.mxu0 0
    %1432 = vmatpush2.bf16.msra.mxu0 0
    %1433 = vmatprep.subr.bf16.mxu0 0
    %1434 = vmatpush2.bf16.msra.mxu0 0
    %1435 = vmatprep.subr.bf16.mxu0 0
    %1436 = vmatpush2.bf16.msra.mxu0 0
    %1437 = vmatprep.subr.bf16.mxu0 0
    %1438 = vmatpush2.bf16.msra.mxu0 0
    %1439 = vmatprep.subr.bf16.mxu0 0
    %1440 = vmatpush2.bf16.msra.mxu0 0
    %1441 = vmatprep.subr.bf16.mxu0 0
    %1442 = vmatpush2.bf16.msra.mxu0 0
    %1443 = vmatprep.subr.bf16.mxu0 0
    %1444 = vmatpush2.bf16.msra.mxu0 0
    %1445 = vmatprep.subr.bf16.mxu0 0
    %1446 = vmatpush2.bf16.msra.mxu0 0
    %1447 = vmatprep.mubr.bf16.mxu0 0
    %1448 = vmatmul.mubr.bf16.gmra.mxu0 %v1351
    %v1449 = vpop.f32.mrf.mxu0
    %v1450 = vadd.f32 0.0, %v1449
    %v1451 = vpop.f32.mrf.mxu0
    %v1452 = vpop.f32.mrf.mxu0
    %v1453 = vadd.f32 0.0, %v1452
    %v1454 = vpop.f32.mrf.mxu0
    %1455 = vmatprep.mubr.bf16.mxu0 0
    %1456 = vmatmul.mubr.bf16.gmra.mxu0 %v1352
    %v1457 = vpop.f32.mrf.mxu0
    %v1458 = vadd.f32 0.0, %v1457
    %v1459 = vpop.f32.mrf.mxu0
    %v1460 = vpop.f32.mrf.mxu0
    %v1461 = vadd.f32 0.0, %v1460
    %v1462 = vpop.f32.mrf.mxu0
    %1463 = vmatprep.mubr.bf16.mxu0 0
    %1464 = vmatmul.mubr.bf16.gmra.mxu0 %v1353
    %v1465 = vpop.f32.mrf.mxu0
    %v1466 = vadd.f32 0.0, %v1465
    %v1467 = vpop.f32.mrf.mxu0
    %v1468 = vpop.f32.mrf.mxu0
    %v1469 = vadd.f32 0.0, %v1468
    %v1470 = vpop.f32.mrf.mxu0
    %1471 = vmatprep.mubr.bf16.mxu0 0
    %1472 = vmatmul.mubr.bf16.gmra.mxu0 %v1354
    %v1473 = vpop.f32.mrf.mxu0
    %v1474 = vadd.f32 0.0, %v1473
    %v1475 = vpop.f32.mrf.mxu0
    %v1476 = vpop.f32.mrf.mxu0
    %v1477 = vadd.f32 0.0, %v1476
    %v1478 = vpop.f32.mrf.mxu0
    %1479 = vmatprep.mubr.bf16.mxu0 0
    %1480 = vmatmul.mubr.bf16.gmra.mxu0 %v1355
    %v1481 = vpop.f32.mrf.mxu0
    %v1482 = vadd.f32 0.0, %v1481
    %v1483 = vpop.f32.mrf.mxu0
    %v1484 = vpop.f32.mrf.mxu0
    %v1485 = vadd.f32 0.0, %v1484
    %v1486 = vpop.f32.mrf.mxu0
    %1487 = vmatprep.mubr.bf16.mxu0 0
    %1488 = vmatmul.mubr.bf16.gmra.mxu0 %v1356
    %v1489 = vpop.f32.mrf.mxu0
    %v1490 = vadd.f32 0.0, %v1489
    %v1491 = vpop.f32.mrf.mxu0
    %v1492 = vpop.f32.mrf.mxu0
    %v1493 = vadd.f32 0.0, %v1492
    %v1494 = vpop.f32.mrf.mxu0
    %1495 = vmatprep.mubr.bf16.mxu0 0
    %1496 = vmatmul.mubr.bf16.gmra.mxu0 %v1357
    %v1497 = vpop.f32.mrf.mxu0
    %v1498 = vadd.f32 0.0, %v1497
    %v1499 = vpop.f32.mrf.mxu0
    %v1500 = vpop.f32.mrf.mxu0
    %v1501 = vadd.f32 0.0, %v1500
    %v1502 = vpop.f32.mrf.mxu0
    %1503 = vmatprep.mubr.bf16.mxu0 0
    %1504 = vmatmul.mubr.bf16.gmra.mxu0 %v1358
    %v1505 = vpop.f32.mrf.mxu0
    %v1506 = vadd.f32 0.0, %v1505
    %v1507 = vpop.f32.mrf.mxu0
    %v1508 = vpop.f32.mrf.mxu0
    %v1509 = vadd.f32 0.0, %v1508
    %v1510 = vpop.f32.mrf.mxu0
    %1511 = vdwg.mxu0
    %v1513 = vlaneseq
    %v1514 = vshrl.u32 %v1513, 7
    %v1515 = vsub.s32 0, %v1514
    %v1516 = vrot.slane %v1254, %v1515
    %1518 = vmatprep.subr.mxu0 0.0
    %1519 = vmatpush1.msra.mxu0 %v1252
    %1520 = vmatprep.subr.mxu0 0.0
    %1521 = vmatpush1.msra.mxu0 %v1251
    %1522 = vmatprep.subr.mxu0 0.0
    %1523 = vmatpush1.msra.mxu0 %v1250
    %1524 = vmatprep.subr.mxu0 0.0
    %1525 = vmatpush1.msra.mxu0 %v1249
    %1526 = vmatprep.subr.mxu0 0.0
    %1527 = vmatpush1.msra.mxu0 %v1248
    %1528 = vmatprep.subr.mxu0 0.0
    %1529 = vmatpush1.msra.mxu0 %v1247
    %1530 = vmatprep.subr.mxu0 0.0
    %1531 = vmatpush1.msra.mxu0 %v1246
    %1532 = vmatprep.subr.mxu0 0.0
    %1533 = vmatpush1.msra.mxu0 %v1245
    %1534 = vmatprep.subr.mxu0 0.0
    %1535 = vmatpush1.msra.mxu0 %v1244
    %1536 = vmatprep.subr.mxu0 0.0
    %1537 = vmatpush1.msra.mxu0 %v1243
    %1538 = vmatprep.subr.mxu0 0.0
    %1539 = vmatpush1.msra.mxu0 %v1242
    %1540 = vmatprep.subr.mxu0 0.0
    %1541 = vmatpush1.msra.mxu0 %v1241
    %1542 = vmatprep.subr.mxu0 0.0
    %1543 = vmatpush1.msra.mxu0 %v1240
    %1544 = vmatprep.subr.mxu0 0.0
    %1545 = vmatpush1.msra.mxu0 %v1239
    %1546 = vmatprep.subr.mxu0 0.0
    %1547 = vmatpush1.msra.mxu0 %v1238
    %1548 = vmatprep.subr.mxu0 0.0
    %1549 = vmatpush1.msra.mxu0 %v1237
    %1550 = vmatprep.subr.mxu0 0.0
    %1551 = vmatpush2.msra.mxu0 0.0
    %1552 = vmatprep.subr.mxu0 0.0
    %1553 = vmatpush2.msra.mxu0 0.0
    %1554 = vmatprep.subr.mxu0 0.0
    %1555 = vmatpush2.msra.mxu0 0.0
    %1556 = vmatprep.subr.mxu0 0.0
    %1557 = vmatpush2.msra.mxu0 0.0
    %1558 = vmatprep.subr.mxu0 0.0
    %1559 = vmatpush2.msra.mxu0 0.0
    %1560 = vmatprep.subr.mxu0 0.0
    %1561 = vmatpush2.msra.mxu0 0.0
    %1562 = vmatprep.subr.mxu0 0.0
    %1563 = vmatpush2.msra.mxu0 0.0
    %1564 = vmatprep.subr.mxu0 0.0
    %1565 = vmatpush2.msra.mxu0 0.0
    %1566 = vmatprep.subr.mxu0 0.0
    %1567 = vmatpush2.msra.mxu0 0.0
    %1568 = vmatprep.subr.mxu0 0.0
    %1569 = vmatpush2.msra.mxu0 0.0
    %1570 = vmatprep.subr.mxu0 0.0
    %1571 = vmatpush2.msra.mxu0 0.0
    %1572 = vmatprep.subr.mxu0 0.0
    %1573 = vmatpush2.msra.mxu0 0.0
    %1574 = vmatprep.subr.mxu0 0.0
    %1575 = vmatpush2.msra.mxu0 0.0
    %1576 = vmatprep.subr.mxu0 0.0
    %1577 = vmatpush2.msra.mxu0 0.0
    %1578 = vmatprep.subr.mxu0 0.0
    %1579 = vmatpush2.msra.mxu0 0.0
    %1580 = vmatprep.subr.mxu0 0.0
    %1581 = vmatpush2.msra.mxu0 0.0
    %1582 = vmatprep.mubr.f32.mxu0 0.0
    %1583 = vmatmul.mubr.f32.gmra.mxu0 %v1450
    %v1584 = vpop.f32.mrf.mxu0
    %v1585 = vadd.f32 %v1516, %v1584
    %v1586 = vpop.f32.mrf.mxu0
    %1587 = vmatprep.mubr.f32.mxu0 0.0
    %1588 = vmatmul.mubr.f32.gmra.mxu0 %v1453
    %v1589 = vpop.f32.mrf.mxu0
    %v1590 = vadd.f32 %v1516, %v1589
    %v1591 = vpop.f32.mrf.mxu0
    %1592 = vmatprep.mubr.f32.mxu0 0.0
    %1593 = vmatmul.mubr.f32.gmra.mxu0 %v1458
    %v1594 = vpop.f32.mrf.mxu0
    %v1595 = vadd.f32 %v1516, %v1594
    %v1596 = vpop.f32.mrf.mxu0
    %1597 = vmatprep.mubr.f32.mxu0 0.0
    %1598 = vmatmul.mubr.f32.gmra.mxu0 %v1461
    %v1599 = vpop.f32.mrf.mxu0
    %v1600 = vadd.f32 %v1516, %v1599
    %v1601 = vpop.f32.mrf.mxu0
    %1602 = vmatprep.mubr.f32.mxu0 0.0
    %1603 = vmatmul.mubr.f32.gmra.mxu0 %v1466
    %v1604 = vpop.f32.mrf.mxu0
    %v1605 = vadd.f32 %v1516, %v1604
    %v1606 = vpop.f32.mrf.mxu0
    %1607 = vmatprep.mubr.f32.mxu0 0.0
    %1608 = vmatmul.mubr.f32.gmra.mxu0 %v1469
    %v1609 = vpop.f32.mrf.mxu0
    %v1610 = vadd.f32 %v1516, %v1609
    %v1611 = vpop.f32.mrf.mxu0
    %1612 = vmatprep.mubr.f32.mxu0 0.0
    %1613 = vmatmul.mubr.f32.gmra.mxu0 %v1474
    %v1614 = vpop.f32.mrf.mxu0
    %v1615 = vadd.f32 %v1516, %v1614
    %v1616 = vpop.f32.mrf.mxu0
    %1617 = vmatprep.mubr.f32.mxu0 0.0
    %1618 = vmatmul.mubr.f32.gmra.mxu0 %v1477
    %v1619 = vpop.f32.mrf.mxu0
    %v1620 = vadd.f32 %v1516, %v1619
    %v1621 = vpop.f32.mrf.mxu0
    %1622 = vmatprep.mubr.f32.mxu0 0.0
    %1623 = vmatmul.mubr.f32.gmra.mxu0 %v1482
    %v1624 = vpop.f32.mrf.mxu0
    %v1625 = vadd.f32 %v1516, %v1624
    %v1626 = vpop.f32.mrf.mxu0
    %1627 = vmatprep.mubr.f32.mxu0 0.0
    %1628 = vmatmul.mubr.f32.gmra.mxu0 %v1485
    %v1629 = vpop.f32.mrf.mxu0
    %v1630 = vadd.f32 %v1516, %v1629
    %v1631 = vpop.f32.mrf.mxu0
    %1632 = vmatprep.mubr.f32.mxu0 0.0
    %1633 = vmatmul.mubr.f32.gmra.mxu0 %v1490
    %v1634 = vpop.f32.mrf.mxu0
    %v1635 = vadd.f32 %v1516, %v1634
    %v1636 = vpop.f32.mrf.mxu0
    %1637 = vmatprep.mubr.f32.mxu0 0.0
    %1638 = vmatmul.mubr.f32.gmra.mxu0 %v1493
    %v1639 = vpop.f32.mrf.mxu0
    %v1640 = vadd.f32 %v1516, %v1639
    %v1641 = vpop.f32.mrf.mxu0
    %1642 = vmatprep.mubr.f32.mxu0 0.0
    %1643 = vmatmul.mubr.f32.gmra.mxu0 %v1498
    %v1644 = vpop.f32.mrf.mxu0
    %v1645 = vadd.f32 %v1516, %v1644
    %v1646 = vpop.f32.mrf.mxu0
    %1647 = vmatprep.mubr.f32.mxu0 0.0
    %1648 = vmatmul.mubr.f32.gmra.mxu0 %v1501
    %v1649 = vpop.f32.mrf.mxu0
    %v1650 = vadd.f32 %v1516, %v1649
    %v1651 = vpop.f32.mrf.mxu0
    %1652 = vmatprep.mubr.f32.mxu0 0.0
    %1653 = vmatmul.mubr.f32.gmra.mxu0 %v1506
    %v1654 = vpop.f32.mrf.mxu0
    %v1655 = vadd.f32 %v1516, %v1654
    %v1656 = vpop.f32.mrf.mxu0
    %1657 = vmatprep.mubr.f32.mxu0 0.0
    %1658 = vmatmul.mubr.f32.gmra.mxu0 %v1509
    %v1659 = vpop.f32.mrf.mxu0
    %v1660 = vadd.f32 %v1516, %v1659
    %v1661 = vpop.f32.mrf.mxu0
    %1662 = vdwg.mxu0
    %v1663 = vmax.f32 %v1585, 0.0
    %v1664 = vmax.f32 %v1590, 0.0
    %v1665 = vmax.f32 %v1595, 0.0
    %v1666 = vmax.f32 %v1600, 0.0
    %v1667 = vmax.f32 %v1605, 0.0
    %v1668 = vmax.f32 %v1610, 0.0
    %v1669 = vmax.f32 %v1615, 0.0
    %v1670 = vmax.f32 %v1620, 0.0
    %v1671 = vmax.f32 %v1625, 0.0
    %v1672 = vmax.f32 %v1630, 0.0
    %v1673 = vmax.f32 %v1635, 0.0
    %v1674 = vmax.f32 %v1640, 0.0
    %v1675 = vmax.f32 %v1645, 0.0
    %v1676 = vmax.f32 %v1650, 0.0
    %v1677 = vmax.f32 %v1655, 0.0
    %v1678 = vmax.f32 %v1660, 0.0
    %v1680 = vlaneseq
    %v1681 = vshrl.u32 %v1680, 7
    %v1682 = vsub.s32 0, %v1681
    %v1683 = vrot.slane %v1273, %v1682
    %1685 = vmatprep.subr.mxu0 0.0
    %1686 = vmatpush1.msra.mxu0 %v1271
    %1687 = vmatprep.subr.mxu0 0.0
    %1688 = vmatpush1.msra.mxu0 %v1270
    %1689 = vmatprep.subr.mxu0 0.0
    %1690 = vmatpush1.msra.mxu0 %v1269
    %1691 = vmatprep.subr.mxu0 0.0
    %1692 = vmatpush1.msra.mxu0 %v1268
    %1693 = vmatprep.subr.mxu0 0.0
    %1694 = vmatpush1.msra.mxu0 %v1267
    %1695 = vmatprep.subr.mxu0 0.0
    %1696 = vmatpush1.msra.mxu0 %v1266
    %1697 = vmatprep.subr.mxu0 0.0
    %1698 = vmatpush1.msra.mxu0 %v1265
    %1699 = vmatprep.subr.mxu0 0.0
    %1700 = vmatpush1.msra.mxu0 %v1264
    %1701 = vmatprep.subr.mxu0 0.0
    %1702 = vmatpush1.msra.mxu0 %v1263
    %1703 = vmatprep.subr.mxu0 0.0
    %1704 = vmatpush1.msra.mxu0 %v1262
    %1705 = vmatprep.subr.mxu0 0.0
    %1706 = vmatpush1.msra.mxu0 %v1261
    %1707 = vmatprep.subr.mxu0 0.0
    %1708 = vmatpush1.msra.mxu0 %v1260
    %1709 = vmatprep.subr.mxu0 0.0
    %1710 = vmatpush1.msra.mxu0 %v1259
    %1711 = vmatprep.subr.mxu0 0.0
    %1712 = vmatpush1.msra.mxu0 %v1258
    %1713 = vmatprep.subr.mxu0 0.0
    %1714 = vmatpush1.msra.mxu0 %v1257
    %1715 = vmatprep.subr.mxu0 0.0
    %1716 = vmatpush1.msra.mxu0 %v1256
    %1717 = vmatprep.subr.mxu0 0.0
    %1718 = vmatpush2.msra.mxu0 0.0
    %1719 = vmatprep.subr.mxu0 0.0
    %1720 = vmatpush2.msra.mxu0 0.0
    %1721 = vmatprep.subr.mxu0 0.0
    %1722 = vmatpush2.msra.mxu0 0.0
    %1723 = vmatprep.subr.mxu0 0.0
    %1724 = vmatpush2.msra.mxu0 0.0
    %1725 = vmatprep.subr.mxu0 0.0
    %1726 = vmatpush2.msra.mxu0 0.0
    %1727 = vmatprep.subr.mxu0 0.0
    %1728 = vmatpush2.msra.mxu0 0.0
    %1729 = vmatprep.subr.mxu0 0.0
    %1730 = vmatpush2.msra.mxu0 0.0
    %1731 = vmatprep.subr.mxu0 0.0
    %1732 = vmatpush2.msra.mxu0 0.0
    %1733 = vmatprep.subr.mxu0 0.0
    %1734 = vmatpush2.msra.mxu0 0.0
    %1735 = vmatprep.subr.mxu0 0.0
    %1736 = vmatpush2.msra.mxu0 0.0
    %1737 = vmatprep.subr.mxu0 0.0
    %1738 = vmatpush2.msra.mxu0 0.0
    %1739 = vmatprep.subr.mxu0 0.0
    %1740 = vmatpush2.msra.mxu0 0.0
    %1741 = vmatprep.subr.mxu0 0.0
    %1742 = vmatpush2.msra.mxu0 0.0
    %1743 = vmatprep.subr.mxu0 0.0
    %1744 = vmatpush2.msra.mxu0 0.0
    %1745 = vmatprep.subr.mxu0 0.0
    %1746 = vmatpush2.msra.mxu0 0.0
    %1747 = vmatprep.subr.mxu0 0.0
    %1748 = vmatpush2.msra.mxu0 0.0
    %1749 = vmatprep.mubr.f32.mxu0 0.0
    %1750 = vmatmul.mubr.f32.gmra.mxu0 %v1663
    %v1751 = vpop.f32.mrf.mxu0
    %v1752 = vadd.f32 %v1683, %v1751
    %v1753 = vpop.f32.mrf.mxu0
    %1754 = vmatprep.mubr.f32.mxu0 0.0
    %1755 = vmatmul.mubr.f32.gmra.mxu0 %v1664
    %v1756 = vpop.f32.mrf.mxu0
    %v1757 = vadd.f32 %v1683, %v1756
    %v1758 = vpop.f32.mrf.mxu0
    %1759 = vmatprep.mubr.f32.mxu0 0.0
    %1760 = vmatmul.mubr.f32.gmra.mxu0 %v1665
    %v1761 = vpop.f32.mrf.mxu0
    %v1762 = vadd.f32 %v1683, %v1761
    %v1763 = vpop.f32.mrf.mxu0
    %1764 = vmatprep.mubr.f32.mxu0 0.0
    %1765 = vmatmul.mubr.f32.gmra.mxu0 %v1666
    %v1766 = vpop.f32.mrf.mxu0
    %v1767 = vadd.f32 %v1683, %v1766
    %v1768 = vpop.f32.mrf.mxu0
    %1769 = vmatprep.mubr.f32.mxu0 0.0
    %1770 = vmatmul.mubr.f32.gmra.mxu0 %v1667
    %v1771 = vpop.f32.mrf.mxu0
    %v1772 = vadd.f32 %v1683, %v1771
    %v1773 = vpop.f32.mrf.mxu0
    %1774 = vmatprep.mubr.f32.mxu0 0.0
    %1775 = vmatmul.mubr.f32.gmra.mxu0 %v1668
    %v1776 = vpop.f32.mrf.mxu0
    %v1777 = vadd.f32 %v1683, %v1776
    %v1778 = vpop.f32.mrf.mxu0
    %1779 = vmatprep.mubr.f32.mxu0 0.0
    %1780 = vmatmul.mubr.f32.gmra.mxu0 %v1669
    %v1781 = vpop.f32.mrf.mxu0
    %v1782 = vadd.f32 %v1683, %v1781
    %v1783 = vpop.f32.mrf.mxu0
    %1784 = vmatprep.mubr.f32.mxu0 0.0
    %1785 = vmatmul.mubr.f32.gmra.mxu0 %v1670
    %v1786 = vpop.f32.mrf.mxu0
    %v1787 = vadd.f32 %v1683, %v1786
    %v1788 = vpop.f32.mrf.mxu0
    %1789 = vmatprep.mubr.f32.mxu0 0.0
    %1790 = vmatmul.mubr.f32.gmra.mxu0 %v1671
    %v1791 = vpop.f32.mrf.mxu0
    %v1792 = vadd.f32 %v1683, %v1791
    %v1793 = vpop.f32.mrf.mxu0
    %1794 = vmatprep.mubr.f32.mxu0 0.0
    %1795 = vmatmul.mubr.f32.gmra.mxu0 %v1672
    %v1796 = vpop.f32.mrf.mxu0
    %v1797 = vadd.f32 %v1683, %v1796
    %v1798 = vpop.f32.mrf.mxu0
    %1799 = vmatprep.mubr.f32.mxu0 0.0
    %1800 = vmatmul.mubr.f32.gmra.mxu0 %v1673
    %v1801 = vpop.f32.mrf.mxu0
    %v1802 = vadd.f32 %v1683, %v1801
    %v1803 = vpop.f32.mrf.mxu0
    %1804 = vmatprep.mubr.f32.mxu0 0.0
    %1805 = vmatmul.mubr.f32.gmra.mxu0 %v1674
    %v1806 = vpop.f32.mrf.mxu0
    %v1807 = vadd.f32 %v1683, %v1806
    %v1808 = vpop.f32.mrf.mxu0
    %1809 = vmatprep.mubr.f32.mxu0 0.0
    %1810 = vmatmul.mubr.f32.gmra.mxu0 %v1675
    %v1811 = vpop.f32.mrf.mxu0
    %v1812 = vadd.f32 %v1683, %v1811
    %v1813 = vpop.f32.mrf.mxu0
    %1814 = vmatprep.mubr.f32.mxu0 0.0
    %1815 = vmatmul.mubr.f32.gmra.mxu0 %v1676
    %v1816 = vpop.f32.mrf.mxu0
    %v1817 = vadd.f32 %v1683, %v1816
    %v1818 = vpop.f32.mrf.mxu0
    %1819 = vmatprep.mubr.f32.mxu0 0.0
    %1820 = vmatmul.mubr.f32.gmra.mxu0 %v1677
    %v1821 = vpop.f32.mrf.mxu0
    %v1822 = vadd.f32 %v1683, %v1821
    %v1823 = vpop.f32.mrf.mxu0
    %1824 = vmatprep.mubr.f32.mxu0 0.0
    %1825 = vmatmul.mubr.f32.gmra.mxu0 %v1678
    %v1826 = vpop.f32.mrf.mxu0
    %v1827 = vadd.f32 %v1683, %v1826
    %v1828 = vpop.f32.mrf.mxu0
    %1829 = vdwg.mxu0
    %1830 = vst [vmem:[#allocation3] sm:$0xff] %v1752
    %1831 = vst [vmem:[#allocation3 + $0x8] sm:$0xff] %v1757
    %1832 = vst [vmem:[#allocation3 + $0x10] sm:$0xff] %v1762
    %1833 = vst [vmem:[#allocation3 + $0x18] sm:$0xff] %v1767
    %1834 = vst [vmem:[#allocation3 + $0x20] sm:$0xff] %v1772
    %1835 = vst [vmem:[#allocation3 + $0x28] sm:$0xff] %v1777
    %1836 = vst [vmem:[#allocation3 + $0x30] sm:$0xff] %v1782
    %1837 = vst [vmem:[#allocation3 + $0x38] sm:$0xff] %v1787
    %1838 = vst [vmem:[#allocation3 + $0x40] sm:$0xff] %v1792
    %1839 = vst [vmem:[#allocation3 + $0x48] sm:$0xff] %v1797
    %1840 = vst [vmem:[#allocation3 + $0x50] sm:$0xff] %v1802
    %1841 = vst [vmem:[#allocation3 + $0x58] sm:$0xff] %v1807
    %1842 = vst [vmem:[#allocation3 + $0x60] sm:$0xff] %v1812
    %1843 = vst [vmem:[#allocation3 + $0x68] sm:$0xff] %v1817
    %1844 = vst [vmem:[#allocation3 + $0x70] sm:$0xff] %v1822
    %1845 = vst [vmem:[#allocation3 + $0x78] sm:$0xff] %v1827
    %v1846 = vld [vmem:[#allocation3] sm:$0xff]
    %v1847 = vld [vmem:[#allocation3 + $0x8] sm:$0xff]
    %v1848 = vld [vmem:[#allocation3 + $0x10] sm:$0xff]
    %v1849 = vld [vmem:[#allocation3 + $0x18] sm:$0xff]
    %v1850 = vld [vmem:[#allocation3 + $0x20] sm:$0xff]
    %v1851 = vld [vmem:[#allocation3 + $0x28] sm:$0xff]
    %v1852 = vld [vmem:[#allocation3 + $0x30] sm:$0xff]
    %v1853 = vld [vmem:[#allocation3 + $0x38] sm:$0xff]
    %v1854 = vld [vmem:[#allocation3 + $0x40] sm:$0xff]
    %v1855 = vld [vmem:[#allocation3 + $0x48] sm:$0xff]
    %v1856 = vld [vmem:[#allocation3 + $0x50] sm:$0xff]
    %v1857 = vld [vmem:[#allocation3 + $0x58] sm:$0xff]
    %v1858 = vld [vmem:[#allocation3 + $0x60] sm:$0xff]
    %v1859 = vld [vmem:[#allocation3 + $0x68] sm:$0xff]
    %v1860 = vld [vmem:[#allocation3 + $0x70] sm:$0xff]
    %v1861 = vld [vmem:[#allocation3 + $0x78] sm:$0xff]
    %v1862 = vsel %vm904, %v1846, 0.0
    %v1863 = vsel %vm905, %v1847, 0.0
    %v1864 = vsel %vm906, %v1848, 0.0
    %v1865 = vsel %vm907, %v1849, 0.0
    %v1866 = vsel %vm908, %v1850, 0.0
    %v1867 = vsel %vm909, %v1851, 0.0
    %v1868 = vsel %vm910, %v1852, 0.0
    %v1869 = vsel %vm911, %v1853, 0.0
    %v1870 = vsel %vm912, %v1854, 0.0
    %v1871 = vsel %vm913, %v1855, 0.0
    %v1872 = vsel %vm914, %v1856, 0.0
    %v1873 = vsel %vm915, %v1857, 0.0
    %v1874 = vsel %vm916, %v1858, 0.0
    %v1875 = vsel %vm917, %v1859, 0.0
    %v1876 = vsel %vm918, %v1860, 0.0
    %v1877 = vsel %vm919, %v1861, 0.0
    %v1878 = vadd.f32 %v1862, %v1863
    %v1879 = vadd.f32 %v1878, %v1864
    %v1880 = vadd.f32 %v1879, %v1865
    %v1881 = vadd.f32 %v1880, %v1866
    %v1882 = vadd.f32 %v1881, %v1867
    %v1883 = vadd.f32 %v1882, %v1868
    %v1884 = vadd.f32 %v1883, %v1869
    %v1885 = vadd.f32 %v1884, %v1870
    %v1886 = vadd.f32 %v1885, %v1871
    %v1887 = vadd.f32 %v1886, %v1872
    %v1888 = vadd.f32 %v1887, %v1873
    %v1889 = vadd.f32 %v1888, %v1874
    %v1890 = vadd.f32 %v1889, %v1875
    %v1891 = vadd.f32 %v1890, %v1876
    %v1892 = vadd.f32 %v1891, %v1877
    %v1893 = vrot.slane %v1892, 4
    %v1894 = vadd.f32 %v1892, %v1893
    %v1895 = vrot.slane %v1894, 2
    %v1896 = vadd.f32 %v1894, %v1895
    %v1897 = vrot.slane %v1896, 1
    %v1898 = vadd.f32 %v1896, %v1897
    %v1899 = vmul.f32 %v1898, 0.0625
    %v1900 = vsub.f32 %v1846, %v1899
    %v1901 = vsub.f32 %v1847, %v1899
    %v1902 = vsub.f32 %v1848, %v1899
    %v1903 = vsub.f32 %v1849, %v1899
    %v1904 = vsub.f32 %v1850, %v1899
    %v1905 = vsub.f32 %v1851, %v1899
    %v1906 = vsub.f32 %v1852, %v1899
    %v1907 = vsub.f32 %v1853, %v1899
    %v1908 = vsub.f32 %v1854, %v1899
    %v1909 = vsub.f32 %v1855, %v1899
    %v1910 = vsub.f32 %v1856, %v1899
    %v1911 = vsub.f32 %v1857, %v1899
    %v1912 = vsub.f32 %v1858, %v1899
    %v1913 = vsub.f32 %v1859, %v1899
    %v1914 = vsub.f32 %v1860, %v1899
    %v1915 = vsub.f32 %v1861, %v1899
    %v1916 = vmul.f32 %v1900, %v1900
    %v1917 = vmul.f32 %v1901, %v1901
    %v1918 = vmul.f32 %v1902, %v1902
    %v1919 = vmul.f32 %v1903, %v1903
    %v1920 = vmul.f32 %v1904, %v1904
    %v1921 = vmul.f32 %v1905, %v1905
    %v1922 = vmul.f32 %v1906, %v1906
    %v1923 = vmul.f32 %v1907, %v1907
    %v1924 = vmul.f32 %v1908, %v1908
    %v1925 = vmul.f32 %v1909, %v1909
    %v1926 = vmul.f32 %v1910, %v1910
    %v1927 = vmul.f32 %v1911, %v1911
    %v1928 = vmul.f32 %v1912, %v1912
    %v1929 = vmul.f32 %v1913, %v1913
    %v1930 = vmul.f32 %v1914, %v1914
    %v1931 = vmul.f32 %v1915, %v1915
    %v1932 = vsel %vm904, %v1916, 0.0
    %v1933 = vsel %vm905, %v1917, 0.0
    %v1934 = vsel %vm906, %v1918, 0.0
    %v1935 = vsel %vm907, %v1919, 0.0
    %v1936 = vsel %vm908, %v1920, 0.0
    %v1937 = vsel %vm909, %v1921, 0.0
    %v1938 = vsel %vm910, %v1922, 0.0
    %v1939 = vsel %vm911, %v1923, 0.0
    %v1940 = vsel %vm912, %v1924, 0.0
    %v1941 = vsel %vm913, %v1925, 0.0
    %v1942 = vsel %vm914, %v1926, 0.0
    %v1943 = vsel %vm915, %v1927, 0.0
    %v1944 = vsel %vm916, %v1928, 0.0
    %v1945 = vsel %vm917, %v1929, 0.0
    %v1946 = vsel %vm918, %v1930, 0.0
    %v1947 = vsel %vm919, %v1931, 0.0
    %v1948 = vadd.f32 %v1932, %v1933
    %v1949 = vadd.f32 %v1948, %v1934
    %v1950 = vadd.f32 %v1949, %v1935
    %v1951 = vadd.f32 %v1950, %v1936
    %v1952 = vadd.f32 %v1951, %v1937
    %v1953 = vadd.f32 %v1952, %v1938
    %v1954 = vadd.f32 %v1953, %v1939
    %v1955 = vadd.f32 %v1954, %v1940
    %v1956 = vadd.f32 %v1955, %v1941
    %v1957 = vadd.f32 %v1956, %v1942
    %v1958 = vadd.f32 %v1957, %v1943
    %v1959 = vadd.f32 %v1958, %v1944
    %v1960 = vadd.f32 %v1959, %v1945
    %v1961 = vadd.f32 %v1960, %v1946
    %v1962 = vadd.f32 %v1961, %v1947
    %v1963 = vrot.slane %v1962, 4
    %v1964 = vadd.f32 %v1962, %v1963
    %v1965 = vrot.slane %v1964, 2
    %v1966 = vadd.f32 %v1964, %v1965
    %v1967 = vrot.slane %v1966, 1
    %v1968 = vadd.f32 %v1966, %v1967
    %v1969 = vmul.f32 %v1968, 0.0625
    %v1970 = vadd.f32 %v1969, 1e-05
    %v1971 = vrsqrt.pop %v1970
    %v1972 = vmul.f32 %v1900, %v1971
    %v1973 = vmul.f32 %v1901, %v1971
    %v1974 = vmul.f32 %v1902, %v1971
    %v1975 = vmul.f32 %v1903, %v1971
    %v1976 = vmul.f32 %v1904, %v1971
    %v1977 = vmul.f32 %v1905, %v1971
    %v1978 = vmul.f32 %v1906, %v1971
    %v1979 = vmul.f32 %v1907, %v1971
    %v1980 = vmul.f32 %v1908, %v1971
    %v1981 = vmul.f32 %v1909, %v1971
    %v1982 = vmul.f32 %v1910, %v1971
    %v1983 = vmul.f32 %v1911, %v1971
    %v1984 = vmul.f32 %v1912, %v1971
    %v1985 = vmul.f32 %v1913, %v1971
    %v1986 = vmul.f32 %v1914, %v1971
    %v1987 = vmul.f32 %v1915, %v1971
    %s1988 = scalar_lea.vmem [#allocation13], 1
    %v1989 = vld [vmem:[%s1988] sm:$0x1]
    %v1991 = vlaneseq
    %v1992 = vshrl.u32 %v1991, 7
    %v1993 = vsub.s32 0, %v1992
    %v1994 = vrot.slane %v1989, %v1993
    %v1996 = vmul.f32 %v1972, %v1994
    %v1997 = vmul.f32 %v1973, %v1994
    %v1998 = vmul.f32 %v1974, %v1994
    %v1999 = vmul.f32 %v1975, %v1994
    %v2000 = vmul.f32 %v1976, %v1994
    %v2001 = vmul.f32 %v1977, %v1994
    %v2002 = vmul.f32 %v1978, %v1994
    %v2003 = vmul.f32 %v1979, %v1994
    %v2004 = vmul.f32 %v1980, %v1994
    %v2005 = vmul.f32 %v1981, %v1994
    %v2006 = vmul.f32 %v1982, %v1994
    %v2007 = vmul.f32 %v1983, %v1994
    %v2008 = vmul.f32 %v1984, %v1994
    %v2009 = vmul.f32 %v1985, %v1994
    %v2010 = vmul.f32 %v1986, %v1994
    %v2011 = vmul.f32 %v1987, %v1994
    %s2012 = scalar_lea.vmem %s7, 1
    %v2013 = vld [vmem:[%s2012] sm:$0x1]
    %v2015 = vlaneseq
    %v2016 = vshrl.u32 %v2015, 7
    %v2017 = vsub.s32 0, %v2016
    %v2018 = vrot.slane %v2013, %v2017
    %v2020 = vadd.f32 %v1996, %v2018
    %v2021 = vadd.f32 %v1997, %v2018
    %v2022 = vadd.f32 %v1998, %v2018
    %v2023 = vadd.f32 %v1999, %v2018
    %v2024 = vadd.f32 %v2000, %v2018
    %v2025 = vadd.f32 %v2001, %v2018
    %v2026 = vadd.f32 %v2002, %v2018
    %v2027 = vadd.f32 %v2003, %v2018
    %v2028 = vadd.f32 %v2004, %v2018
    %v2029 = vadd.f32 %v2005, %v2018
    %v2030 = vadd.f32 %v2006, %v2018
    %v2031 = vadd.f32 %v2007, %v2018
    %v2032 = vadd.f32 %v2008, %v2018
    %v2033 = vadd.f32 %v2009, %v2018
    %v2034 = vadd.f32 %v2010, %v2018
    %v2035 = vadd.f32 %v2011, %v2018
    %v2036 = vmax.f32 %v2020, 0.0
    %v2037 = vmax.f32 %v2021, 0.0
    %v2038 = vmax.f32 %v2022, 0.0
    %v2039 = vmax.f32 %v2023, 0.0
    %v2040 = vmax.f32 %v2024, 0.0
    %v2041 = vmax.f32 %v2025, 0.0
    %v2042 = vmax.f32 %v2026, 0.0
    %v2043 = vmax.f32 %v2027, 0.0
    %v2044 = vmax.f32 %v2028, 0.0
    %v2045 = vmax.f32 %v2029, 0.0
    %v2046 = vmax.f32 %v2030, 0.0
    %v2047 = vmax.f32 %v2031, 0.0
    %v2048 = vmax.f32 %v2032, 0.0
    %v2049 = vmax.f32 %v2033, 0.0
    %v2050 = vmax.f32 %v2034, 0.0
    %v2051 = vmax.f32 %v2035, 0.0
    %v2052 = vsel %vm904, %v2036, 0.0
    %v2053 = vsel %vm905, %v2037, 0.0
    %v2054 = vsel %vm906, %v2038, 0.0
    %v2055 = vsel %vm907, %v2039, 0.0
    %v2056 = vsel %vm908, %v2040, 0.0
    %v2057 = vsel %vm909, %v2041, 0.0
    %v2058 = vsel %vm910, %v2042, 0.0
    %v2059 = vsel %vm911, %v2043, 0.0
    %v2060 = vsel %vm912, %v2044, 0.0
    %v2061 = vsel %vm913, %v2045, 0.0
    %v2062 = vsel %vm914, %v2046, 0.0
    %v2063 = vsel %vm915, %v2047, 0.0
    %v2064 = vsel %vm916, %v2048, 0.0
    %v2065 = vsel %vm917, %v2049, 0.0
    %v2066 = vsel %vm918, %v2050, 0.0
    %v2067 = vsel %vm919, %v2051, 0.0
    %2068 = vst [vmem:[#allocation2] sm:$0xff] %v2052
    %2069 = vst [vmem:[#allocation2 + $0x8] sm:$0xff] %v2053
    %2070 = vst [vmem:[#allocation2 + $0x10] sm:$0xff] %v2054
    %2071 = vst [vmem:[#allocation2 + $0x18] sm:$0xff] %v2055
    %2072 = vst [vmem:[#allocation2 + $0x20] sm:$0xff] %v2056
    %2073 = vst [vmem:[#allocation2 + $0x28] sm:$0xff] %v2057
    %2074 = vst [vmem:[#allocation2 + $0x30] sm:$0xff] %v2058
    %2075 = vst [vmem:[#allocation2 + $0x38] sm:$0xff] %v2059
    %2076 = vst [vmem:[#allocation2 + $0x40] sm:$0xff] %v2060
    %2077 = vst [vmem:[#allocation2 + $0x48] sm:$0xff] %v2061
    %2078 = vst [vmem:[#allocation2 + $0x50] sm:$0xff] %v2062
    %2079 = vst [vmem:[#allocation2 + $0x58] sm:$0xff] %v2063
    %2080 = vst [vmem:[#allocation2 + $0x60] sm:$0xff] %v2064
    %2081 = vst [vmem:[#allocation2 + $0x68] sm:$0xff] %v2065
    %2082 = vst [vmem:[#allocation2 + $0x70] sm:$0xff] %v2066
    %2083 = vst [vmem:[#allocation2 + $0x78] sm:$0xff] %v2067
    %v2084 = vld [vmem:[#allocation2] sm:$0xff]
    %v2085 = vld [vmem:[#allocation2 + $0x8] sm:$0xff]
    %v2086 = vld [vmem:[#allocation2 + $0x10] sm:$0xff]
    %v2087 = vld [vmem:[#allocation2 + $0x18] sm:$0xff]
    %v2088 = vld [vmem:[#allocation2 + $0x20] sm:$0xff]
    %v2089 = vld [vmem:[#allocation2 + $0x28] sm:$0xff]
    %v2090 = vld [vmem:[#allocation2 + $0x30] sm:$0xff]
    %v2091 = vld [vmem:[#allocation2 + $0x38] sm:$0xff]
    %v2092 = vld [vmem:[#allocation2 + $0x40] sm:$0xff]
    %v2093 = vld [vmem:[#allocation2 + $0x48] sm:$0xff]
    %v2094 = vld [vmem:[#allocation2 + $0x50] sm:$0xff]
    %v2095 = vld [vmem:[#allocation2 + $0x58] sm:$0xff]
    %v2096 = vld [vmem:[#allocation2 + $0x60] sm:$0xff]
    %v2097 = vld [vmem:[#allocation2 + $0x68] sm:$0xff]
    %v2098 = vld [vmem:[#allocation2 + $0x70] sm:$0xff]
    %v2099 = vld [vmem:[#allocation2 + $0x78] sm:$0xff]
    %v2100 = vpack.c.bf16 %v2085, %v2084
    %v2101 = vpack.c.bf16 %v2087, %v2086
    %v2102 = vpack.c.bf16 %v2089, %v2088
    %v2103 = vpack.c.bf16 %v2091, %v2090
    %v2104 = vpack.c.bf16 %v2093, %v2092
    %v2105 = vpack.c.bf16 %v2095, %v2094
    %v2106 = vpack.c.bf16 %v2097, %v2096
    %v2107 = vpack.c.bf16 %v2099, %v2098
    %v2116 = vunpack.c.l.b16 %v2100
    %v2117 = vunpack.c.h.b16 %v2100
    %v2118 = vunpack.c.l.b16 %v2101
    %v2119 = vunpack.c.h.b16 %v2101
    %v2120 = vunpack.c.l.b16 %v2102
    %v2121 = vunpack.c.h.b16 %v2102
    %v2122 = vunpack.c.l.b16 %v2103
    %v2123 = vunpack.c.h.b16 %v2103
    %v2124 = vunpack.c.l.b16 %v2104
    %v2125 = vunpack.c.h.b16 %v2104
    %v2126 = vunpack.c.l.b16 %v2105
    %v2127 = vunpack.c.h.b16 %v2105
    %v2128 = vunpack.c.l.b16 %v2106
    %v2129 = vunpack.c.h.b16 %v2106
    %v2130 = vunpack.c.l.b16 %v2107
    %v2131 = vunpack.c.h.b16 %v2107
    %v2132 = vpack.c.b16 %v2116, %v2116
    %v2133 = vpack.c.b16 %v2117, %v2117
    %v2134 = vpack.c.b16 %v2118, %v2118
    %v2135 = vpack.c.b16 %v2119, %v2119
    %v2136 = vpack.c.b16 %v2120, %v2120
    %v2137 = vpack.c.b16 %v2121, %v2121
    %v2138 = vpack.c.b16 %v2122, %v2122
    %v2139 = vpack.c.b16 %v2123, %v2123
    %v2140 = vpack.c.b16 %v2124, %v2124
    %v2141 = vpack.c.b16 %v2125, %v2125
    %v2142 = vpack.c.b16 %v2126, %v2126
    %v2143 = vpack.c.b16 %v2127, %v2127
    %v2144 = vpack.c.b16 %v2128, %v2128
    %v2145 = vpack.c.b16 %v2129, %v2129
    %v2146 = vpack.c.b16 %v2130, %v2130
    %v2147 = vpack.c.b16 %v2131, %v2131
    %2164 = vst [vmem:[#allocation4] sm:$0xf] %v2132
    %2165 = vst [vmem:[#allocation4 + $0x4] sm:$0xf] %v2133
    %2166 = vst [vmem:[#allocation4 + $0x8] sm:$0xf] %v2134
    %2167 = vst [vmem:[#allocation4 + $0xc] sm:$0xf] %v2135
    %2168 = vst [vmem:[#allocation4 + $0x10] sm:$0xf] %v2136
    %2169 = vst [vmem:[#allocation4 + $0x14] sm:$0xf] %v2137
    %2170 = vst [vmem:[#allocation4 + $0x18] sm:$0xf] %v2138
    %2171 = vst [vmem:[#allocation4 + $0x1c] sm:$0xf] %v2139
    %2172 = vst [vmem:[#allocation4 + $0x20] sm:$0xf] %v2140
    %2173 = vst [vmem:[#allocation4 + $0x24] sm:$0xf] %v2141
    %2174 = vst [vmem:[#allocation4 + $0x28] sm:$0xf] %v2142
    %2175 = vst [vmem:[#allocation4 + $0x2c] sm:$0xf] %v2143
    %2176 = vst [vmem:[#allocation4 + $0x30] sm:$0xf] %v2144
    %2177 = vst [vmem:[#allocation4 + $0x34] sm:$0xf] %v2145
    %2178 = vst [vmem:[#allocation4 + $0x38] sm:$0xf] %v2146
    %2179 = vst [vmem:[#allocation4 + $0x3c] sm:$0xf] %v2147
    %s2180 = scalar_lea.vmem [#allocation10], 256
    %v2181 = vld [vmem:[%s2180] sm:$0xff]
    %v2182 = vld [vmem:[%s2180 + $0x8] sm:$0xff]
    %v2183 = vld [vmem:[%s2180 + $0x10] sm:$0xff]
    %v2184 = vld [vmem:[%s2180 + $0x18] sm:$0xff]
    %v2185 = vld [vmem:[%s2180 + $0x20] sm:$0xff]
    %v2186 = vld [vmem:[%s2180 + $0x28] sm:$0xff]
    %v2187 = vld [vmem:[%s2180 + $0x30] sm:$0xff]
    %v2188 = vld [vmem:[%s2180 + $0x38] sm:$0xff]
    %v2189 = vld [vmem:[%s2180 + $0x40] sm:$0xff]
    %v2190 = vld [vmem:[%s2180 + $0x48] sm:$0xff]
    %v2191 = vld [vmem:[%s2180 + $0x50] sm:$0xff]
    %v2192 = vld [vmem:[%s2180 + $0x58] sm:$0xff]
    %v2193 = vld [vmem:[%s2180 + $0x60] sm:$0xff]
    %v2194 = vld [vmem:[%s2180 + $0x68] sm:$0xff]
    %v2195 = vld [vmem:[%s2180 + $0x70] sm:$0xff]
    %v2196 = vld [vmem:[%s2180 + $0x78] sm:$0xff]
    %s2197 = scalar_lea.vmem %s3, 2
    %v2198 = vld [vmem:[%s2197] sm:$0x1]
    %s2199 = scalar_lea.vmem [#allocation12], 256
    %v2200 = vld [vmem:[%s2199] sm:$0xff]
    %v2201 = vld [vmem:[%s2199 + $0x8] sm:$0xff]
    %v2202 = vld [vmem:[%s2199 + $0x10] sm:$0xff]
    %v2203 = vld [vmem:[%s2199 + $0x18] sm:$0xff]
    %v2204 = vld [vmem:[%s2199 + $0x20] sm:$0xff]
    %v2205 = vld [vmem:[%s2199 + $0x28] sm:$0xff]
    %v2206 = vld [vmem:[%s2199 + $0x30] sm:$0xff]
    %v2207 = vld [vmem:[%s2199 + $0x38] sm:$0xff]
    %v2208 = vld [vmem:[%s2199 + $0x40] sm:$0xff]
    %v2209 = vld [vmem:[%s2199 + $0x48] sm:$0xff]
    %v2210 = vld [vmem:[%s2199 + $0x50] sm:$0xff]
    %v2211 = vld [vmem:[%s2199 + $0x58] sm:$0xff]
    %v2212 = vld [vmem:[%s2199 + $0x60] sm:$0xff]
    %v2213 = vld [vmem:[%s2199 + $0x68] sm:$0xff]
    %v2214 = vld [vmem:[%s2199 + $0x70] sm:$0xff]
    %v2215 = vld [vmem:[%s2199 + $0x78] sm:$0xff]
    %s2216 = scalar_lea.vmem %s5, 2
    %v2217 = vld [vmem:[%s2216] sm:$0x1]
    // Predicated region
    $region66: #{tpu_custom_call.1} parent=1 // pred_check
      _
    $region67: #{tpu_custom_call.1} parent=1 // pred_check_branch
      %2219 = sbr.rel target = $region69
    $region68: #{tpu_custom_call.1} parent=1 // pred_region
      %2220 = sst [smem:[#allocation19]] [#allocation24]
      %2221 = sst [smem:[#allocation20]] [#allocation23]
    $region69: #{tpu_custom_call.1} parent=1 // pred_fallthru
      _
    %2223 = shalt.err (0)
    %s2225 = sshll.u32 [#allocation5], 4
    %s2226 = int_to_ptr.vmem [resolvable:$true] %s2225
    %2228 = dma.hbm_to_vmem [thread:$0]  %s0, 1024, %s2226, [#allocation6]
    %s2229 = sshll.u32 %s310, 4
    %2230 = dma.done [#allocation6], %s2229
    %v2231 = vld [vmem:[#allocation5] sm:$0xf]
    %v2232 = vld [vmem:[#allocation5 + $0x4] sm:$0xf]
    %v2233 = vld [vmem:[#allocation5 + $0x8] sm:$0xf]
    %v2234 = vld [vmem:[#allocation5 + $0xc] sm:$0xf]
    %v2235 = vld [vmem:[#allocation5 + $0x10] sm:$0xf]
    %v2236 = vld [vmem:[#allocation5 + $0x14] sm:$0xf]
    %v2237 = vld [vmem:[#allocation5 + $0x18] sm:$0xf]
    %v2238 = vld [vmem:[#allocation5 + $0x1c] sm:$0xf]
    %v2239 = vld [vmem:[#allocation5 + $0x20] sm:$0xf]
    %v2240 = vld [vmem:[#allocation5 + $0x24] sm:$0xf]
    %v2241 = vld [vmem:[#allocation5 + $0x28] sm:$0xf]
    %v2242 = vld [vmem:[#allocation5 + $0x2c] sm:$0xf]
    %v2243 = vld [vmem:[#allocation5 + $0x30] sm:$0xf]
    %v2244 = vld [vmem:[#allocation5 + $0x34] sm:$0xf]
    %v2245 = vld [vmem:[#allocation5 + $0x38] sm:$0xf]
    %v2246 = vld [vmem:[#allocation5 + $0x3c] sm:$0xf]
    %v2247 = vld [vmem:[#allocation4] sm:$0xf]
    %v2248 = vld [vmem:[#allocation4 + $0x4] sm:$0xf]
    %v2249 = vld [vmem:[#allocation4 + $0x8] sm:$0xf]
    %v2250 = vld [vmem:[#allocation4 + $0xc] sm:$0xf]
    %v2251 = vld [vmem:[#allocation4 + $0x10] sm:$0xf]
    %v2252 = vld [vmem:[#allocation4 + $0x14] sm:$0xf]
    %v2253 = vld [vmem:[#allocation4 + $0x18] sm:$0xf]
    %v2254 = vld [vmem:[#allocation4 + $0x1c] sm:$0xf]
    %v2255 = vld [vmem:[#allocation4 + $0x20] sm:$0xf]
    %v2256 = vld [vmem:[#allocation4 + $0x24] sm:$0xf]
    %v2257 = vld [vmem:[#allocation4 + $0x28] sm:$0xf]
    %v2258 = vld [vmem:[#allocation4 + $0x2c] sm:$0xf]
    %v2259 = vld [vmem:[#allocation4 + $0x30] sm:$0xf]
    %v2260 = vld [vmem:[#allocation4 + $0x34] sm:$0xf]
    %v2261 = vld [vmem:[#allocation4 + $0x38] sm:$0xf]
    %v2262 = vld [vmem:[#allocation4 + $0x3c] sm:$0xf]
    %v2279 = vunpack.c.l.b16 %v2231
    %v2280 = vunpack.c.l.b16 %v2232
    %v2281 = vunpack.c.l.b16 %v2233
    %v2282 = vunpack.c.l.b16 %v2234
    %v2283 = vunpack.c.l.b16 %v2235
    %v2284 = vunpack.c.l.b16 %v2236
    %v2285 = vunpack.c.l.b16 %v2237
    %v2286 = vunpack.c.l.b16 %v2238
    %v2287 = vunpack.c.l.b16 %v2239
    %v2288 = vunpack.c.l.b16 %v2240
    %v2289 = vunpack.c.l.b16 %v2241
    %v2290 = vunpack.c.l.b16 %v2242
    %v2291 = vunpack.c.l.b16 %v2243
    %v2292 = vunpack.c.l.b16 %v2244
    %v2293 = vunpack.c.l.b16 %v2245
    %v2294 = vunpack.c.l.b16 %v2246
    %v2295 = vpack.c.b16 %v2280, %v2279
    %v2296 = vpack.c.b16 %v2282, %v2281
    %v2297 = vpack.c.b16 %v2284, %v2283
    %v2298 = vpack.c.b16 %v2286, %v2285
    %v2299 = vpack.c.b16 %v2288, %v2287
    %v2300 = vpack.c.b16 %v2290, %v2289
    %v2301 = vpack.c.b16 %v2292, %v2291
    %v2302 = vpack.c.b16 %v2294, %v2293
    %v2327 = vunpack.c.l.b16 %v2247
    %v2328 = vunpack.c.l.b16 %v2248
    %v2329 = vunpack.c.l.b16 %v2249
    %v2330 = vunpack.c.l.b16 %v2250
    %v2331 = vunpack.c.l.b16 %v2251
    %v2332 = vunpack.c.l.b16 %v2252
    %v2333 = vunpack.c.l.b16 %v2253
    %v2334 = vunpack.c.l.b16 %v2254
    %v2335 = vunpack.c.l.b16 %v2255
    %v2336 = vunpack.c.l.b16 %v2256
    %v2337 = vunpack.c.l.b16 %v2257
    %v2338 = vunpack.c.l.b16 %v2258
    %v2339 = vunpack.c.l.b16 %v2259
    %v2340 = vunpack.c.l.b16 %v2260
    %v2341 = vunpack.c.l.b16 %v2261
    %v2342 = vunpack.c.l.b16 %v2262
    %v2343 = vpack.c.b16 %v2328, %v2327
    %v2344 = vpack.c.b16 %v2330, %v2329
    %v2345 = vpack.c.b16 %v2332, %v2331
    %v2346 = vpack.c.b16 %v2334, %v2333
    %v2347 = vpack.c.b16 %v2336, %v2335
    %v2348 = vpack.c.b16 %v2338, %v2337
    %v2349 = vpack.c.b16 %v2340, %v2339
    %v2350 = vpack.c.b16 %v2342, %v2341
    %2359 = vmatprep.subr.bf16.mxu0 0
    %2360 = vmatpush1.bf16.msra.mxu0 %v2350
    %2361 = vmatprep.subr.bf16.mxu0 0
    %2362 = vmatpush1.bf16.msra.mxu0 %v2349
    %2363 = vmatprep.subr.bf16.mxu0 0
    %2364 = vmatpush1.bf16.msra.mxu0 %v2348
    %2365 = vmatprep.subr.bf16.mxu0 0
    %2366 = vmatpush1.bf16.msra.mxu0 %v2347
    %2367 = vmatprep.subr.bf16.mxu0 0
    %2368 = vmatpush1.bf16.msra.mxu0 %v2346
    %2369 = vmatprep.subr.bf16.mxu0 0
    %2370 = vmatpush1.bf16.msra.mxu0 %v2345
    %2371 = vmatprep.subr.bf16.mxu0 0
    %2372 = vmatpush1.bf16.msra.mxu0 %v2344
    %2373 = vmatprep.subr.bf16.mxu0 0
    %2374 = vmatpush1.bf16.msra.mxu0 %v2343
    %2375 = vmatprep.subr.bf16.mxu0 0
    %2376 = vmatpush2.bf16.msra.mxu0 0
    %2377 = vmatprep.subr.bf16.mxu0 0
    %2378 = vmatpush2.bf16.msra.mxu0 0
    %2379 = vmatprep.subr.bf16.mxu0 0
    %2380 = vmatpush2.bf16.msra.mxu0 0
    %2381 = vmatprep.subr.bf16.mxu0 0
    %2382 = vmatpush2.bf16.msra.mxu0 0
    %2383 = vmatprep.subr.bf16.mxu0 0
    %2384 = vmatpush2.bf16.msra.mxu0 0
    %2385 = vmatprep.subr.bf16.mxu0 0
    %2386 = vmatpush2.bf16.msra.mxu0 0
    %2387 = vmatprep.subr.bf16.mxu0 0
    %2388 = vmatpush2.bf16.msra.mxu0 0
    %2389 = vmatprep.subr.bf16.mxu0 0
    %2390 = vmatpush2.bf16.msra.mxu0 0
    %2391 = vmatprep.mubr.bf16.mxu0 0
    %2392 = vmatmul.mubr.bf16.gmra.mxu0 %v2295
    %v2393 = vpop.f32.mrf.mxu0
    %v2394 = vadd.f32 0.0, %v2393
    %v2395 = vpop.f32.mrf.mxu0
    %v2396 = vpop.f32.mrf.mxu0
    %v2397 = vadd.f32 0.0, %v2396
    %v2398 = vpop.f32.mrf.mxu0
    %2399 = vmatprep.mubr.bf16.mxu0 0
    %2400 = vmatmul.mubr.bf16.gmra.mxu0 %v2296
    %v2401 = vpop.f32.mrf.mxu0
    %v2402 = vadd.f32 0.0, %v2401
    %v2403 = vpop.f32.mrf.mxu0
    %v2404 = vpop.f32.mrf.mxu0
    %v2405 = vadd.f32 0.0, %v2404
    %v2406 = vpop.f32.mrf.mxu0
    %2407 = vmatprep.mubr.bf16.mxu0 0
    %2408 = vmatmul.mubr.bf16.gmra.mxu0 %v2297
    %v2409 = vpop.f32.mrf.mxu0
    %v2410 = vadd.f32 0.0, %v2409
    %v2411 = vpop.f32.mrf.mxu0
    %v2412 = vpop.f32.mrf.mxu0
    %v2413 = vadd.f32 0.0, %v2412
    %v2414 = vpop.f32.mrf.mxu0
    %2415 = vmatprep.mubr.bf16.mxu0 0
    %2416 = vmatmul.mubr.bf16.gmra.mxu0 %v2298
    %v2417 = vpop.f32.mrf.mxu0
    %v2418 = vadd.f32 0.0, %v2417
    %v2419 = vpop.f32.mrf.mxu0
    %v2420 = vpop.f32.mrf.mxu0
    %v2421 = vadd.f32 0.0, %v2420
    %v2422 = vpop.f32.mrf.mxu0
    %2423 = vmatprep.mubr.bf16.mxu0 0
    %2424 = vmatmul.mubr.bf16.gmra.mxu0 %v2299
    %v2425 = vpop.f32.mrf.mxu0
    %v2426 = vadd.f32 0.0, %v2425
    %v2427 = vpop.f32.mrf.mxu0
    %v2428 = vpop.f32.mrf.mxu0
    %v2429 = vadd.f32 0.0, %v2428
    %v2430 = vpop.f32.mrf.mxu0
    %2431 = vmatprep.mubr.bf16.mxu0 0
    %2432 = vmatmul.mubr.bf16.gmra.mxu0 %v2300
    %v2433 = vpop.f32.mrf.mxu0
    %v2434 = vadd.f32 0.0, %v2433
    %v2435 = vpop.f32.mrf.mxu0
    %v2436 = vpop.f32.mrf.mxu0
    %v2437 = vadd.f32 0.0, %v2436
    %v2438 = vpop.f32.mrf.mxu0
    %2439 = vmatprep.mubr.bf16.mxu0 0
    %2440 = vmatmul.mubr.bf16.gmra.mxu0 %v2301
    %v2441 = vpop.f32.mrf.mxu0
    %v2442 = vadd.f32 0.0, %v2441
    %v2443 = vpop.f32.mrf.mxu0
    %v2444 = vpop.f32.mrf.mxu0
    %v2445 = vadd.f32 0.0, %v2444
    %v2446 = vpop.f32.mrf.mxu0
    %2447 = vmatprep.mubr.bf16.mxu0 0
    %2448 = vmatmul.mubr.bf16.gmra.mxu0 %v2302
    %v2449 = vpop.f32.mrf.mxu0
    %v2450 = vadd.f32 0.0, %v2449
    %v2451 = vpop.f32.mrf.mxu0
    %v2452 = vpop.f32.mrf.mxu0
    %v2453 = vadd.f32 0.0, %v2452
    %v2454 = vpop.f32.mrf.mxu0
    %2455 = vdwg.mxu0
    %v2457 = vlaneseq
    %v2458 = vshrl.u32 %v2457, 7
    %v2459 = vsub.s32 0, %v2458
    %v2460 = vrot.slane %v2198, %v2459
    %2462 = vmatprep.subr.mxu0 0.0
    %2463 = vmatpush1.msra.mxu0 %v2196
    %2464 = vmatprep.subr.mxu0 0.0
    %2465 = vmatpush1.msra.mxu0 %v2195
    %2466 = vmatprep.subr.mxu0 0.0
    %2467 = vmatpush1.msra.mxu0 %v2194
    %2468 = vmatprep.subr.mxu0 0.0
    %2469 = vmatpush1.msra.mxu0 %v2193
    %2470 = vmatprep.subr.mxu0 0.0
    %2471 = vmatpush1.msra.mxu0 %v2192
    %2472 = vmatprep.subr.mxu0 0.0
    %2473 = vmatpush1.msra.mxu0 %v2191
    %2474 = vmatprep.subr.mxu0 0.0
    %2475 = vmatpush1.msra.mxu0 %v2190
    %2476 = vmatprep.subr.mxu0 0.0
    %2477 = vmatpush1.msra.mxu0 %v2189
    %2478 = vmatprep.subr.mxu0 0.0
    %2479 = vmatpush1.msra.mxu0 %v2188
    %2480 = vmatprep.subr.mxu0 0.0
    %2481 = vmatpush1.msra.mxu0 %v2187
    %2482 = vmatprep.subr.mxu0 0.0
    %2483 = vmatpush1.msra.mxu0 %v2186
    %2484 = vmatprep.subr.mxu0 0.0
    %2485 = vmatpush1.msra.mxu0 %v2185
    %2486 = vmatprep.subr.mxu0 0.0
    %2487 = vmatpush1.msra.mxu0 %v2184
    %2488 = vmatprep.subr.mxu0 0.0
    %2489 = vmatpush1.msra.mxu0 %v2183
    %2490 = vmatprep.subr.mxu0 0.0
    %2491 = vmatpush1.msra.mxu0 %v2182
    %2492 = vmatprep.subr.mxu0 0.0
    %2493 = vmatpush1.msra.mxu0 %v2181
    %2494 = vmatprep.subr.mxu0 0.0
    %2495 = vmatpush2.msra.mxu0 0.0
    %2496 = vmatprep.subr.mxu0 0.0
    %2497 = vmatpush2.msra.mxu0 0.0
    %2498 = vmatprep.subr.mxu0 0.0
    %2499 = vmatpush2.msra.mxu0 0.0
    %2500 = vmatprep.subr.mxu0 0.0
    %2501 = vmatpush2.msra.mxu0 0.0
    %2502 = vmatprep.subr.mxu0 0.0
    %2503 = vmatpush2.msra.mxu0 0.0
    %2504 = vmatprep.subr.mxu0 0.0
    %2505 = vmatpush2.msra.mxu0 0.0
    %2506 = vmatprep.subr.mxu0 0.0
    %2507 = vmatpush2.msra.mxu0 0.0
    %2508 = vmatprep.subr.mxu0 0.0
    %2509 = vmatpush2.msra.mxu0 0.0
    %2510 = vmatprep.subr.mxu0 0.0
    %2511 = vmatpush2.msra.mxu0 0.0
    %2512 = vmatprep.subr.mxu0 0.0
    %2513 = vmatpush2.msra.mxu0 0.0
    %2514 = vmatprep.subr.mxu0 0.0
    %2515 = vmatpush2.msra.mxu0 0.0
    %2516 = vmatprep.subr.mxu0 0.0
    %2517 = vmatpush2.msra.mxu0 0.0
    %2518 = vmatprep.subr.mxu0 0.0
    %2519 = vmatpush2.msra.mxu0 0.0
    %2520 = vmatprep.subr.mxu0 0.0
    %2521 = vmatpush2.msra.mxu0 0.0
    %2522 = vmatprep.subr.mxu0 0.0
    %2523 = vmatpush2.msra.mxu0 0.0
    %2524 = vmatprep.subr.mxu0 0.0
    %2525 = vmatpush2.msra.mxu0 0.0
    %2526 = vmatprep.mubr.f32.mxu0 0.0
    %2527 = vmatmul.mubr.f32.gmra.mxu0 %v2394
    %v2528 = vpop.f32.mrf.mxu0
    %v2529 = vadd.f32 %v2460, %v2528
    %v2530 = vpop.f32.mrf.mxu0
    %2531 = vmatprep.mubr.f32.mxu0 0.0
    %2532 = vmatmul.mubr.f32.gmra.mxu0 %v2397
    %v2533 = vpop.f32.mrf.mxu0
    %v2534 = vadd.f32 %v2460, %v2533
    %v2535 = vpop.f32.mrf.mxu0
    %2536 = vmatprep.mubr.f32.mxu0 0.0
    %2537 = vmatmul.mubr.f32.gmra.mxu0 %v2402
    %v2538 = vpop.f32.mrf.mxu0
    %v2539 = vadd.f32 %v2460, %v2538
    %v2540 = vpop.f32.mrf.mxu0
    %2541 = vmatprep.mubr.f32.mxu0 0.0
    %2542 = vmatmul.mubr.f32.gmra.mxu0 %v2405
    %v2543 = vpop.f32.mrf.mxu0
    %v2544 = vadd.f32 %v2460, %v2543
    %v2545 = vpop.f32.mrf.mxu0
    %2546 = vmatprep.mubr.f32.mxu0 0.0
    %2547 = vmatmul.mubr.f32.gmra.mxu0 %v2410
    %v2548 = vpop.f32.mrf.mxu0
    %v2549 = vadd.f32 %v2460, %v2548
    %v2550 = vpop.f32.mrf.mxu0
    %2551 = vmatprep.mubr.f32.mxu0 0.0
    %2552 = vmatmul.mubr.f32.gmra.mxu0 %v2413
    %v2553 = vpop.f32.mrf.mxu0
    %v2554 = vadd.f32 %v2460, %v2553
    %v2555 = vpop.f32.mrf.mxu0
    %2556 = vmatprep.mubr.f32.mxu0 0.0
    %2557 = vmatmul.mubr.f32.gmra.mxu0 %v2418
    %v2558 = vpop.f32.mrf.mxu0
    %v2559 = vadd.f32 %v2460, %v2558
    %v2560 = vpop.f32.mrf.mxu0
    %2561 = vmatprep.mubr.f32.mxu0 0.0
    %2562 = vmatmul.mubr.f32.gmra.mxu0 %v2421
    %v2563 = vpop.f32.mrf.mxu0
    %v2564 = vadd.f32 %v2460, %v2563
    %v2565 = vpop.f32.mrf.mxu0
    %2566 = vmatprep.mubr.f32.mxu0 0.0
    %2567 = vmatmul.mubr.f32.gmra.mxu0 %v2426
    %v2568 = vpop.f32.mrf.mxu0
    %v2569 = vadd.f32 %v2460, %v2568
    %v2570 = vpop.f32.mrf.mxu0
    %2571 = vmatprep.mubr.f32.mxu0 0.0
    %2572 = vmatmul.mubr.f32.gmra.mxu0 %v2429
    %v2573 = vpop.f32.mrf.mxu0
    %v2574 = vadd.f32 %v2460, %v2573
    %v2575 = vpop.f32.mrf.mxu0
    %2576 = vmatprep.mubr.f32.mxu0 0.0
    %2577 = vmatmul.mubr.f32.gmra.mxu0 %v2434
    %v2578 = vpop.f32.mrf.mxu0
    %v2579 = vadd.f32 %v2460, %v2578
    %v2580 = vpop.f32.mrf.mxu0
    %2581 = vmatprep.mubr.f32.mxu0 0.0
    %2582 = vmatmul.mubr.f32.gmra.mxu0 %v2437
    %v2583 = vpop.f32.mrf.mxu0
    %v2584 = vadd.f32 %v2460, %v2583
    %v2585 = vpop.f32.mrf.mxu0
    %2586 = vmatprep.mubr.f32.mxu0 0.0
    %2587 = vmatmul.mubr.f32.gmra.mxu0 %v2442
    %v2588 = vpop.f32.mrf.mxu0
    %v2589 = vadd.f32 %v2460, %v2588
    %v2590 = vpop.f32.mrf.mxu0
    %2591 = vmatprep.mubr.f32.mxu0 0.0
    %2592 = vmatmul.mubr.f32.gmra.mxu0 %v2445
    %v2593 = vpop.f32.mrf.mxu0
    %v2594 = vadd.f32 %v2460, %v2593
    %v2595 = vpop.f32.mrf.mxu0
    %2596 = vmatprep.mubr.f32.mxu0 0.0
    %2597 = vmatmul.mubr.f32.gmra.mxu0 %v2450
    %v2598 = vpop.f32.mrf.mxu0
    %v2599 = vadd.f32 %v2460, %v2598
    %v2600 = vpop.f32.mrf.mxu0
    %2601 = vmatprep.mubr.f32.mxu0 0.0
    %2602 = vmatmul.mubr.f32.gmra.mxu0 %v2453
    %v2603 = vpop.f32.mrf.mxu0
    %v2604 = vadd.f32 %v2460, %v2603
    %v2605 = vpop.f32.mrf.mxu0
    %2606 = vdwg.mxu0
    %v2607 = vmax.f32 %v2529, 0.0
    %v2608 = vmax.f32 %v2534, 0.0
    %v2609 = vmax.f32 %v2539, 0.0
    %v2610 = vmax.f32 %v2544, 0.0
    %v2611 = vmax.f32 %v2549, 0.0
    %v2612 = vmax.f32 %v2554, 0.0
    %v2613 = vmax.f32 %v2559, 0.0
    %v2614 = vmax.f32 %v2564, 0.0
    %v2615 = vmax.f32 %v2569, 0.0
    %v2616 = vmax.f32 %v2574, 0.0
    %v2617 = vmax.f32 %v2579, 0.0
    %v2618 = vmax.f32 %v2584, 0.0
    %v2619 = vmax.f32 %v2589, 0.0
    %v2620 = vmax.f32 %v2594, 0.0
    %v2621 = vmax.f32 %v2599, 0.0
    %v2622 = vmax.f32 %v2604, 0.0
    %v2624 = vlaneseq
    %v2625 = vshrl.u32 %v2624, 7
    %v2626 = vsub.s32 0, %v2625
    %v2627 = vrot.slane %v2217, %v2626
    %2629 = vmatprep.subr.mxu0 0.0
    %2630 = vmatpush1.msra.mxu0 %v2215
    %2631 = vmatprep.subr.mxu0 0.0
    %2632 = vmatpush1.msra.mxu0 %v2214
    %2633 = vmatprep.subr.mxu0 0.0
    %2634 = vmatpush1.msra.mxu0 %v2213
    %2635 = vmatprep.subr.mxu0 0.0
    %2636 = vmatpush1.msra.mxu0 %v2212
    %2637 = vmatprep.subr.mxu0 0.0
    %2638 = vmatpush1.msra.mxu0 %v2211
    %2639 = vmatprep.subr.mxu0 0.0
    %2640 = vmatpush1.msra.mxu0 %v2210
    %2641 = vmatprep.subr.mxu0 0.0
    %2642 = vmatpush1.msra.mxu0 %v2209
    %2643 = vmatprep.subr.mxu0 0.0
    %2644 = vmatpush1.msra.mxu0 %v2208
    %2645 = vmatprep.subr.mxu0 0.0
    %2646 = vmatpush1.msra.mxu0 %v2207
    %2647 = vmatprep.subr.mxu0 0.0
    %2648 = vmatpush1.msra.mxu0 %v2206
    %2649 = vmatprep.subr.mxu0 0.0
    %2650 = vmatpush1.msra.mxu0 %v2205
    %2651 = vmatprep.subr.mxu0 0.0
    %2652 = vmatpush1.msra.mxu0 %v2204
    %2653 = vmatprep.subr.mxu0 0.0
    %2654 = vmatpush1.msra.mxu0 %v2203
    %2655 = vmatprep.subr.mxu0 0.0
    %2656 = vmatpush1.msra.mxu0 %v2202
    %2657 = vmatprep.subr.mxu0 0.0
    %2658 = vmatpush1.msra.mxu0 %v2201
    %2659 = vmatprep.subr.mxu0 0.0
    %2660 = vmatpush1.msra.mxu0 %v2200
    %2661 = vmatprep.subr.mxu0 0.0
    %2662 = vmatpush2.msra.mxu0 0.0
    %2663 = vmatprep.subr.mxu0 0.0
    %2664 = vmatpush2.msra.mxu0 0.0
    %2665 = vmatprep.subr.mxu0 0.0
    %2666 = vmatpush2.msra.mxu0 0.0
    %2667 = vmatprep.subr.mxu0 0.0
    %2668 = vmatpush2.msra.mxu0 0.0
    %2669 = vmatprep.subr.mxu0 0.0
    %2670 = vmatpush2.msra.mxu0 0.0
    %2671 = vmatprep.subr.mxu0 0.0
    %2672 = vmatpush2.msra.mxu0 0.0
    %2673 = vmatprep.subr.mxu0 0.0
    %2674 = vmatpush2.msra.mxu0 0.0
    %2675 = vmatprep.subr.mxu0 0.0
    %2676 = vmatpush2.msra.mxu0 0.0
    %2677 = vmatprep.subr.mxu0 0.0
    %2678 = vmatpush2.msra.mxu0 0.0
    %2679 = vmatprep.subr.mxu0 0.0
    %2680 = vmatpush2.msra.mxu0 0.0
    %2681 = vmatprep.subr.mxu0 0.0
    %2682 = vmatpush2.msra.mxu0 0.0
    %2683 = vmatprep.subr.mxu0 0.0
    %2684 = vmatpush2.msra.mxu0 0.0
    %2685 = vmatprep.subr.mxu0 0.0
    %2686 = vmatpush2.msra.mxu0 0.0
    %2687 = vmatprep.subr.mxu0 0.0
    %2688 = vmatpush2.msra.mxu0 0.0
    %2689 = vmatprep.subr.mxu0 0.0
    %2690 = vmatpush2.msra.mxu0 0.0
    %2691 = vmatprep.subr.mxu0 0.0
    %2692 = vmatpush2.msra.mxu0 0.0
    %2693 = vmatprep.mubr.f32.mxu0 0.0
    %2694 = vmatmul.mubr.f32.gmra.mxu0 %v2607
    %v2695 = vpop.f32.mrf.mxu0
    %v2696 = vadd.f32 %v2627, %v2695
    %v2697 = vpop.f32.mrf.mxu0
    %2698 = vmatprep.mubr.f32.mxu0 0.0
    %2699 = vmatmul.mubr.f32.gmra.mxu0 %v2608
    %v2700 = vpop.f32.mrf.mxu0
    %v2701 = vadd.f32 %v2627, %v2700
    %v2702 = vpop.f32.mrf.mxu0
    %2703 = vmatprep.mubr.f32.mxu0 0.0
    %2704 = vmatmul.mubr.f32.gmra.mxu0 %v2609
    %v2705 = vpop.f32.mrf.mxu0
    %v2706 = vadd.f32 %v2627, %v2705
    %v2707 = vpop.f32.mrf.mxu0
    %2708 = vmatprep.mubr.f32.mxu0 0.0
    %2709 = vmatmul.mubr.f32.gmra.mxu0 %v2610
    %v2710 = vpop.f32.mrf.mxu0
    %v2711 = vadd.f32 %v2627, %v2710
    %v2712 = vpop.f32.mrf.mxu0
    %2713 = vmatprep.mubr.f32.mxu0 0.0
    %2714 = vmatmul.mubr.f32.gmra.mxu0 %v2611
    %v2715 = vpop.f32.mrf.mxu0
    %v2716 = vadd.f32 %v2627, %v2715
    %v2717 = vpop.f32.mrf.mxu0
    %2718 = vmatprep.mubr.f32.mxu0 0.0
    %2719 = vmatmul.mubr.f32.gmra.mxu0 %v2612
    %v2720 = vpop.f32.mrf.mxu0
    %v2721 = vadd.f32 %v2627, %v2720
    %v2722 = vpop.f32.mrf.mxu0
    %2723 = vmatprep.mubr.f32.mxu0 0.0
    %2724 = vmatmul.mubr.f32.gmra.mxu0 %v2613
    %v2725 = vpop.f32.mrf.mxu0
    %v2726 = vadd.f32 %v2627, %v2725
    %v2727 = vpop.f32.mrf.mxu0
    %2728 = vmatprep.mubr.f32.mxu0 0.0
    %2729 = vmatmul.mubr.f32.gmra.mxu0 %v2614
    %v2730 = vpop.f32.mrf.mxu0
    %v2731 = vadd.f32 %v2627, %v2730
    %v2732 = vpop.f32.mrf.mxu0
    %2733 = vmatprep.mubr.f32.mxu0 0.0
    %2734 = vmatmul.mubr.f32.gmra.mxu0 %v2615
    %v2735 = vpop.f32.mrf.mxu0
    %v2736 = vadd.f32 %v2627, %v2735
    %v2737 = vpop.f32.mrf.mxu0
    %2738 = vmatprep.mubr.f32.mxu0 0.0
    %2739 = vmatmul.mubr.f32.gmra.mxu0 %v2616
    %v2740 = vpop.f32.mrf.mxu0
    %v2741 = vadd.f32 %v2627, %v2740
    %v2742 = vpop.f32.mrf.mxu0
    %2743 = vmatprep.mubr.f32.mxu0 0.0
    %2744 = vmatmul.mubr.f32.gmra.mxu0 %v2617
    %v2745 = vpop.f32.mrf.mxu0
    %v2746 = vadd.f32 %v2627, %v2745
    %v2747 = vpop.f32.mrf.mxu0
    %2748 = vmatprep.mubr.f32.mxu0 0.0
    %2749 = vmatmul.mubr.f32.gmra.mxu0 %v2618
    %v2750 = vpop.f32.mrf.mxu0
    %v2751 = vadd.f32 %v2627, %v2750
    %v2752 = vpop.f32.mrf.mxu0
    %2753 = vmatprep.mubr.f32.mxu0 0.0
    %2754 = vmatmul.mubr.f32.gmra.mxu0 %v2619
    %v2755 = vpop.f32.mrf.mxu0
    %v2756 = vadd.f32 %v2627, %v2755
    %v2757 = vpop.f32.mrf.mxu0
    %2758 = vmatprep.mubr.f32.mxu0 0.0
    %2759 = vmatmul.mubr.f32.gmra.mxu0 %v2620
    %v2760 = vpop.f32.mrf.mxu0
    %v2761 = vadd.f32 %v2627, %v2760
    %v2762 = vpop.f32.mrf.mxu0
    %2763 = vmatprep.mubr.f32.mxu0 0.0
    %2764 = vmatmul.mubr.f32.gmra.mxu0 %v2621
    %v2765 = vpop.f32.mrf.mxu0
    %v2766 = vadd.f32 %v2627, %v2765
    %v2767 = vpop.f32.mrf.mxu0
    %2768 = vmatprep.mubr.f32.mxu0 0.0
    %2769 = vmatmul.mubr.f32.gmra.mxu0 %v2622
    %v2770 = vpop.f32.mrf.mxu0
    %v2771 = vadd.f32 %v2627, %v2770
    %v2772 = vpop.f32.mrf.mxu0
    %2773 = vdwg.mxu0
    %2774 = vst [vmem:[#allocation3] sm:$0xff] %v2696
    %2775 = vst [vmem:[#allocation3 + $0x8] sm:$0xff] %v2701
    %2776 = vst [vmem:[#allocation3 + $0x10] sm:$0xff] %v2706
    %2777 = vst [vmem:[#allocation3 + $0x18] sm:$0xff] %v2711
    %2778 = vst [vmem:[#allocation3 + $0x20] sm:$0xff] %v2716
    %2779 = vst [vmem:[#allocation3 + $0x28] sm:$0xff] %v2721
    %2780 = vst [vmem:[#allocation3 + $0x30] sm:$0xff] %v2726
    %2781 = vst [vmem:[#allocation3 + $0x38] sm:$0xff] %v2731
    %2782 = vst [vmem:[#allocation3 + $0x40] sm:$0xff] %v2736
    %2783 = vst [vmem:[#allocation3 + $0x48] sm:$0xff] %v2741
    %2784 = vst [vmem:[#allocation3 + $0x50] sm:$0xff] %v2746
    %2785 = vst [vmem:[#allocation3 + $0x58] sm:$0xff] %v2751
    %2786 = vst [vmem:[#allocation3 + $0x60] sm:$0xff] %v2756
    %2787 = vst [vmem:[#allocation3 + $0x68] sm:$0xff] %v2761
    %2788 = vst [vmem:[#allocation3 + $0x70] sm:$0xff] %v2766
    %2789 = vst [vmem:[#allocation3 + $0x78] sm:$0xff] %v2771
    %v2790 = vld [vmem:[#allocation3] sm:$0xff]
    %v2791 = vld [vmem:[#allocation3 + $0x8] sm:$0xff]
    %v2792 = vld [vmem:[#allocation3 + $0x10] sm:$0xff]
    %v2793 = vld [vmem:[#allocation3 + $0x18] sm:$0xff]
    %v2794 = vld [vmem:[#allocation3 + $0x20] sm:$0xff]
    %v2795 = vld [vmem:[#allocation3 + $0x28] sm:$0xff]
    %v2796 = vld [vmem:[#allocation3 + $0x30] sm:$0xff]
    %v2797 = vld [vmem:[#allocation3 + $0x38] sm:$0xff]
    %v2798 = vld [vmem:[#allocation3 + $0x40] sm:$0xff]
    %v2799 = vld [vmem:[#allocation3 + $0x48] sm:$0xff]
    %v2800 = vld [vmem:[#allocation3 + $0x50] sm:$0xff]
    %v2801 = vld [vmem:[#allocation3 + $0x58] sm:$0xff]
    %v2802 = vld [vmem:[#allocation3 + $0x60] sm:$0xff]
    %v2803 = vld [vmem:[#allocation3 + $0x68] sm:$0xff]
    %v2804 = vld [vmem:[#allocation3 + $0x70] sm:$0xff]
    %v2805 = vld [vmem:[#allocation3 + $0x78] sm:$0xff]
    %v2806 = vsel %vm904, %v2790, 0.0
    %v2807 = vsel %vm905, %v2791, 0.0
    %v2808 = vsel %vm906, %v2792, 0.0
    %v2809 = vsel %vm907, %v2793, 0.0
    %v2810 = vsel %vm908, %v2794, 0.0
    %v2811 = vsel %vm909, %v2795, 0.0
    %v2812 = vsel %vm910, %v2796, 0.0
    %v2813 = vsel %vm911, %v2797, 0.0
    %v2814 = vsel %vm912, %v2798, 0.0
    %v2815 = vsel %vm913, %v2799, 0.0
    %v2816 = vsel %vm914, %v2800, 0.0
    %v2817 = vsel %vm915, %v2801, 0.0
    %v2818 = vsel %vm916, %v2802, 0.0
    %v2819 = vsel %vm917, %v2803, 0.0
    %v2820 = vsel %vm918, %v2804, 0.0
    %v2821 = vsel %vm919, %v2805, 0.0
    %v2822 = vadd.f32 %v2806, %v2807
    %v2823 = vadd.f32 %v2822, %v2808
    %v2824 = vadd.f32 %v2823, %v2809
    %v2825 = vadd.f32 %v2824, %v2810
    %v2826 = vadd.f32 %v2825, %v2811
    %v2827 = vadd.f32 %v2826, %v2812
    %v2828 = vadd.f32 %v2827, %v2813
    %v2829 = vadd.f32 %v2828, %v2814
    %v2830 = vadd.f32 %v2829, %v2815
    %v2831 = vadd.f32 %v2830, %v2816
    %v2832 = vadd.f32 %v2831, %v2817
    %v2833 = vadd.f32 %v2832, %v2818
    %v2834 = vadd.f32 %v2833, %v2819
    %v2835 = vadd.f32 %v2834, %v2820
    %v2836 = vadd.f32 %v2835, %v2821
    %v2837 = vrot.slane %v2836, 4
    %v2838 = vadd.f32 %v2836, %v2837
    %v2839 = vrot.slane %v2838, 2
    %v2840 = vadd.f32 %v2838, %v2839
    %v2841 = vrot.slane %v2840, 1
    %v2842 = vadd.f32 %v2840, %v2841
    %v2843 = vmul.f32 %v2842, 0.0625
    %v2844 = vsub.f32 %v2790, %v2843
    %v2845 = vsub.f32 %v2791, %v2843
    %v2846 = vsub.f32 %v2792, %v2843
    %v2847 = vsub.f32 %v2793, %v2843
    %v2848 = vsub.f32 %v2794, %v2843
    %v2849 = vsub.f32 %v2795, %v2843
    %v2850 = vsub.f32 %v2796, %v2843
    %v2851 = vsub.f32 %v2797, %v2843
    %v2852 = vsub.f32 %v2798, %v2843
    %v2853 = vsub.f32 %v2799, %v2843
    %v2854 = vsub.f32 %v2800, %v2843
    %v2855 = vsub.f32 %v2801, %v2843
    %v2856 = vsub.f32 %v2802, %v2843
    %v2857 = vsub.f32 %v2803, %v2843
    %v2858 = vsub.f32 %v2804, %v2843
    %v2859 = vsub.f32 %v2805, %v2843
    %v2860 = vmul.f32 %v2844, %v2844
    %v2861 = vmul.f32 %v2845, %v2845
    %v2862 = vmul.f32 %v2846, %v2846
    %v2863 = vmul.f32 %v2847, %v2847
    %v2864 = vmul.f32 %v2848, %v2848
    %v2865 = vmul.f32 %v2849, %v2849
    %v2866 = vmul.f32 %v2850, %v2850
    %v2867 = vmul.f32 %v2851, %v2851
    %v2868 = vmul.f32 %v2852, %v2852
    %v2869 = vmul.f32 %v2853, %v2853
    %v2870 = vmul.f32 %v2854, %v2854
    %v2871 = vmul.f32 %v2855, %v2855
    %v2872 = vmul.f32 %v2856, %v2856
    %v2873 = vmul.f32 %v2857, %v2857
    %v2874 = vmul.f32 %v2858, %v2858
    %v2875 = vmul.f32 %v2859, %v2859
    %v2876 = vsel %vm904, %v2860, 0.0
    %v2877 = vsel %vm905, %v2861, 0.0
    %v2878 = vsel %vm906, %v2862, 0.0
    %v2879 = vsel %vm907, %v2863, 0.0
    %v2880 = vsel %vm908, %v2864, 0.0
    %v2881 = vsel %vm909, %v2865, 0.0
    %v2882 = vsel %vm910, %v2866, 0.0
    %v2883 = vsel %vm911, %v2867, 0.0
    %v2884 = vsel %vm912, %v2868, 0.0
    %v2885 = vsel %vm913, %v2869, 0.0
    %v2886 = vsel %vm914, %v2870, 0.0
    %v2887 = vsel %vm915, %v2871, 0.0
    %v2888 = vsel %vm916, %v2872, 0.0
    %v2889 = vsel %vm917, %v2873, 0.0
    %v2890 = vsel %vm918, %v2874, 0.0
    %v2891 = vsel %vm919, %v2875, 0.0
    %v2892 = vadd.f32 %v2876, %v2877
    %v2893 = vadd.f32 %v2892, %v2878
    %v2894 = vadd.f32 %v2893, %v2879
    %v2895 = vadd.f32 %v2894, %v2880
    %v2896 = vadd.f32 %v2895, %v2881
    %v2897 = vadd.f32 %v2896, %v2882
    %v2898 = vadd.f32 %v2897, %v2883
    %v2899 = vadd.f32 %v2898, %v2884
    %v2900 = vadd.f32 %v2899, %v2885
    %v2901 = vadd.f32 %v2900, %v2886
    %v2902 = vadd.f32 %v2901, %v2887
    %v2903 = vadd.f32 %v2902, %v2888
    %v2904 = vadd.f32 %v2903, %v2889
    %v2905 = vadd.f32 %v2904, %v2890
    %v2906 = vadd.f32 %v2905, %v2891
    %v2907 = vrot.slane %v2906, 4
    %v2908 = vadd.f32 %v2906, %v2907
    %v2909 = vrot.slane %v2908, 2
    %v2910 = vadd.f32 %v2908, %v2909
    %v2911 = vrot.slane %v2910, 1
    %v2912 = vadd.f32 %v2910, %v2911
    %v2913 = vmul.f32 %v2912, 0.0625
    %v2914 = vadd.f32 %v2913, 1e-05
    %v2915 = vrsqrt.pop %v2914
    %v2916 = vmul.f32 %v2844, %v2915
    %v2917 = vmul.f32 %v2845, %v2915
    %v2918 = vmul.f32 %v2846, %v2915
    %v2919 = vmul.f32 %v2847, %v2915
    %v2920 = vmul.f32 %v2848, %v2915
    %v2921 = vmul.f32 %v2849, %v2915
    %v2922 = vmul.f32 %v2850, %v2915
    %v2923 = vmul.f32 %v2851, %v2915
    %v2924 = vmul.f32 %v2852, %v2915
    %v2925 = vmul.f32 %v2853, %v2915
    %v2926 = vmul.f32 %v2854, %v2915
    %v2927 = vmul.f32 %v2855, %v2915
    %v2928 = vmul.f32 %v2856, %v2915
    %v2929 = vmul.f32 %v2857, %v2915
    %v2930 = vmul.f32 %v2858, %v2915
    %v2931 = vmul.f32 %v2859, %v2915
    %s2932 = scalar_lea.vmem [#allocation13], 2
    %v2933 = vld [vmem:[%s2932] sm:$0x1]
    %v2935 = vlaneseq
    %v2936 = vshrl.u32 %v2935, 7
    %v2937 = vsub.s32 0, %v2936
    %v2938 = vrot.slane %v2933, %v2937
    %v2940 = vmul.f32 %v2916, %v2938
    %v2941 = vmul.f32 %v2917, %v2938
    %v2942 = vmul.f32 %v2918, %v2938
    %v2943 = vmul.f32 %v2919, %v2938
    %v2944 = vmul.f32 %v2920, %v2938
    %v2945 = vmul.f32 %v2921, %v2938
    %v2946 = vmul.f32 %v2922, %v2938
    %v2947 = vmul.f32 %v2923, %v2938
    %v2948 = vmul.f32 %v2924, %v2938
    %v2949 = vmul.f32 %v2925, %v2938
    %v2950 = vmul.f32 %v2926, %v2938
    %v2951 = vmul.f32 %v2927, %v2938
    %v2952 = vmul.f32 %v2928, %v2938
    %v2953 = vmul.f32 %v2929, %v2938
    %v2954 = vmul.f32 %v2930, %v2938
    %v2955 = vmul.f32 %v2931, %v2938
    %s2956 = scalar_lea.vmem %s7, 2
    %v2957 = vld [vmem:[%s2956] sm:$0x1]
    %v2959 = vlaneseq
    %v2960 = vshrl.u32 %v2959, 7
    %v2961 = vsub.s32 0, %v2960
    %v2962 = vrot.slane %v2957, %v2961
    %v2964 = vadd.f32 %v2940, %v2962
    %v2965 = vadd.f32 %v2941, %v2962
    %v2966 = vadd.f32 %v2942, %v2962
    %v2967 = vadd.f32 %v2943, %v2962
    %v2968 = vadd.f32 %v2944, %v2962
    %v2969 = vadd.f32 %v2945, %v2962
    %v2970 = vadd.f32 %v2946, %v2962
    %v2971 = vadd.f32 %v2947, %v2962
    %v2972 = vadd.f32 %v2948, %v2962
    %v2973 = vadd.f32 %v2949, %v2962
    %v2974 = vadd.f32 %v2950, %v2962
    %v2975 = vadd.f32 %v2951, %v2962
    %v2976 = vadd.f32 %v2952, %v2962
    %v2977 = vadd.f32 %v2953, %v2962
    %v2978 = vadd.f32 %v2954, %v2962
    %v2979 = vadd.f32 %v2955, %v2962
    %v2980 = vmax.f32 %v2964, 0.0
    %v2981 = vmax.f32 %v2965, 0.0
    %v2982 = vmax.f32 %v2966, 0.0
    %v2983 = vmax.f32 %v2967, 0.0
    %v2984 = vmax.f32 %v2968, 0.0
    %v2985 = vmax.f32 %v2969, 0.0
    %v2986 = vmax.f32 %v2970, 0.0
    %v2987 = vmax.f32 %v2971, 0.0
    %v2988 = vmax.f32 %v2972, 0.0
    %v2989 = vmax.f32 %v2973, 0.0
    %v2990 = vmax.f32 %v2974, 0.0
    %v2991 = vmax.f32 %v2975, 0.0
    %v2992 = vmax.f32 %v2976, 0.0
    %v2993 = vmax.f32 %v2977, 0.0
    %v2994 = vmax.f32 %v2978, 0.0
    %v2995 = vmax.f32 %v2979, 0.0
    %v2996 = vsel %vm904, %v2980, 0.0
    %v2997 = vsel %vm905, %v2981, 0.0
    %v2998 = vsel %vm906, %v2982, 0.0
    %v2999 = vsel %vm907, %v2983, 0.0
    %v3000 = vsel %vm908, %v2984, 0.0
    %v3001 = vsel %vm909, %v2985, 0.0
    %v3002 = vsel %vm910, %v2986, 0.0
    %v3003 = vsel %vm911, %v2987, 0.0
    %v3004 = vsel %vm912, %v2988, 0.0
    %v3005 = vsel %vm913, %v2989, 0.0
    %v3006 = vsel %vm914, %v2990, 0.0
    %v3007 = vsel %vm915, %v2991, 0.0
    %v3008 = vsel %vm916, %v2992, 0.0
    %v3009 = vsel %vm917, %v2993, 0.0
    %v3010 = vsel %vm918, %v2994, 0.0
    %v3011 = vsel %vm919, %v2995, 0.0
    %3012 = vst [vmem:[#allocation2] sm:$0xff] %v2996
    %3013 = vst [vmem:[#allocation2 + $0x8] sm:$0xff] %v2997
    %3014 = vst [vmem:[#allocation2 + $0x10] sm:$0xff] %v2998
    %3015 = vst [vmem:[#allocation2 + $0x18] sm:$0xff] %v2999
    %3016 = vst [vmem:[#allocation2 + $0x20] sm:$0xff] %v3000
    %3017 = vst [vmem:[#allocation2 + $0x28] sm:$0xff] %v3001
    %3018 = vst [vmem:[#allocation2 + $0x30] sm:$0xff] %v3002
    %3019 = vst [vmem:[#allocation2 + $0x38] sm:$0xff] %v3003
    %3020 = vst [vmem:[#allocation2 + $0x40] sm:$0xff] %v3004
    %3021 = vst [vmem:[#allocation2 + $0x48] sm:$0xff] %v3005
    %3022 = vst [vmem:[#allocation2 + $0x50] sm:$0xff] %v3006
    %3023 = vst [vmem:[#allocation2 + $0x58] sm:$0xff] %v3007
    %3024 = vst [vmem:[#allocation2 + $0x60] sm:$0xff] %v3008
    %3025 = vst [vmem:[#allocation2 + $0x68] sm:$0xff] %v3009
    %3026 = vst [vmem:[#allocation2 + $0x70] sm:$0xff] %v3010
    %3027 = vst [vmem:[#allocation2 + $0x78] sm:$0xff] %v3011
    %v3028 = vld [vmem:[#allocation2] sm:$0xff]
    %v3029 = vld [vmem:[#allocation2 + $0x8] sm:$0xff]
    %v3030 = vld [vmem:[#allocation2 + $0x10] sm:$0xff]
    %v3031 = vld [vmem:[#allocation2 + $0x18] sm:$0xff]
    %v3032 = vld [vmem:[#allocation2 + $0x20] sm:$0xff]
    %v3033 = vld [vmem:[#allocation2 + $0x28] sm:$0xff]
    %v3034 = vld [vmem:[#allocation2 + $0x30] sm:$0xff]
    %v3035 = vld [vmem:[#allocation2 + $0x38] sm:$0xff]
    %v3036 = vld [vmem:[#allocation2 + $0x40] sm:$0xff]
    %v3037 = vld [vmem:[#allocation2 + $0x48] sm:$0xff]
    %v3038 = vld [vmem:[#allocation2 + $0x50] sm:$0xff]
    %v3039 = vld [vmem:[#allocation2 + $0x58] sm:$0xff]
    %v3040 = vld [vmem:[#allocation2 + $0x60] sm:$0xff]
    %v3041 = vld [vmem:[#allocation2 + $0x68] sm:$0xff]
    %v3042 = vld [vmem:[#allocation2 + $0x70] sm:$0xff]
    %v3043 = vld [vmem:[#allocation2 + $0x78] sm:$0xff]
    %v3044 = vpack.c.bf16 %v3029, %v3028
    %v3045 = vpack.c.bf16 %v3031, %v3030
    %v3046 = vpack.c.bf16 %v3033, %v3032
    %v3047 = vpack.c.bf16 %v3035, %v3034
    %v3048 = vpack.c.bf16 %v3037, %v3036
    %v3049 = vpack.c.bf16 %v3039, %v3038
    %v3050 = vpack.c.bf16 %v3041, %v3040
    %v3051 = vpack.c.bf16 %v3043, %v3042
    %v3060 = vunpack.c.l.b16 %v3044
    %v3061 = vunpack.c.h.b16 %v3044
    %v3062 = vunpack.c.l.b16 %v3045
    %v3063 = vunpack.c.h.b16 %v3045
    %v3064 = vunpack.c.l.b16 %v3046
    %v3065 = vunpack.c.h.b16 %v3046
    %v3066 = vunpack.c.l.b16 %v3047
    %v3067 = vunpack.c.h.b16 %v3047
    %v3068 = vunpack.c.l.b16 %v3048
    %v3069 = vunpack.c.h.b16 %v3048
    %v3070 = vunpack.c.l.b16 %v3049
    %v3071 = vunpack.c.h.b16 %v3049
    %v3072 = vunpack.c.l.b16 %v3050
    %v3073 = vunpack.c.h.b16 %v3050
    %v3074 = vunpack.c.l.b16 %v3051
    %v3075 = vunpack.c.h.b16 %v3051
    %v3076 = vpack.c.b16 %v3060, %v3060
    %v3077 = vpack.c.b16 %v3061, %v3061
    %v3078 = vpack.c.b16 %v3062, %v3062
    %v3079 = vpack.c.b16 %v3063, %v3063
    %v3080 = vpack.c.b16 %v3064, %v3064
    %v3081 = vpack.c.b16 %v3065, %v3065
    %v3082 = vpack.c.b16 %v3066, %v3066
    %v3083 = vpack.c.b16 %v3067, %v3067
    %v3084 = vpack.c.b16 %v3068, %v3068
    %v3085 = vpack.c.b16 %v3069, %v3069
    %v3086 = vpack.c.b16 %v3070, %v3070
    %v3087 = vpack.c.b16 %v3071, %v3071
    %v3088 = vpack.c.b16 %v3072, %v3072
    %v3089 = vpack.c.b16 %v3073, %v3073
    %v3090 = vpack.c.b16 %v3074, %v3074
    %v3091 = vpack.c.b16 %v3075, %v3075
    %3108 = vst [vmem:[#allocation4] sm:$0xf] %v3076
    %3109 = vst [vmem:[#allocation4 + $0x4] sm:$0xf] %v3077
    %3110 = vst [vmem:[#allocation4 + $0x8] sm:$0xf] %v3078
    %3111 = vst [vmem:[#allocation4 + $0xc] sm:$0xf] %v3079
    %3112 = vst [vmem:[#allocation4 + $0x10] sm:$0xf] %v3080
    %3113 = vst [vmem:[#allocation4 + $0x14] sm:$0xf] %v3081
    %3114 = vst [vmem:[#allocation4 + $0x18] sm:$0xf] %v3082
    %3115 = vst [vmem:[#allocation4 + $0x1c] sm:$0xf] %v3083
    %3116 = vst [vmem:[#allocation4 + $0x20] sm:$0xf] %v3084
    %3117 = vst [vmem:[#allocation4 + $0x24] sm:$0xf] %v3085
    %3118 = vst [vmem:[#allocation4 + $0x28] sm:$0xf] %v3086
    %3119 = vst [vmem:[#allocation4 + $0x2c] sm:$0xf] %v3087
    %3120 = vst [vmem:[#allocation4 + $0x30] sm:$0xf] %v3088
    %3121 = vst [vmem:[#allocation4 + $0x34] sm:$0xf] %v3089
    %3122 = vst [vmem:[#allocation4 + $0x38] sm:$0xf] %v3090
    %3123 = vst [vmem:[#allocation4 + $0x3c] sm:$0xf] %v3091
    %s3124 = scalar_lea.vmem [#allocation10], 384
    %v3125 = vld [vmem:[%s3124] sm:$0xff]
    %v3126 = vld [vmem:[%s3124 + $0x8] sm:$0xff]
    %v3127 = vld [vmem:[%s3124 + $0x10] sm:$0xff]
    %v3128 = vld [vmem:[%s3124 + $0x18] sm:$0xff]
    %v3129 = vld [vmem:[%s3124 + $0x20] sm:$0xff]
    %v3130 = vld [vmem:[%s3124 + $0x28] sm:$0xff]
    %v3131 = vld [vmem:[%s3124 + $0x30] sm:$0xff]
    %v3132 = vld [vmem:[%s3124 + $0x38] sm:$0xff]
    %v3133 = vld [vmem:[%s3124 + $0x40] sm:$0xff]
    %v3134 = vld [vmem:[%s3124 + $0x48] sm:$0xff]
    %v3135 = vld [vmem:[%s3124 + $0x50] sm:$0xff]
    %v3136 = vld [vmem:[%s3124 + $0x58] sm:$0xff]
    %v3137 = vld [vmem:[%s3124 + $0x60] sm:$0xff]
    %v3138 = vld [vmem:[%s3124 + $0x68] sm:$0xff]
    %v3139 = vld [vmem:[%s3124 + $0x70] sm:$0xff]
    %v3140 = vld [vmem:[%s3124 + $0x78] sm:$0xff]
    %s3141 = scalar_lea.vmem %s3, 3
    %v3142 = vld [vmem:[%s3141] sm:$0x1]
    %s3143 = scalar_lea.vmem [#allocation12], 384
    %v3144 = vld [vmem:[%s3143] sm:$0xff]
    %v3145 = vld [vmem:[%s3143 + $0x8] sm:$0xff]
    %v3146 = vld [vmem:[%s3143 + $0x10] sm:$0xff]
    %v3147 = vld [vmem:[%s3143 + $0x18] sm:$0xff]
    %v3148 = vld [vmem:[%s3143 + $0x20] sm:$0xff]
    %v3149 = vld [vmem:[%s3143 + $0x28] sm:$0xff]
    %v3150 = vld [vmem:[%s3143 + $0x30] sm:$0xff]
    %v3151 = vld [vmem:[%s3143 + $0x38] sm:$0xff]
    %v3152 = vld [vmem:[%s3143 + $0x40] sm:$0xff]
    %v3153 = vld [vmem:[%s3143 + $0x48] sm:$0xff]
    %v3154 = vld [vmem:[%s3143 + $0x50] sm:$0xff]
    %v3155 = vld [vmem:[%s3143 + $0x58] sm:$0xff]
    %v3156 = vld [vmem:[%s3143 + $0x60] sm:$0xff]
    %v3157 = vld [vmem:[%s3143 + $0x68] sm:$0xff]
    %v3158 = vld [vmem:[%s3143 + $0x70] sm:$0xff]
    %v3159 = vld [vmem:[%s3143 + $0x78] sm:$0xff]
    %s3160 = scalar_lea.vmem %s5, 3
    %v3161 = vld [vmem:[%s3160] sm:$0x1]
    // Predicated region
    $region70: #{tpu_custom_call.1} parent=1 // pred_check
      _
    $region71: #{tpu_custom_call.1} parent=1 // pred_check_branch
      %3163 = sbr.rel target = $region73
    $region72: #{tpu_custom_call.1} parent=1 // pred_region
      %3164 = sst [smem:[#allocation19]] [#allocation26]
      %3165 = sst [smem:[#allocation20]] [#allocation25]
    $region73: #{tpu_custom_call.1} parent=1 // pred_fallthru
      _
    %3167 = shalt.err (0)
    %s3169 = sshll.u32 [#allocation5], 4
    %s3170 = int_to_ptr.vmem [resolvable:$true] %s3169
    %3172 = dma.hbm_to_vmem [thread:$0]  %s0, 1024, %s3170, [#allocation6]
    %s3173 = sshll.u32 %s310, 4
    %3174 = dma.done [#allocation6], %s3173
    %v3175 = vld [vmem:[#allocation5] sm:$0xf]
    %v3176 = vld [vmem:[#allocation5 + $0x4] sm:$0xf]
    %v3177 = vld [vmem:[#allocation5 + $0x8] sm:$0xf]
    %v3178 = vld [vmem:[#allocation5 + $0xc] sm:$0xf]
    %v3179 = vld [vmem:[#allocation5 + $0x10] sm:$0xf]
    %v3180 = vld [vmem:[#allocation5 + $0x14] sm:$0xf]
    %v3181 = vld [vmem:[#allocation5 + $0x18] sm:$0xf]
    %v3182 = vld [vmem:[#allocation5 + $0x1c] sm:$0xf]
    %v3183 = vld [vmem:[#allocation5 + $0x20] sm:$0xf]
    %v3184 = vld [vmem:[#allocation5 + $0x24] sm:$0xf]
    %v3185 = vld [vmem:[#allocation5 + $0x28] sm:$0xf]
    %v3186 = vld [vmem:[#allocation5 + $0x2c] sm:$0xf]
    %v3187 = vld [vmem:[#allocation5 + $0x30] sm:$0xf]
    %v3188 = vld [vmem:[#allocation5 + $0x34] sm:$0xf]
    %v3189 = vld [vmem:[#allocation5 + $0x38] sm:$0xf]
    %v3190 = vld [vmem:[#allocation5 + $0x3c] sm:$0xf]
    %v3191 = vld [vmem:[#allocation4] sm:$0xf]
    %v3192 = vld [vmem:[#allocation4 + $0x4] sm:$0xf]
    %v3193 = vld [vmem:[#allocation4 + $0x8] sm:$0xf]
    %v3194 = vld [vmem:[#allocation4 + $0xc] sm:$0xf]
    %v3195 = vld [vmem:[#allocation4 + $0x10] sm:$0xf]
    %v3196 = vld [vmem:[#allocation4 + $0x14] sm:$0xf]
    %v3197 = vld [vmem:[#allocation4 + $0x18] sm:$0xf]
    %v3198 = vld [vmem:[#allocation4 + $0x1c] sm:$0xf]
    %v3199 = vld [vmem:[#allocation4 + $0x20] sm:$0xf]
    %v3200 = vld [vmem:[#allocation4 + $0x24] sm:$0xf]
    %v3201 = vld [vmem:[#allocation4 + $0x28] sm:$0xf]
    %v3202 = vld [vmem:[#allocation4 + $0x2c] sm:$0xf]
    %v3203 = vld [vmem:[#allocation4 + $0x30] sm:$0xf]
    %v3204 = vld [vmem:[#allocation4 + $0x34] sm:$0xf]
    %v3205 = vld [vmem:[#allocation4 + $0x38] sm:$0xf]
    %v3206 = vld [vmem:[#allocation4 + $0x3c] sm:$0xf]
    %v3223 = vunpack.c.l.b16 %v3175
    %v3224 = vunpack.c.l.b16 %v3176
    %v3225 = vunpack.c.l.b16 %v3177
    %v3226 = vunpack.c.l.b16 %v3178
    %v3227 = vunpack.c.l.b16 %v3179
    %v3228 = vunpack.c.l.b16 %v3180
    %v3229 = vunpack.c.l.b16 %v3181
    %v3230 = vunpack.c.l.b16 %v3182
    %v3231 = vunpack.c.l.b16 %v3183
    %v3232 = vunpack.c.l.b16 %v3184
    %v3233 = vunpack.c.l.b16 %v3185
    %v3234 = vunpack.c.l.b16 %v3186
    %v3235 = vunpack.c.l.b16 %v3187
    %v3236 = vunpack.c.l.b16 %v3188
    %v3237 = vunpack.c.l.b16 %v3189
    %v3238 = vunpack.c.l.b16 %v3190
    %v3239 = vpack.c.b16 %v3224, %v3223
    %v3240 = vpack.c.b16 %v3226, %v3225
    %v3241 = vpack.c.b16 %v3228, %v3227
    %v3242 = vpack.c.b16 %v3230, %v3229
    %v3243 = vpack.c.b16 %v3232, %v3231
    %v3244 = vpack.c.b16 %v3234, %v3233
    %v3245 = vpack.c.b16 %v3236, %v3235
    %v3246 = vpack.c.b16 %v3238, %v3237
    %v3271 = vunpack.c.l.b16 %v3191
    %v3272 = vunpack.c.l.b16 %v3192
    %v3273 = vunpack.c.l.b16 %v3193
    %v3274 = vunpack.c.l.b16 %v3194
    %v3275 = vunpack.c.l.b16 %v3195
    %v3276 = vunpack.c.l.b16 %v3196
    %v3277 = vunpack.c.l.b16 %v3197
    %v3278 = vunpack.c.l.b16 %v3198
    %v3279 = vunpack.c.l.b16 %v3199
    %v3280 = vunpack.c.l.b16 %v3200
    %v3281 = vunpack.c.l.b16 %v3201
    %v3282 = vunpack.c.l.b16 %v3202
    %v3283 = vunpack.c.l.b16 %v3203
    %v3284 = vunpack.c.l.b16 %v3204
    %v3285 = vunpack.c.l.b16 %v3205
    %v3286 = vunpack.c.l.b16 %v3206
    %v3287 = vpack.c.b16 %v3272, %v3271
    %v3288 = vpack.c.b16 %v3274, %v3273
    %v3289 = vpack.c.b16 %v3276, %v3275
    %v3290 = vpack.c.b16 %v3278, %v3277
    %v3291 = vpack.c.b16 %v3280, %v3279
    %v3292 = vpack.c.b16 %v3282, %v3281
    %v3293 = vpack.c.b16 %v3284, %v3283
    %v3294 = vpack.c.b16 %v3286, %v3285
    %3303 = vmatprep.subr.bf16.mxu0 0
    %3304 = vmatpush1.bf16.msra.mxu0 %v3294
    %3305 = vmatprep.subr.bf16.mxu0 0
    %3306 = vmatpush1.bf16.msra.mxu0 %v3293
    %3307 = vmatprep.subr.bf16.mxu0 0
    %3308 = vmatpush1.bf16.msra.mxu0 %v3292
    %3309 = vmatprep.subr.bf16.mxu0 0
    %3310 = vmatpush1.bf16.msra.mxu0 %v3291
    %3311 = vmatprep.subr.bf16.mxu0 0
    %3312 = vmatpush1.bf16.msra.mxu0 %v3290
    %3313 = vmatprep.subr.bf16.mxu0 0
    %3314 = vmatpush1.bf16.msra.mxu0 %v3289
    %3315 = vmatprep.subr.bf16.mxu0 0
    %3316 = vmatpush1.bf16.msra.mxu0 %v3288
    %3317 = vmatprep.subr.bf16.mxu0 0
    %3318 = vmatpush1.bf16.msra.mxu0 %v3287
    %3319 = vmatprep.subr.bf16.mxu0 0
    %3320 = vmatpush2.bf16.msra.mxu0 0
    %3321 = vmatprep.subr.bf16.mxu0 0
    %3322 = vmatpush2.bf16.msra.mxu0 0
    %3323 = vmatprep.subr.bf16.mxu0 0
    %3324 = vmatpush2.bf16.msra.mxu0 0
    %3325 = vmatprep.subr.bf16.mxu0 0
    %3326 = vmatpush2.bf16.msra.mxu0 0
    %3327 = vmatprep.subr.bf16.mxu0 0
    %3328 = vmatpush2.bf16.msra.mxu0 0
    %3329 = vmatprep.subr.bf16.mxu0 0
    %3330 = vmatpush2.bf16.msra.mxu0 0
    %3331 = vmatprep.subr.bf16.mxu0 0
    %3332 = vmatpush2.bf16.msra.mxu0 0
    %3333 = vmatprep.subr.bf16.mxu0 0
    %3334 = vmatpush2.bf16.msra.mxu0 0
    %3335 = vmatprep.mubr.bf16.mxu0 0
    %3336 = vmatmul.mubr.bf16.gmra.mxu0 %v3239
    %v3337 = vpop.f32.mrf.mxu0
    %v3338 = vadd.f32 0.0, %v3337
    %v3339 = vpop.f32.mrf.mxu0
    %v3340 = vpop.f32.mrf.mxu0
    %v3341 = vadd.f32 0.0, %v3340
    %v3342 = vpop.f32.mrf.mxu0
    %3343 = vmatprep.mubr.bf16.mxu0 0
    %3344 = vmatmul.mubr.bf16.gmra.mxu0 %v3240
    %v3345 = vpop.f32.mrf.mxu0
    %v3346 = vadd.f32 0.0, %v3345
    %v3347 = vpop.f32.mrf.mxu0
    %v3348 = vpop.f32.mrf.mxu0
    %v3349 = vadd.f32 0.0, %v3348
    %v3350 = vpop.f32.mrf.mxu0
    %3351 = vmatprep.mubr.bf16.mxu0 0
    %3352 = vmatmul.mubr.bf16.gmra.mxu0 %v3241
    %v3353 = vpop.f32.mrf.mxu0
    %v3354 = vadd.f32 0.0, %v3353
    %v3355 = vpop.f32.mrf.mxu0
    %v3356 = vpop.f32.mrf.mxu0
    %v3357 = vadd.f32 0.0, %v3356
    %v3358 = vpop.f32.mrf.mxu0
    %3359 = vmatprep.mubr.bf16.mxu0 0
    %3360 = vmatmul.mubr.bf16.gmra.mxu0 %v3242
    %v3361 = vpop.f32.mrf.mxu0
    %v3362 = vadd.f32 0.0, %v3361
    %v3363 = vpop.f32.mrf.mxu0
    %v3364 = vpop.f32.mrf.mxu0
    %v3365 = vadd.f32 0.0, %v3364
    %v3366 = vpop.f32.mrf.mxu0
    %3367 = vmatprep.mubr.bf16.mxu0 0
    %3368 = vmatmul.mubr.bf16.gmra.mxu0 %v3243
    %v3369 = vpop.f32.mrf.mxu0
    %v3370 = vadd.f32 0.0, %v3369
    %v3371 = vpop.f32.mrf.mxu0
    %v3372 = vpop.f32.mrf.mxu0
    %v3373 = vadd.f32 0.0, %v3372
    %v3374 = vpop.f32.mrf.mxu0
    %3375 = vmatprep.mubr.bf16.mxu0 0
    %3376 = vmatmul.mubr.bf16.gmra.mxu0 %v3244
    %v3377 = vpop.f32.mrf.mxu0
    %v3378 = vadd.f32 0.0, %v3377
    %v3379 = vpop.f32.mrf.mxu0
    %v3380 = vpop.f32.mrf.mxu0
    %v3381 = vadd.f32 0.0, %v3380
    %v3382 = vpop.f32.mrf.mxu0
    %3383 = vmatprep.mubr.bf16.mxu0 0
    %3384 = vmatmul.mubr.bf16.gmra.mxu0 %v3245
    %v3385 = vpop.f32.mrf.mxu0
    %v3386 = vadd.f32 0.0, %v3385
    %v3387 = vpop.f32.mrf.mxu0
    %v3388 = vpop.f32.mrf.mxu0
    %v3389 = vadd.f32 0.0, %v3388
    %v3390 = vpop.f32.mrf.mxu0
    %3391 = vmatprep.mubr.bf16.mxu0 0
    %3392 = vmatmul.mubr.bf16.gmra.mxu0 %v3246
    %v3393 = vpop.f32.mrf.mxu0
    %v3394 = vadd.f32 0.0, %v3393
    %v3395 = vpop.f32.mrf.mxu0
    %v3396 = vpop.f32.mrf.mxu0
    %v3397 = vadd.f32 0.0, %v3396
    %v3398 = vpop.f32.mrf.mxu0
    %3399 = vdwg.mxu0
    %v3401 = vlaneseq
    %v3402 = vshrl.u32 %v3401, 7
    %v3403 = vsub.s32 0, %v3402
    %v3404 = vrot.slane %v3142, %v3403
    %3406 = vmatprep.subr.mxu0 0.0
    %3407 = vmatpush1.msra.mxu0 %v3140
    %3408 = vmatprep.subr.mxu0 0.0
    %3409 = vmatpush1.msra.mxu0 %v3139
    %3410 = vmatprep.subr.mxu0 0.0
    %3411 = vmatpush1.msra.mxu0 %v3138
    %3412 = vmatprep.subr.mxu0 0.0
    %3413 = vmatpush1.msra.mxu0 %v3137
    %3414 = vmatprep.subr.mxu0 0.0
    %3415 = vmatpush1.msra.mxu0 %v3136
    %3416 = vmatprep.subr.mxu0 0.0
    %3417 = vmatpush1.msra.mxu0 %v3135
    %3418 = vmatprep.subr.mxu0 0.0
    %3419 = vmatpush1.msra.mxu0 %v3134
    %3420 = vmatprep.subr.mxu0 0.0
    %3421 = vmatpush1.msra.mxu0 %v3133
    %3422 = vmatprep.subr.mxu0 0.0
    %3423 = vmatpush1.msra.mxu0 %v3132
    %3424 = vmatprep.subr.mxu0 0.0
    %3425 = vmatpush1.msra.mxu0 %v3131
    %3426 = vmatprep.subr.mxu0 0.0
    %3427 = vmatpush1.msra.mxu0 %v3130
    %3428 = vmatprep.subr.mxu0 0.0
    %3429 = vmatpush1.msra.mxu0 %v3129
    %3430 = vmatprep.subr.mxu0 0.0
    %3431 = vmatpush1.msra.mxu0 %v3128
    %3432 = vmatprep.subr.mxu0 0.0
    %3433 = vmatpush1.msra.mxu0 %v3127
    %3434 = vmatprep.subr.mxu0 0.0
    %3435 = vmatpush1.msra.mxu0 %v3126
    %3436 = vmatprep.subr.mxu0 0.0
    %3437 = vmatpush1.msra.mxu0 %v3125
    %3438 = vmatprep.subr.mxu0 0.0
    %3439 = vmatpush2.msra.mxu0 0.0
    %3440 = vmatprep.subr.mxu0 0.0
    %3441 = vmatpush2.msra.mxu0 0.0
    %3442 = vmatprep.subr.mxu0 0.0
    %3443 = vmatpush2.msra.mxu0 0.0
    %3444 = vmatprep.subr.mxu0 0.0
    %3445 = vmatpush2.msra.mxu0 0.0
    %3446 = vmatprep.subr.mxu0 0.0
    %3447 = vmatpush2.msra.mxu0 0.0
    %3448 = vmatprep.subr.mxu0 0.0
    %3449 = vmatpush2.msra.mxu0 0.0
    %3450 = vmatprep.subr.mxu0 0.0
    %3451 = vmatpush2.msra.mxu0 0.0
    %3452 = vmatprep.subr.mxu0 0.0
    %3453 = vmatpush2.msra.mxu0 0.0
    %3454 = vmatprep.subr.mxu0 0.0
    %3455 = vmatpush2.msra.mxu0 0.0
    %3456 = vmatprep.subr.mxu0 0.0
    %3457 = vmatpush2.msra.mxu0 0.0
    %3458 = vmatprep.subr.mxu0 0.0
    %3459 = vmatpush2.msra.mxu0 0.0
    %3460 = vmatprep.subr.mxu0 0.0
    %3461 = vmatpush2.msra.mxu0 0.0
    %3462 = vmatprep.subr.mxu0 0.0
    %3463 = vmatpush2.msra.mxu0 0.0
    %3464 = vmatprep.subr.mxu0 0.0
    %3465 = vmatpush2.msra.mxu0 0.0
    %3466 = vmatprep.subr.mxu0 0.0
    %3467 = vmatpush2.msra.mxu0 0.0
    %3468 = vmatprep.subr.mxu0 0.0
    %3469 = vmatpush2.msra.mxu0 0.0
    %3470 = vmatprep.mubr.f32.mxu0 0.0
    %3471 = vmatmul.mubr.f32.gmra.mxu0 %v3338
    %v3472 = vpop.f32.mrf.mxu0
    %v3473 = vadd.f32 %v3404, %v3472
    %v3474 = vpop.f32.mrf.mxu0
    %3475 = vmatprep.mubr.f32.mxu0 0.0
    %3476 = vmatmul.mubr.f32.gmra.mxu0 %v3341
    %v3477 = vpop.f32.mrf.mxu0
    %v3478 = vadd.f32 %v3404, %v3477
    %v3479 = vpop.f32.mrf.mxu0
    %3480 = vmatprep.mubr.f32.mxu0 0.0
    %3481 = vmatmul.mubr.f32.gmra.mxu0 %v3346
    %v3482 = vpop.f32.mrf.mxu0
    %v3483 = vadd.f32 %v3404, %v3482
    %v3484 = vpop.f32.mrf.mxu0
    %3485 = vmatprep.mubr.f32.mxu0 0.0
    %3486 = vmatmul.mubr.f32.gmra.mxu0 %v3349
    %v3487 = vpop.f32.mrf.mxu0
    %v3488 = vadd.f32 %v3404, %v3487
    %v3489 = vpop.f32.mrf.mxu0
    %3490 = vmatprep.mubr.f32.mxu0 0.0
    %3491 = vmatmul.mubr.f32.gmra.mxu0 %v3354
    %v3492 = vpop.f32.mrf.mxu0
    %v3493 = vadd.f32 %v3404, %v3492
    %v3494 = vpop.f32.mrf.mxu0
    %3495 = vmatprep.mubr.f32.mxu0 0.0
    %3496 = vmatmul.mubr.f32.gmra.mxu0 %v3357
    %v3497 = vpop.f32.mrf.mxu0
    %v3498 = vadd.f32 %v3404, %v3497
    %v3499 = vpop.f32.mrf.mxu0
    %3500 = vmatprep.mubr.f32.mxu0 0.0
    %3501 = vmatmul.mubr.f32.gmra.mxu0 %v3362
    %v3502 = vpop.f32.mrf.mxu0
    %v3503 = vadd.f32 %v3404, %v3502
    %v3504 = vpop.f32.mrf.mxu0
    %3505 = vmatprep.mubr.f32.mxu0 0.0
    %3506 = vmatmul.mubr.f32.gmra.mxu0 %v3365
    %v3507 = vpop.f32.mrf.mxu0
    %v3508 = vadd.f32 %v3404, %v3507
    %v3509 = vpop.f32.mrf.mxu0
    %3510 = vmatprep.mubr.f32.mxu0 0.0
    %3511 = vmatmul.mubr.f32.gmra.mxu0 %v3370
    %v3512 = vpop.f32.mrf.mxu0
    %v3513 = vadd.f32 %v3404, %v3512
    %v3514 = vpop.f32.mrf.mxu0
    %3515 = vmatprep.mubr.f32.mxu0 0.0
    %3516 = vmatmul.mubr.f32.gmra.mxu0 %v3373
    %v3517 = vpop.f32.mrf.mxu0
    %v3518 = vadd.f32 %v3404, %v3517
    %v3519 = vpop.f32.mrf.mxu0
    %3520 = vmatprep.mubr.f32.mxu0 0.0
    %3521 = vmatmul.mubr.f32.gmra.mxu0 %v3378
    %v3522 = vpop.f32.mrf.mxu0
    %v3523 = vadd.f32 %v3404, %v3522
    %v3524 = vpop.f32.mrf.mxu0
    %3525 = vmatprep.mubr.f32.mxu0 0.0
    %3526 = vmatmul.mubr.f32.gmra.mxu0 %v3381
    %v3527 = vpop.f32.mrf.mxu0
    %v3528 = vadd.f32 %v3404, %v3527
    %v3529 = vpop.f32.mrf.mxu0
    %3530 = vmatprep.mubr.f32.mxu0 0.0
    %3531 = vmatmul.mubr.f32.gmra.mxu0 %v3386
    %v3532 = vpop.f32.mrf.mxu0
    %v3533 = vadd.f32 %v3404, %v3532
    %v3534 = vpop.f32.mrf.mxu0
    %3535 = vmatprep.mubr.f32.mxu0 0.0
    %3536 = vmatmul.mubr.f32.gmra.mxu0 %v3389
    %v3537 = vpop.f32.mrf.mxu0
    %v3538 = vadd.f32 %v3404, %v3537
    %v3539 = vpop.f32.mrf.mxu0
    %3540 = vmatprep.mubr.f32.mxu0 0.0
    %3541 = vmatmul.mubr.f32.gmra.mxu0 %v3394
    %v3542 = vpop.f32.mrf.mxu0
    %v3543 = vadd.f32 %v3404, %v3542
    %v3544 = vpop.f32.mrf.mxu0
    %3545 = vmatprep.mubr.f32.mxu0 0.0
    %3546 = vmatmul.mubr.f32.gmra.mxu0 %v3397
    %v3547 = vpop.f32.mrf.mxu0
    %v3548 = vadd.f32 %v3404, %v3547
    %v3549 = vpop.f32.mrf.mxu0
    %3550 = vdwg.mxu0
    %v3551 = vmax.f32 %v3473, 0.0
    %v3552 = vmax.f32 %v3478, 0.0
    %v3553 = vmax.f32 %v3483, 0.0
    %v3554 = vmax.f32 %v3488, 0.0
    %v3555 = vmax.f32 %v3493, 0.0
    %v3556 = vmax.f32 %v3498, 0.0
    %v3557 = vmax.f32 %v3503, 0.0
    %v3558 = vmax.f32 %v3508, 0.0
    %v3559 = vmax.f32 %v3513, 0.0
    %v3560 = vmax.f32 %v3518, 0.0
    %v3561 = vmax.f32 %v3523, 0.0
    %v3562 = vmax.f32 %v3528, 0.0
    %v3563 = vmax.f32 %v3533, 0.0
    %v3564 = vmax.f32 %v3538, 0.0
    %v3565 = vmax.f32 %v3543, 0.0
    %v3566 = vmax.f32 %v3548, 0.0
    %v3568 = vlaneseq
    %v3569 = vshrl.u32 %v3568, 7
    %v3570 = vsub.s32 0, %v3569
    %v3571 = vrot.slane %v3161, %v3570
    %3573 = vmatprep.subr.mxu0 0.0
    %3574 = vmatpush1.msra.mxu0 %v3159
    %3575 = vmatprep.subr.mxu0 0.0
    %3576 = vmatpush1.msra.mxu0 %v3158
    %3577 = vmatprep.subr.mxu0 0.0
    %3578 = vmatpush1.msra.mxu0 %v3157
    %3579 = vmatprep.subr.mxu0 0.0
    %3580 = vmatpush1.msra.mxu0 %v3156
    %3581 = vmatprep.subr.mxu0 0.0
    %3582 = vmatpush1.msra.mxu0 %v3155
    %3583 = vmatprep.subr.mxu0 0.0
    %3584 = vmatpush1.msra.mxu0 %v3154
    %3585 = vmatprep.subr.mxu0 0.0
    %3586 = vmatpush1.msra.mxu0 %v3153
    %3587 = vmatprep.subr.mxu0 0.0
    %3588 = vmatpush1.msra.mxu0 %v3152
    %3589 = vmatprep.subr.mxu0 0.0
    %3590 = vmatpush1.msra.mxu0 %v3151
    %3591 = vmatprep.subr.mxu0 0.0
    %3592 = vmatpush1.msra.mxu0 %v3150
    %3593 = vmatprep.subr.mxu0 0.0
    %3594 = vmatpush1.msra.mxu0 %v3149
    %3595 = vmatprep.subr.mxu0 0.0
    %3596 = vmatpush1.msra.mxu0 %v3148
    %3597 = vmatprep.subr.mxu0 0.0
    %3598 = vmatpush1.msra.mxu0 %v3147
    %3599 = vmatprep.subr.mxu0 0.0
    %3600 = vmatpush1.msra.mxu0 %v3146
    %3601 = vmatprep.subr.mxu0 0.0
    %3602 = vmatpush1.msra.mxu0 %v3145
    %3603 = vmatprep.subr.mxu0 0.0
    %3604 = vmatpush1.msra.mxu0 %v3144
    %3605 = vmatprep.subr.mxu0 0.0
    %3606 = vmatpush2.msra.mxu0 0.0
    %3607 = vmatprep.subr.mxu0 0.0
    %3608 = vmatpush2.msra.mxu0 0.0
    %3609 = vmatprep.subr.mxu0 0.0
    %3610 = vmatpush2.msra.mxu0 0.0
    %3611 = vmatprep.subr.mxu0 0.0
    %3612 = vmatpush2.msra.mxu0 0.0
    %3613 = vmatprep.subr.mxu0 0.0
    %3614 = vmatpush2.msra.mxu0 0.0
    %3615 = vmatprep.subr.mxu0 0.0
    %3616 = vmatpush2.msra.mxu0 0.0
    %3617 = vmatprep.subr.mxu0 0.0
    %3618 = vmatpush2.msra.mxu0 0.0
    %3619 = vmatprep.subr.mxu0 0.0
    %3620 = vmatpush2.msra.mxu0 0.0
    %3621 = vmatprep.subr.mxu0 0.0
    %3622 = vmatpush2.msra.mxu0 0.0
    %3623 = vmatprep.subr.mxu0 0.0
    %3624 = vmatpush2.msra.mxu0 0.0
    %3625 = vmatprep.subr.mxu0 0.0
    %3626 = vmatpush2.msra.mxu0 0.0
    %3627 = vmatprep.subr.mxu0 0.0
    %3628 = vmatpush2.msra.mxu0 0.0
    %3629 = vmatprep.subr.mxu0 0.0
    %3630 = vmatpush2.msra.mxu0 0.0
    %3631 = vmatprep.subr.mxu0 0.0
    %3632 = vmatpush2.msra.mxu0 0.0
    %3633 = vmatprep.subr.mxu0 0.0
    %3634 = vmatpush2.msra.mxu0 0.0
    %3635 = vmatprep.subr.mxu0 0.0
    %3636 = vmatpush2.msra.mxu0 0.0
    %3637 = vmatprep.mubr.f32.mxu0 0.0
    %3638 = vmatmul.mubr.f32.gmra.mxu0 %v3551
    %v3639 = vpop.f32.mrf.mxu0
    %v3640 = vadd.f32 %v3571, %v3639
    %v3641 = vpop.f32.mrf.mxu0
    %3642 = vmatprep.mubr.f32.mxu0 0.0
    %3643 = vmatmul.mubr.f32.gmra.mxu0 %v3552
    %v3644 = vpop.f32.mrf.mxu0
    %v3645 = vadd.f32 %v3571, %v3644
    %v3646 = vpop.f32.mrf.mxu0
    %3647 = vmatprep.mubr.f32.mxu0 0.0
    %3648 = vmatmul.mubr.f32.gmra.mxu0 %v3553
    %v3649 = vpop.f32.mrf.mxu0
    %v3650 = vadd.f32 %v3571, %v3649
    %v3651 = vpop.f32.mrf.mxu0
    %3652 = vmatprep.mubr.f32.mxu0 0.0
    %3653 = vmatmul.mubr.f32.gmra.mxu0 %v3554
    %v3654 = vpop.f32.mrf.mxu0
    %v3655 = vadd.f32 %v3571, %v3654
    %v3656 = vpop.f32.mrf.mxu0
    %3657 = vmatprep.mubr.f32.mxu0 0.0
    %3658 = vmatmul.mubr.f32.gmra.mxu0 %v3555
    %v3659 = vpop.f32.mrf.mxu0
    %v3660 = vadd.f32 %v3571, %v3659
    %v3661 = vpop.f32.mrf.mxu0
    %3662 = vmatprep.mubr.f32.mxu0 0.0
    %3663 = vmatmul.mubr.f32.gmra.mxu0 %v3556
    %v3664 = vpop.f32.mrf.mxu0
    %v3665 = vadd.f32 %v3571, %v3664
    %v3666 = vpop.f32.mrf.mxu0
    %3667 = vmatprep.mubr.f32.mxu0 0.0
    %3668 = vmatmul.mubr.f32.gmra.mxu0 %v3557
    %v3669 = vpop.f32.mrf.mxu0
    %v3670 = vadd.f32 %v3571, %v3669
    %v3671 = vpop.f32.mrf.mxu0
    %3672 = vmatprep.mubr.f32.mxu0 0.0
    %3673 = vmatmul.mubr.f32.gmra.mxu0 %v3558
    %v3674 = vpop.f32.mrf.mxu0
    %v3675 = vadd.f32 %v3571, %v3674
    %v3676 = vpop.f32.mrf.mxu0
    %3677 = vmatprep.mubr.f32.mxu0 0.0
    %3678 = vmatmul.mubr.f32.gmra.mxu0 %v3559
    %v3679 = vpop.f32.mrf.mxu0
    %v3680 = vadd.f32 %v3571, %v3679
    %v3681 = vpop.f32.mrf.mxu0
    %3682 = vmatprep.mubr.f32.mxu0 0.0
    %3683 = vmatmul.mubr.f32.gmra.mxu0 %v3560
    %v3684 = vpop.f32.mrf.mxu0
    %v3685 = vadd.f32 %v3571, %v3684
    %v3686 = vpop.f32.mrf.mxu0
    %3687 = vmatprep.mubr.f32.mxu0 0.0
    %3688 = vmatmul.mubr.f32.gmra.mxu0 %v3561
    %v3689 = vpop.f32.mrf.mxu0
    %v3690 = vadd.f32 %v3571, %v3689
    %v3691 = vpop.f32.mrf.mxu0
    %3692 = vmatprep.mubr.f32.mxu0 0.0
    %3693 = vmatmul.mubr.f32.gmra.mxu0 %v3562
    %v3694 = vpop.f32.mrf.mxu0
    %v3695 = vadd.f32 %v3571, %v3694
    %v3696 = vpop.f32.mrf.mxu0
    %3697 = vmatprep.mubr.f32.mxu0 0.0
    %3698 = vmatmul.mubr.f32.gmra.mxu0 %v3563
    %v3699 = vpop.f32.mrf.mxu0
    %v3700 = vadd.f32 %v3571, %v3699
    %v3701 = vpop.f32.mrf.mxu0
    %3702 = vmatprep.mubr.f32.mxu0 0.0
    %3703 = vmatmul.mubr.f32.gmra.mxu0 %v3564
    %v3704 = vpop.f32.mrf.mxu0
    %v3705 = vadd.f32 %v3571, %v3704
    %v3706 = vpop.f32.mrf.mxu0
    %3707 = vmatprep.mubr.f32.mxu0 0.0
    %3708 = vmatmul.mubr.f32.gmra.mxu0 %v3565
    %v3709 = vpop.f32.mrf.mxu0
    %v3710 = vadd.f32 %v3571, %v3709
    %v3711 = vpop.f32.mrf.mxu0
    %3712 = vmatprep.mubr.f32.mxu0 0.0
    %3713 = vmatmul.mubr.f32.gmra.mxu0 %v3566
    %v3714 = vpop.f32.mrf.mxu0
    %v3715 = vadd.f32 %v3571, %v3714
    %v3716 = vpop.f32.mrf.mxu0
    %3717 = vdwg.mxu0
    %3718 = vst [vmem:[#allocation3] sm:$0xff] %v3640
    %3719 = vst [vmem:[#allocation3 + $0x8] sm:$0xff] %v3645
    %3720 = vst [vmem:[#allocation3 + $0x10] sm:$0xff] %v3650
    %3721 = vst [vmem:[#allocation3 + $0x18] sm:$0xff] %v3655
    %3722 = vst [vmem:[#allocation3 + $0x20] sm:$0xff] %v3660
    %3723 = vst [vmem:[#allocation3 + $0x28] sm:$0xff] %v3665
    %3724 = vst [vmem:[#allocation3 + $0x30] sm:$0xff] %v3670
    %3725 = vst [vmem:[#allocation3 + $0x38] sm:$0xff] %v3675
    %3726 = vst [vmem:[#allocation3 + $0x40] sm:$0xff] %v3680
    %3727 = vst [vmem:[#allocation3 + $0x48] sm:$0xff] %v3685
    %3728 = vst [vmem:[#allocation3 + $0x50] sm:$0xff] %v3690
    %3729 = vst [vmem:[#allocation3 + $0x58] sm:$0xff] %v3695
    %3730 = vst [vmem:[#allocation3 + $0x60] sm:$0xff] %v3700
    %3731 = vst [vmem:[#allocation3 + $0x68] sm:$0xff] %v3705
    %3732 = vst [vmem:[#allocation3 + $0x70] sm:$0xff] %v3710
    %3733 = vst [vmem:[#allocation3 + $0x78] sm:$0xff] %v3715
    %v3734 = vld [vmem:[#allocation3] sm:$0xff]
    %v3735 = vld [vmem:[#allocation3 + $0x8] sm:$0xff]
    %v3736 = vld [vmem:[#allocation3 + $0x10] sm:$0xff]
    %v3737 = vld [vmem:[#allocation3 + $0x18] sm:$0xff]
    %v3738 = vld [vmem:[#allocation3 + $0x20] sm:$0xff]
    %v3739 = vld [vmem:[#allocation3 + $0x28] sm:$0xff]
    %v3740 = vld [vmem:[#allocation3 + $0x30] sm:$0xff]
    %v3741 = vld [vmem:[#allocation3 + $0x38] sm:$0xff]
    %v3742 = vld [vmem:[#allocation3 + $0x40] sm:$0xff]
    %v3743 = vld [vmem:[#allocation3 + $0x48] sm:$0xff]
    %v3744 = vld [vmem:[#allocation3 + $0x50] sm:$0xff]
    %v3745 = vld [vmem:[#allocation3 + $0x58] sm:$0xff]
    %v3746 = vld [vmem:[#allocation3 + $0x60] sm:$0xff]
    %v3747 = vld [vmem:[#allocation3 + $0x68] sm:$0xff]
    %v3748 = vld [vmem:[#allocation3 + $0x70] sm:$0xff]
    %v3749 = vld [vmem:[#allocation3 + $0x78] sm:$0xff]
    %v3750 = vsel %vm904, %v3734, 0.0
    %v3751 = vsel %vm905, %v3735, 0.0
    %v3752 = vsel %vm906, %v3736, 0.0
    %v3753 = vsel %vm907, %v3737, 0.0
    %v3754 = vsel %vm908, %v3738, 0.0
    %v3755 = vsel %vm909, %v3739, 0.0
    %v3756 = vsel %vm910, %v3740, 0.0
    %v3757 = vsel %vm911, %v3741, 0.0
    %v3758 = vsel %vm912, %v3742, 0.0
    %v3759 = vsel %vm913, %v3743, 0.0
    %v3760 = vsel %vm914, %v3744, 0.0
    %v3761 = vsel %vm915, %v3745, 0.0
    %v3762 = vsel %vm916, %v3746, 0.0
    %v3763 = vsel %vm917, %v3747, 0.0
    %v3764 = vsel %vm918, %v3748, 0.0
    %v3765 = vsel %vm919, %v3749, 0.0
    %v3766 = vadd.f32 %v3750, %v3751
    %v3767 = vadd.f32 %v3766, %v3752
    %v3768 = vadd.f32 %v3767, %v3753
    %v3769 = vadd.f32 %v3768, %v3754
    %v3770 = vadd.f32 %v3769, %v3755
    %v3771 = vadd.f32 %v3770, %v3756
    %v3772 = vadd.f32 %v3771, %v3757
    %v3773 = vadd.f32 %v3772, %v3758
    %v3774 = vadd.f32 %v3773, %v3759
    %v3775 = vadd.f32 %v3774, %v3760
    %v3776 = vadd.f32 %v3775, %v3761
    %v3777 = vadd.f32 %v3776, %v3762
    %v3778 = vadd.f32 %v3777, %v3763
    %v3779 = vadd.f32 %v3778, %v3764
    %v3780 = vadd.f32 %v3779, %v3765
    %v3781 = vrot.slane %v3780, 4
    %v3782 = vadd.f32 %v3780, %v3781
    %v3783 = vrot.slane %v3782, 2
    %v3784 = vadd.f32 %v3782, %v3783
    %v3785 = vrot.slane %v3784, 1
    %v3786 = vadd.f32 %v3784, %v3785
    %v3787 = vmul.f32 %v3786, 0.0625
    %v3788 = vsub.f32 %v3734, %v3787
    %v3789 = vsub.f32 %v3735, %v3787
    %v3790 = vsub.f32 %v3736, %v3787
    %v3791 = vsub.f32 %v3737, %v3787
    %v3792 = vsub.f32 %v3738, %v3787
    %v3793 = vsub.f32 %v3739, %v3787
    %v3794 = vsub.f32 %v3740, %v3787
    %v3795 = vsub.f32 %v3741, %v3787
    %v3796 = vsub.f32 %v3742, %v3787
    %v3797 = vsub.f32 %v3743, %v3787
    %v3798 = vsub.f32 %v3744, %v3787
    %v3799 = vsub.f32 %v3745, %v3787
    %v3800 = vsub.f32 %v3746, %v3787
    %v3801 = vsub.f32 %v3747, %v3787
    %v3802 = vsub.f32 %v3748, %v3787
    %v3803 = vsub.f32 %v3749, %v3787
    %v3804 = vmul.f32 %v3788, %v3788
    %v3805 = vmul.f32 %v3789, %v3789
    %v3806 = vmul.f32 %v3790, %v3790
    %v3807 = vmul.f32 %v3791, %v3791
    %v3808 = vmul.f32 %v3792, %v3792
    %v3809 = vmul.f32 %v3793, %v3793
    %v3810 = vmul.f32 %v3794, %v3794
    %v3811 = vmul.f32 %v3795, %v3795
    %v3812 = vmul.f32 %v3796, %v3796
    %v3813 = vmul.f32 %v3797, %v3797
    %v3814 = vmul.f32 %v3798, %v3798
    %v3815 = vmul.f32 %v3799, %v3799
    %v3816 = vmul.f32 %v3800, %v3800
    %v3817 = vmul.f32 %v3801, %v3801
    %v3818 = vmul.f32 %v3802, %v3802
    %v3819 = vmul.f32 %v3803, %v3803
    %v3820 = vsel %vm904, %v3804, 0.0
    %v3821 = vsel %vm905, %v3805, 0.0
    %v3822 = vsel %vm906, %v3806, 0.0
    %v3823 = vsel %vm907, %v3807, 0.0
    %v3824 = vsel %vm908, %v3808, 0.0
    %v3825 = vsel %vm909, %v3809, 0.0
    %v3826 = vsel %vm910, %v3810, 0.0
    %v3827 = vsel %vm911, %v3811, 0.0
    %v3828 = vsel %vm912, %v3812, 0.0
    %v3829 = vsel %vm913, %v3813, 0.0
    %v3830 = vsel %vm914, %v3814, 0.0
    %v3831 = vsel %vm915, %v3815, 0.0
    %v3832 = vsel %vm916, %v3816, 0.0
    %v3833 = vsel %vm917, %v3817, 0.0
    %v3834 = vsel %vm918, %v3818, 0.0
    %v3835 = vsel %vm919, %v3819, 0.0
    %v3836 = vadd.f32 %v3820, %v3821
    %v3837 = vadd.f32 %v3836, %v3822
    %v3838 = vadd.f32 %v3837, %v3823
    %v3839 = vadd.f32 %v3838, %v3824
    %v3840 = vadd.f32 %v3839, %v3825
    %v3841 = vadd.f32 %v3840, %v3826
    %v3842 = vadd.f32 %v3841, %v3827
    %v3843 = vadd.f32 %v3842, %v3828
    %v3844 = vadd.f32 %v3843, %v3829
    %v3845 = vadd.f32 %v3844, %v3830
    %v3846 = vadd.f32 %v3845, %v3831
    %v3847 = vadd.f32 %v3846, %v3832
    %v3848 = vadd.f32 %v3847, %v3833
    %v3849 = vadd.f32 %v3848, %v3834
    %v3850 = vadd.f32 %v3849, %v3835
    %v3851 = vrot.slane %v3850, 4
    %v3852 = vadd.f32 %v3850, %v3851
    %v3853 = vrot.slane %v3852, 2
    %v3854 = vadd.f32 %v3852, %v3853
    %v3855 = vrot.slane %v3854, 1
    %v3856 = vadd.f32 %v3854, %v3855
    %v3857 = vmul.f32 %v3856, 0.0625
    %v3858 = vadd.f32 %v3857, 1e-05
    %v3859 = vrsqrt.pop %v3858
    %v3860 = vmul.f32 %v3788, %v3859
    %v3861 = vmul.f32 %v3789, %v3859
    %v3862 = vmul.f32 %v3790, %v3859
    %v3863 = vmul.f32 %v3791, %v3859
    %v3864 = vmul.f32 %v3792, %v3859
    %v3865 = vmul.f32 %v3793, %v3859
    %v3866 = vmul.f32 %v3794, %v3859
    %v3867 = vmul.f32 %v3795, %v3859
    %v3868 = vmul.f32 %v3796, %v3859
    %v3869 = vmul.f32 %v3797, %v3859
    %v3870 = vmul.f32 %v3798, %v3859
    %v3871 = vmul.f32 %v3799, %v3859
    %v3872 = vmul.f32 %v3800, %v3859
    %v3873 = vmul.f32 %v3801, %v3859
    %v3874 = vmul.f32 %v3802, %v3859
    %v3875 = vmul.f32 %v3803, %v3859
    %s3876 = scalar_lea.vmem [#allocation13], 3
    %v3877 = vld [vmem:[%s3876] sm:$0x1]
    %v3879 = vlaneseq
    %v3880 = vshrl.u32 %v3879, 7
    %v3881 = vsub.s32 0, %v3880
    %v3882 = vrot.slane %v3877, %v3881
    %v3884 = vmul.f32 %v3860, %v3882
    %v3885 = vmul.f32 %v3861, %v3882
    %v3886 = vmul.f32 %v3862, %v3882
    %v3887 = vmul.f32 %v3863, %v3882
    %v3888 = vmul.f32 %v3864, %v3882
    %v3889 = vmul.f32 %v3865, %v3882
    %v3890 = vmul.f32 %v3866, %v3882
    %v3891 = vmul.f32 %v3867, %v3882
    %v3892 = vmul.f32 %v3868, %v3882
    %v3893 = vmul.f32 %v3869, %v3882
    %v3894 = vmul.f32 %v3870, %v3882
    %v3895 = vmul.f32 %v3871, %v3882
    %v3896 = vmul.f32 %v3872, %v3882
    %v3897 = vmul.f32 %v3873, %v3882
    %v3898 = vmul.f32 %v3874, %v3882
    %v3899 = vmul.f32 %v3875, %v3882
    %s3900 = scalar_lea.vmem %s7, 3
    %v3901 = vld [vmem:[%s3900] sm:$0x1]
    %v3903 = vlaneseq
    %v3904 = vshrl.u32 %v3903, 7
    %v3905 = vsub.s32 0, %v3904
    %v3906 = vrot.slane %v3901, %v3905
    %v3908 = vadd.f32 %v3884, %v3906
    %v3909 = vadd.f32 %v3885, %v3906
    %v3910 = vadd.f32 %v3886, %v3906
    %v3911 = vadd.f32 %v3887, %v3906
    %v3912 = vadd.f32 %v3888, %v3906
    %v3913 = vadd.f32 %v3889, %v3906
    %v3914 = vadd.f32 %v3890, %v3906
    %v3915 = vadd.f32 %v3891, %v3906
    %v3916 = vadd.f32 %v3892, %v3906
    %v3917 = vadd.f32 %v3893, %v3906
    %v3918 = vadd.f32 %v3894, %v3906
    %v3919 = vadd.f32 %v3895, %v3906
    %v3920 = vadd.f32 %v3896, %v3906
    %v3921 = vadd.f32 %v3897, %v3906
    %v3922 = vadd.f32 %v3898, %v3906
    %v3923 = vadd.f32 %v3899, %v3906
    %v3924 = vmax.f32 %v3908, 0.0
    %v3925 = vmax.f32 %v3909, 0.0
    %v3926 = vmax.f32 %v3910, 0.0
    %v3927 = vmax.f32 %v3911, 0.0
    %v3928 = vmax.f32 %v3912, 0.0
    %v3929 = vmax.f32 %v3913, 0.0
    %v3930 = vmax.f32 %v3914, 0.0
    %v3931 = vmax.f32 %v3915, 0.0
    %v3932 = vmax.f32 %v3916, 0.0
    %v3933 = vmax.f32 %v3917, 0.0
    %v3934 = vmax.f32 %v3918, 0.0
    %v3935 = vmax.f32 %v3919, 0.0
    %v3936 = vmax.f32 %v3920, 0.0
    %v3937 = vmax.f32 %v3921, 0.0
    %v3938 = vmax.f32 %v3922, 0.0
    %v3939 = vmax.f32 %v3923, 0.0
    %v3940 = vsel %vm904, %v3924, 0.0
    %v3941 = vsel %vm905, %v3925, 0.0
    %v3942 = vsel %vm906, %v3926, 0.0
    %v3943 = vsel %vm907, %v3927, 0.0
    %v3944 = vsel %vm908, %v3928, 0.0
    %v3945 = vsel %vm909, %v3929, 0.0
    %v3946 = vsel %vm910, %v3930, 0.0
    %v3947 = vsel %vm911, %v3931, 0.0
    %v3948 = vsel %vm912, %v3932, 0.0
    %v3949 = vsel %vm913, %v3933, 0.0
    %v3950 = vsel %vm914, %v3934, 0.0
    %v3951 = vsel %vm915, %v3935, 0.0
    %v3952 = vsel %vm916, %v3936, 0.0
    %v3953 = vsel %vm917, %v3937, 0.0
    %v3954 = vsel %vm918, %v3938, 0.0
    %v3955 = vsel %vm919, %v3939, 0.0
    %3956 = vst [vmem:[#allocation2] sm:$0xff] %v3940
    %3957 = vst [vmem:[#allocation2 + $0x8] sm:$0xff] %v3941
    %3958 = vst [vmem:[#allocation2 + $0x10] sm:$0xff] %v3942
    %3959 = vst [vmem:[#allocation2 + $0x18] sm:$0xff] %v3943
    %3960 = vst [vmem:[#allocation2 + $0x20] sm:$0xff] %v3944
    %3961 = vst [vmem:[#allocation2 + $0x28] sm:$0xff] %v3945
    %3962 = vst [vmem:[#allocation2 + $0x30] sm:$0xff] %v3946
    %3963 = vst [vmem:[#allocation2 + $0x38] sm:$0xff] %v3947
    %3964 = vst [vmem:[#allocation2 + $0x40] sm:$0xff] %v3948
    %3965 = vst [vmem:[#allocation2 + $0x48] sm:$0xff] %v3949
    %3966 = vst [vmem:[#allocation2 + $0x50] sm:$0xff] %v3950
    %3967 = vst [vmem:[#allocation2 + $0x58] sm:$0xff] %v3951
    %3968 = vst [vmem:[#allocation2 + $0x60] sm:$0xff] %v3952
    %3969 = vst [vmem:[#allocation2 + $0x68] sm:$0xff] %v3953
    %3970 = vst [vmem:[#allocation2 + $0x70] sm:$0xff] %v3954
    %3971 = vst [vmem:[#allocation2 + $0x78] sm:$0xff] %v3955
    %v3972 = vld [vmem:[#allocation2] sm:$0xff]
    %v3973 = vld [vmem:[#allocation2 + $0x8] sm:$0xff]
    %v3974 = vld [vmem:[#allocation2 + $0x10] sm:$0xff]
    %v3975 = vld [vmem:[#allocation2 + $0x18] sm:$0xff]
    %v3976 = vld [vmem:[#allocation2 + $0x20] sm:$0xff]
    %v3977 = vld [vmem:[#allocation2 + $0x28] sm:$0xff]
    %v3978 = vld [vmem:[#allocation2 + $0x30] sm:$0xff]
    %v3979 = vld [vmem:[#allocation2 + $0x38] sm:$0xff]
    %v3980 = vld [vmem:[#allocation2 + $0x40] sm:$0xff]
    %v3981 = vld [vmem:[#allocation2 + $0x48] sm:$0xff]
    %v3982 = vld [vmem:[#allocation2 + $0x50] sm:$0xff]
    %v3983 = vld [vmem:[#allocation2 + $0x58] sm:$0xff]
    %v3984 = vld [vmem:[#allocation2 + $0x60] sm:$0xff]
    %v3985 = vld [vmem:[#allocation2 + $0x68] sm:$0xff]
    %v3986 = vld [vmem:[#allocation2 + $0x70] sm:$0xff]
    %v3987 = vld [vmem:[#allocation2 + $0x78] sm:$0xff]
    %v3988 = vld [vmem:[#allocation15] sm:$0xff]
    %v3989 = vld [vmem:[#allocation15 + $0x8] sm:$0xff]
    %v3990 = vld [vmem:[#allocation15 + $0x10] sm:$0xff]
    %v3991 = vld [vmem:[#allocation15 + $0x18] sm:$0xff]
    %v3992 = vld [vmem:[#allocation15 + $0x20] sm:$0xff]
    %v3993 = vld [vmem:[#allocation15 + $0x28] sm:$0xff]
    %v3994 = vld [vmem:[#allocation15 + $0x30] sm:$0xff]
    %v3995 = vld [vmem:[#allocation15 + $0x38] sm:$0xff]
    %v3996 = vld [vmem:[#allocation15 + $0x40] sm:$0xff]
    %v3997 = vld [vmem:[#allocation15 + $0x48] sm:$0xff]
    %v3998 = vld [vmem:[#allocation15 + $0x50] sm:$0xff]
    %v3999 = vld [vmem:[#allocation15 + $0x58] sm:$0xff]
    %v4000 = vld [vmem:[#allocation15 + $0x60] sm:$0xff]
    %v4001 = vld [vmem:[#allocation15 + $0x68] sm:$0xff]
    %v4002 = vld [vmem:[#allocation15 + $0x70] sm:$0xff]
    %v4003 = vld [vmem:[#allocation15 + $0x78] sm:$0xff]
    %v4004 = vld [vmem:[%s9] sm:$0x1]
    %v4006 = vlaneseq
    %v4007 = vshrl.u32 %v4006, 7
    %v4008 = vsub.s32 0, %v4007
    %v4009 = vrot.slane %v4004, %v4008
    %4011 = vmatprep.subr.mxu0 0.0
    %4012 = vmatpush1.msra.mxu0 %v4003
    %4013 = vmatprep.subr.mxu0 0.0
    %4014 = vmatpush1.msra.mxu0 %v4002
    %4015 = vmatprep.subr.mxu0 0.0
    %4016 = vmatpush1.msra.mxu0 %v4001
    %4017 = vmatprep.subr.mxu0 0.0
    %4018 = vmatpush1.msra.mxu0 %v4000
    %4019 = vmatprep.subr.mxu0 0.0
    %4020 = vmatpush1.msra.mxu0 %v3999
    %4021 = vmatprep.subr.mxu0 0.0
    %4022 = vmatpush1.msra.mxu0 %v3998
    %4023 = vmatprep.subr.mxu0 0.0
    %4024 = vmatpush1.msra.mxu0 %v3997
    %4025 = vmatprep.subr.mxu0 0.0
    %4026 = vmatpush1.msra.mxu0 %v3996
    %4027 = vmatprep.subr.mxu0 0.0
    %4028 = vmatpush1.msra.mxu0 %v3995
    %4029 = vmatprep.subr.mxu0 0.0
    %4030 = vmatpush1.msra.mxu0 %v3994
    %4031 = vmatprep.subr.mxu0 0.0
    %4032 = vmatpush1.msra.mxu0 %v3993
    %4033 = vmatprep.subr.mxu0 0.0
    %4034 = vmatpush1.msra.mxu0 %v3992
    %4035 = vmatprep.subr.mxu0 0.0
    %4036 = vmatpush1.msra.mxu0 %v3991
    %4037 = vmatprep.subr.mxu0 0.0
    %4038 = vmatpush1.msra.mxu0 %v3990
    %4039 = vmatprep.subr.mxu0 0.0
    %4040 = vmatpush1.msra.mxu0 %v3989
    %4041 = vmatprep.subr.mxu0 0.0
    %4042 = vmatpush1.msra.mxu0 %v3988
    %4043 = vmatprep.subr.mxu0 0.0
    %4044 = vmatpush2.msra.mxu0 0.0
    %4045 = vmatprep.subr.mxu0 0.0
    %4046 = vmatpush2.msra.mxu0 0.0
    %4047 = vmatprep.subr.mxu0 0.0
    %4048 = vmatpush2.msra.mxu0 0.0
    %4049 = vmatprep.subr.mxu0 0.0
    %4050 = vmatpush2.msra.mxu0 0.0
    %4051 = vmatprep.subr.mxu0 0.0
    %4052 = vmatpush2.msra.mxu0 0.0
    %4053 = vmatprep.subr.mxu0 0.0
    %4054 = vmatpush2.msra.mxu0 0.0
    %4055 = vmatprep.subr.mxu0 0.0
    %4056 = vmatpush2.msra.mxu0 0.0
    %4057 = vmatprep.subr.mxu0 0.0
    %4058 = vmatpush2.msra.mxu0 0.0
    %4059 = vmatprep.subr.mxu0 0.0
    %4060 = vmatpush2.msra.mxu0 0.0
    %4061 = vmatprep.subr.mxu0 0.0
    %4062 = vmatpush2.msra.mxu0 0.0
    %4063 = vmatprep.subr.mxu0 0.0
    %4064 = vmatpush2.msra.mxu0 0.0
    %4065 = vmatprep.subr.mxu0 0.0
    %4066 = vmatpush2.msra.mxu0 0.0
    %4067 = vmatprep.subr.mxu0 0.0
    %4068 = vmatpush2.msra.mxu0 0.0
    %4069 = vmatprep.subr.mxu0 0.0
    %4070 = vmatpush2.msra.mxu0 0.0
    %4071 = vmatprep.subr.mxu0 0.0
    %4072 = vmatpush2.msra.mxu0 0.0
    %4073 = vmatprep.subr.mxu0 0.0
    %4074 = vmatpush2.msra.mxu0 0.0
    %4075 = vmatprep.mubr.f32.mxu0 0.0
    %4076 = vmatmul.mubr.f32.gmra.mxu0 %v3972
    %v4077 = vpop.f32.mrf.mxu0
    %v4078 = vadd.f32 %v4009, %v4077
    %v4079 = vpop.f32.mrf.mxu0
    %4080 = vmatprep.mubr.f32.mxu0 0.0
    %4081 = vmatmul.mubr.f32.gmra.mxu0 %v3973
    %v4082 = vpop.f32.mrf.mxu0
    %v4083 = vadd.f32 %v4009, %v4082
    %v4084 = vpop.f32.mrf.mxu0
    %4085 = vmatprep.mubr.f32.mxu0 0.0
    %4086 = vmatmul.mubr.f32.gmra.mxu0 %v3974
    %v4087 = vpop.f32.mrf.mxu0
    %v4088 = vadd.f32 %v4009, %v4087
    %v4089 = vpop.f32.mrf.mxu0
    %4090 = vmatprep.mubr.f32.mxu0 0.0
    %4091 = vmatmul.mubr.f32.gmra.mxu0 %v3975
    %v4092 = vpop.f32.mrf.mxu0
    %v4093 = vadd.f32 %v4009, %v4092
    %v4094 = vpop.f32.mrf.mxu0
    %4095 = vmatprep.mubr.f32.mxu0 0.0
    %4096 = vmatmul.mubr.f32.gmra.mxu0 %v3976
    %v4097 = vpop.f32.mrf.mxu0
    %v4098 = vadd.f32 %v4009, %v4097
    %v4099 = vpop.f32.mrf.mxu0
    %4100 = vmatprep.mubr.f32.mxu0 0.0
    %4101 = vmatmul.mubr.f32.gmra.mxu0 %v3977
    %v4102 = vpop.f32.mrf.mxu0
    %v4103 = vadd.f32 %v4009, %v4102
    %v4104 = vpop.f32.mrf.mxu0
    %4105 = vmatprep.mubr.f32.mxu0 0.0
    %4106 = vmatmul.mubr.f32.gmra.mxu0 %v3978
    %v4107 = vpop.f32.mrf.mxu0
    %v4108 = vadd.f32 %v4009, %v4107
    %v4109 = vpop.f32.mrf.mxu0
    %4110 = vmatprep.mubr.f32.mxu0 0.0
    %4111 = vmatmul.mubr.f32.gmra.mxu0 %v3979
    %v4112 = vpop.f32.mrf.mxu0
    %v4113 = vadd.f32 %v4009, %v4112
    %v4114 = vpop.f32.mrf.mxu0
    %4115 = vmatprep.mubr.f32.mxu0 0.0
    %4116 = vmatmul.mubr.f32.gmra.mxu0 %v3980
    %v4117 = vpop.f32.mrf.mxu0
    %v4118 = vadd.f32 %v4009, %v4117
    %v4119 = vpop.f32.mrf.mxu0
    %4120 = vmatprep.mubr.f32.mxu0 0.0
    %4121 = vmatmul.mubr.f32.gmra.mxu0 %v3981
    %v4122 = vpop.f32.mrf.mxu0
    %v4123 = vadd.f32 %v4009, %v4122
    %v4124 = vpop.f32.mrf.mxu0
    %4125 = vmatprep.mubr.f32.mxu0 0.0
    %4126 = vmatmul.mubr.f32.gmra.mxu0 %v3982
    %v4127 = vpop.f32.mrf.mxu0
    %v4128 = vadd.f32 %v4009, %v4127
    %v4129 = vpop.f32.mrf.mxu0
    %4130 = vmatprep.mubr.f32.mxu0 0.0
    %4131 = vmatmul.mubr.f32.gmra.mxu0 %v3983
    %v4132 = vpop.f32.mrf.mxu0
    %v4133 = vadd.f32 %v4009, %v4132
    %v4134 = vpop.f32.mrf.mxu0
    %4135 = vmatprep.mubr.f32.mxu0 0.0
    %4136 = vmatmul.mubr.f32.gmra.mxu0 %v3984
    %v4137 = vpop.f32.mrf.mxu0
    %v4138 = vadd.f32 %v4009, %v4137
    %v4139 = vpop.f32.mrf.mxu0
    %4140 = vmatprep.mubr.f32.mxu0 0.0
    %4141 = vmatmul.mubr.f32.gmra.mxu0 %v3985
    %v4142 = vpop.f32.mrf.mxu0
    %v4143 = vadd.f32 %v4009, %v4142
    %v4144 = vpop.f32.mrf.mxu0
    %4145 = vmatprep.mubr.f32.mxu0 0.0
    %4146 = vmatmul.mubr.f32.gmra.mxu0 %v3986
    %v4147 = vpop.f32.mrf.mxu0
    %v4148 = vadd.f32 %v4009, %v4147
    %v4149 = vpop.f32.mrf.mxu0
    %4150 = vmatprep.mubr.f32.mxu0 0.0
    %4151 = vmatmul.mubr.f32.gmra.mxu0 %v3987
    %v4152 = vpop.f32.mrf.mxu0
    %v4153 = vadd.f32 %v4009, %v4152
    %v4154 = vpop.f32.mrf.mxu0
    %4155 = vdwg.mxu0
    %4156 = vst [vmem:[#allocation16] sm:$0xff] %v4078
    %4157 = vst [vmem:[#allocation16 + $0x8] sm:$0xff] %v4083
    %4158 = vst [vmem:[#allocation16 + $0x10] sm:$0xff] %v4088
    %4159 = vst [vmem:[#allocation16 + $0x18] sm:$0xff] %v4093
    %4160 = vst [vmem:[#allocation16 + $0x20] sm:$0xff] %v4098
    %4161 = vst [vmem:[#allocation16 + $0x28] sm:$0xff] %v4103
    %4162 = vst [vmem:[#allocation16 + $0x30] sm:$0xff] %v4108
    %4163 = vst [vmem:[#allocation16 + $0x38] sm:$0xff] %v4113
    %4164 = vst [vmem:[#allocation16 + $0x40] sm:$0xff] %v4118
    %4165 = vst [vmem:[#allocation16 + $0x48] sm:$0xff] %v4123
    %4166 = vst [vmem:[#allocation16 + $0x50] sm:$0xff] %v4128
    %4167 = vst [vmem:[#allocation16 + $0x58] sm:$0xff] %v4133
    %4168 = vst [vmem:[#allocation16 + $0x60] sm:$0xff] %v4138
    %4169 = vst [vmem:[#allocation16 + $0x68] sm:$0xff] %v4143
    %4170 = vst [vmem:[#allocation16 + $0x70] sm:$0xff] %v4148
    %4171 = vst [vmem:[#allocation16 + $0x78] sm:$0xff] %v4153
    // Predicated region
    $region74: #{tpu_custom_call.1} parent=1 // pred_check
      _
    $region75: #{tpu_custom_call.1} parent=1 // pred_check_branch
      %4173 = sbr.rel (0) target = $region77
    $region76: #{tpu_custom_call.1} parent=1 // pred_region
      %s4175 = ssub.s32 2048, 2048
      %4176 = vsyncadd [#allocation9], %s4175
      %s4177 = sshll.u32 [#allocation16], 4
      %s4178 = int_to_ptr.vmem [resolvable:$true] %s4177
      %4183 = dma.vmem_to_hbm [thread:$0]  %s4178, 2048, %s10, [#allocation9], 128, 128, 8
    $region77: #{tpu_custom_call.1} parent=1 // pred_fallthru
      _
    // Predicated region
    $region78: #{tpu_custom_call.1} parent=1 // pred_check
      _
    $region79: #{tpu_custom_call.1} parent=1 // pred_check_branch
      %4185 = sbr.rel (0) target = $region81
    $region80: #{tpu_custom_call.1} parent=1 // pred_region
      %4186 = dma.done [#allocation9], 2048
    $region81: #{tpu_custom_call.1} parent=1 // pred_fallthru
      _
    %4187 = vsyncpa [#allocation8], 1
    %4188 = vsyncpa [#allocation11], 1
    %4189 = vsyncpa [#allocation14], 1
    %4190 = vsyncpa [#allocation9], 1
  %4191 = vsyncmov [#allocation6]
  %s4192 = vpop.sfrf %4191
  %p4193 = scmp.eq.s32.totalorder %s4192, 0
  %p4194 = pneg %p4193
  %4196 = shalt.err (%p4194)
  %s4197 = scalar_lea.sflag [#allocation6], 1
  %4198 = vsyncmov %s4197
  %s4199 = vpop.sfrf %4198
  %p4200 = scmp.eq.s32.totalorder %s4199, 0
  %p4201 = pneg %p4200
  %4203 = shalt.err (%p4201)

</llo_original>
